<compile_context>
chip_gen: v7x
topology: tpu7x:2x2x1
jax: 0.10.0
libtpu: 0.0.40
codegen_flags: <defaults>
</compile_context>

<pallas_src>
import jax
import jax.numpy as jnp
from jax import lax
from jax.experimental import pallas as pl
from jax.experimental.pallas import tpu as pltpu


# ----------------------------------------------------------------------------
# Pallas kernel: bidirectional LSTM recurrence (input projections precomputed)
#                + final fc_cell / fc_state
# ----------------------------------------------------------------------------
def _encoder_kernel(
    # inputs
    gates_ref,     # (T, B, 8H) f32  precomputed x@Wih (+bias) for [fwd | bwd]
    lens_ref,      # (B, 1)     i32
    whh_f_ref,     # (H, 4H)    f32  W_hh^T forward
    whh_b_ref,     # (H, 4H)    f32  W_hh^T backward
    wcell_f_ref,   # (H, H)     fc_cell.weight^T, rows for fwd cell state
    wcell_b_ref,   # (H, H)     fc_cell.weight^T, rows for bwd cell state
    bcell_ref,     # (1, H)
    wstate_f_ref,  # (H, H)
    wstate_b_ref,  # (H, H)
    bstate_ref,    # (1, H)
    # outputs
    out_ref,       # (T, B, 2H)  fwd in [:, :, :H], bwd in [:, :, H:]
    cell_out_ref,  # (B, H)      fc_cell(concat(c_fwd, c_bwd))
    state_out_ref, # (B, H)      fc_state(concat(h_fwd, h_bwd))
):
    T, B, _ = gates_ref.shape
    H = whh_f_ref.shape[0]
    H4 = 4 * H

    lens = lens_ref[...]            # (B, 1) int32
    whh_f = whh_f_ref[...]
    whh_b = whh_b_ref[...]

    def mm(a, b):
        # DEFAULT precision (native MXU path); f32 accumulation.
        return jnp.dot(a, b, preferred_element_type=jnp.float32)

    def lstm_cell(pre, c):
        # PyTorch gate order: i, f, g, o
        i = jax.nn.sigmoid(pre[:, 0:H])
        f = jax.nn.sigmoid(pre[:, H:2 * H])
        g = jnp.tanh(pre[:, 2 * H:3 * H])
        o = jax.nn.sigmoid(pre[:, 3 * H:4 * H])
        c_new = f * c + i * g
        h_new = o * jnp.tanh(c_new)
        return h_new, c_new

    zeros = jnp.zeros((B, H), jnp.float32)

    # Fused forward/backward loop: iteration t processes forward step t and
    # backward step T-1-t.  State lives in the loop carry (registers).
    def body(t, carry):
        hf, cf, hb, cb = carry
        tb = T - 1 - t

        # Lane-aligned (4H = multiple of 128 for H>=32) half-slab loads.
        pre_f = gates_ref[t, :, 0:H4] + mm(hf, whh_f)          # (B, 4H)
        pre_b = gates_ref[tb, :, H4:2 * H4] + mm(hb, whh_b)    # (B, 4H)

        hf_new, cf_new = lstm_cell(pre_f, cf)
        hb_new, cb_new = lstm_cell(pre_b, cb)

        mf = t < lens                                          # (B, 1) bool
        mb = tb < lens

        # Padded steps produce zero output (packed-sequence semantics).
        out_ref[t, :, 0:H] = jnp.where(mf, hf_new, 0.0)
        out_ref[tb, :, H:2 * H] = jnp.where(mb, hb_new, 0.0)

        # Freeze state past the sequence end.
        hf = jnp.where(mf, hf_new, hf)
        cf = jnp.where(mf, cf_new, cf)
        hb = jnp.where(mb, hb_new, hb)
        cb = jnp.where(mb, cb_new, cb)
        return hf, cf, hb, cb

    hf, cf, hb, cb = lax.fori_loop(0, T, body, (zeros, zeros, zeros, zeros),
                                   unroll=True)

    # fc_cell / fc_state on concatenated final states:
    #   concat(fwd, bwd) @ W == fwd @ W[:H] + bwd @ W[H:]   (avoids lane-concat)
    cell_out_ref[...] = (mm(cf, wcell_f_ref[...]) + mm(cb, wcell_b_ref[...])
                         + bcell_ref[...])
    state_out_ref[...] = (mm(hf, wstate_f_ref[...]) + mm(hb, wstate_b_ref[...])
                          + bstate_ref[...])


# ----------------------------------------------------------------------------
# Wrapper
# ----------------------------------------------------------------------------
def encoder_forward(x, seq_lens, p):
    """x: (B, T, D) f32, seq_lens: (B,) i32. Returns (outputs, cell_state, state)."""
    B, T, D = x.shape
    H = p["whh_f"].shape[0]

    # Hoisted input projections: one big MXU-friendly matmul covering both
    # directions; output is time-major so each recurrence step reads a
    # contiguous (B, 4H) slab.  The einsum also folds in the (B,T,D)->(T,B,·)
    # transpose, so there is no separate transpose pass over x.
    wih_cat = jnp.concatenate([p["wih_f"], p["wih_b"]], axis=1)    # (D, 8H)
    b_cat = jnp.concatenate([p["b_f"], p["b_b"]], axis=1)          # (1, 8H)
    gates_x = jnp.einsum("btd,dg->tbg", x.astype(jnp.float32), wih_cat) + b_cat

    lens2d = seq_lens.reshape(B, 1).astype(jnp.int32)

    # Advisory cost estimate (recurrent matmuls + final linears dominate).
    flops = int(2 * 2 * T * B * H * 4 * H + 2 * 2 * B * 2 * H * H)
    transc = int(2 * 5 * T * B * H)
    bytes_acc = int(4 * (T * B * 8 * H + T * B * 2 * H + 2 * H * 4 * H
                         + 4 * H * H + 4 * B * H + B))

    vmem = pltpu.MemorySpace.VMEM
    out_tbh, re_cell, re_state = pl.pallas_call(
        _encoder_kernel,
        out_shape=(
            jax.ShapeDtypeStruct((T, B, 2 * H), jnp.float32),
            jax.ShapeDtypeStruct((B, H), jnp.float32),
            jax.ShapeDtypeStruct((B, H), jnp.float32),
        ),
        in_specs=[pl.BlockSpec(memory_space=vmem)] * 10,
        out_specs=(pl.BlockSpec(memory_space=vmem),) * 3,
        cost_estimate=pl.CostEstimate(flops=flops, transcendentals=transc,
                                      bytes_accessed=bytes_acc),
    )(
        gates_x, lens2d,
        p["whh_f"], p["whh_b"],
        p["wcell"][:H], p["wcell"][H:], p["bcell"],
        p["wstate"][:H], p["wstate"][H:], p["bstate"],
    )

    # (T, B, 2H) -> (B, T, 2H), batch_first like the PyTorch module.
    outputs = jnp.transpose(out_tbh, (1, 0, 2))
    return outputs, re_cell, re_state


# ----------------------------------------------------------------------------
# Deterministic parameter construction (synthetic, matches module shapes)
# ----------------------------------------------------------------------------
def make_params(key, input_size, hidden_size):
    D, H = input_size, hidden_size
    ks = jax.random.split(key, 8)
    s = 1.0 / jnp.sqrt(jnp.float32(H))            # PyTorch LSTM default init range

    def unif(k, shape):
        return jax.random.uniform(k, shape, jnp.float32, -s, s)

    std_xav = jnp.sqrt(2.0 / (2 * H + H))          # xavier_normal_ for the Linears
    return {
        "wih_f": unif(ks[0], (D, 4 * H)),
        "whh_f": unif(ks[1], (H, 4 * H)),
        "b_f":   unif(ks[2], (1, 4 * H)),          # b_ih + b_hh combined
        "wih_b": unif(ks[3], (D, 4 * H)),
        "whh_b": unif(ks[4], (H, 4 * H)),
        "b_b":   unif(ks[5], (1, 4 * H)),
        "wcell":  jax.random.normal(ks[6], (2 * H, H), jnp.float32) * std_xav,
        "bcell":  jnp.zeros((1, H), jnp.float32),
        "wstate": jax.random.normal(ks[7], (2 * H, H), jnp.float32) * std_xav,
        "bstate": jnp.zeros((1, H), jnp.float32),
        # TODO(synk): self.W_h is defined in __init__ but never used in forward(); omitted.
    }


# ----------------------------------------------------------------------------
# Pure-JAX reference (same masked-recurrence semantics) for a correctness check
# ----------------------------------------------------------------------------
def reference_forward(x, seq_lens, p):
    B, T, D = x.shape
    H = p["whh_f"].shape[0]
    lens = seq_lens.reshape(B, 1)

    def step(h, c, x_t, wih, whh, b):
        g = x_t @ wih + h @ whh + b
        i = jax.nn.sigmoid(g[:, :H])
        f = jax.nn.sigmoid(g[:, H:2 * H])
        gg = jnp.tanh(g[:, 2 * H:3 * H])
        o = jax.nn.sigmoid(g[:, 3 * H:])
        c_new = f * c + i * gg
        return o * jnp.tanh(c_new), c_new

    hf = jnp.zeros((B, H)); cf = jnp.zeros((B, H)); out_f = []
    for t in range(T):
        hn, cn = step(hf, cf, x[:, t], p["wih_f"], p["whh_f"], p["b_f"])
        m = (t < lens).astype(jnp.float32)
        hf = m * hn + (1 - m) * hf
        cf = m * cn + (1 - m) * cf
        out_f.append(m * hn)

    hb = jnp.zeros((B, H)); cb = jnp.zeros((B, H)); out_b = [None] * T
    for t in range(T - 1, -1, -1):
        hn, cn = step(hb, cb, x[:, t], p["wih_b"], p["whh_b"], p["b_b"])
        m = (t < lens).astype(jnp.float32)
        hb = m * hn + (1 - m) * hb
        cb = m * cn + (1 - m) * cb
        out_b[t] = m * hn

    outputs = jnp.concatenate([jnp.stack(out_f, 1), jnp.stack(out_b, 1)], axis=-1)
    c_cat = jnp.concatenate([cf, cb], 1)
    h_cat = jnp.concatenate([hf, hb], 1)
    re_cell = c_cat @ p["wcell"] + p["bcell"]
    re_state = h_cat @ p["wstate"] + p["bstate"]
    return outputs, re_cell, re_state


if __name__ == "__main__":
    B, T, D, H = 2, 8, 16, 32          # batch, seq, input_size, hidden_size

    key = jax.random.PRNGKey(0)
    kx, kp = jax.random.split(key)
    x = jax.random.normal(kx, (B, T, D), jnp.float32)
    seq_lens = jnp.array([8, 5], dtype=jnp.int32)
    params = make_params(kp, D, H)

    outputs, cell_state, state = encoder_forward(x, seq_lens, params)
    jax.block_until_ready((outputs, cell_state, state))

    ref_out, ref_cell, ref_state = reference_forward(x, seq_lens, params)
    assert outputs.shape == (B, T, 2 * H)
    assert cell_state.shape == (B, H) and state.shape == (B, H)
    # Slightly looser tolerances since matmuls use DEFAULT (not HIGHEST) precision.
    assert jnp.allclose(outputs, ref_out, atol=5e-3, rtol=5e-3)
    assert jnp.allclose(cell_state, ref_cell, atol=5e-3, rtol=5e-3)
    assert jnp.allclose(state, ref_state, atol=5e-3, rtol=5e-3)

    print("KERNEL_OK")
</pallas_src>

<mosaic_0001>
module attributes {stable_mosaic.version = 11 : i64} {
  func.func @_encoder_kernel(%arg0: memref<8x2x256xf32, #tpu.memory_space<vmem>>, %arg1: memref<2x1xi32, #tpu.memory_space<vmem>>, %arg2: memref<32x128xf32, #tpu.memory_space<vmem>>, %arg3: memref<32x128xf32, #tpu.memory_space<vmem>>, %arg4: memref<32x32xf32, #tpu.memory_space<vmem>>, %arg5: memref<32x32xf32, #tpu.memory_space<vmem>>, %arg6: memref<1x32xf32, #tpu.memory_space<vmem>>, %arg7: memref<32x32xf32, #tpu.memory_space<vmem>>, %arg8: memref<32x32xf32, #tpu.memory_space<vmem>>, %arg9: memref<1x32xf32, #tpu.memory_space<vmem>>, %arg10: memref<8x2x64xf32, #tpu.memory_space<vmem>>, %arg11: memref<2x32xf32, #tpu.memory_space<vmem>>, %arg12: memref<2x32xf32, #tpu.memory_space<vmem>>) attributes {dimension_semantics = [], scalar_prefetch = 0 : i64, scratch_operands = 0 : i64, tpu.core_type = #tpu.core_type<tc>} {
    %c0 = arith.constant 0 : index
    %c0_0 = arith.constant 0 : index
    %0 = vector.load %arg1[%c0, %c0_0] : memref<2x1xi32, #tpu.memory_space<vmem>>, vector<2x1xi32>
    %c0_1 = arith.constant 0 : index
    %c0_2 = arith.constant 0 : index
    %1 = vector.load %arg2[%c0_1, %c0_2] : memref<32x128xf32, #tpu.memory_space<vmem>>, vector<32x128xf32>
    %c0_3 = arith.constant 0 : index
    %c0_4 = arith.constant 0 : index
    %2 = vector.load %arg3[%c0_3, %c0_4] : memref<32x128xf32, #tpu.memory_space<vmem>>, vector<32x128xf32>
    %cst = arith.constant 0.000000e+00 : f32
    %3 = vector.broadcast %cst : f32 to vector<2x32xf32>
    %c0_i32 = arith.constant 0 : i32
    %c7_i32 = arith.constant 7 : i32
    %4 = arith.subi %c7_i32, %c0_i32 : i32
    %5 = arith.index_cast %c0_i32 : i32 to index
    %c0_5 = arith.constant 0 : index
    %c0_6 = arith.constant 0 : index
    %6 = vector.load %arg0[%5, %c0_5, %c0_6] : memref<8x2x256xf32, #tpu.memory_space<vmem>>, vector<1x2x128xf32>
    %7 = vector.shape_cast %6 : vector<1x2x128xf32> to vector<2x128xf32>
    %cst_7 = arith.constant dense<0.000000e+00> : vector<2x128xf32>
    %8 = tpu.matmul %3, %1, %cst_7 {dimension_numbers = #tpu.dot_dimension_numbers<[1], [0], [0], [1], [0, 0, 1, 1], [], []>} : vector<2x32xf32>, vector<32x128xf32>, vector<2x128xf32> -> vector<2x128xf32>
    %9 = arith.addf %7, %8 : vector<2x128xf32>
    %10 = arith.index_cast %4 : i32 to index
    %c0_8 = arith.constant 0 : index
    %c128 = arith.constant 128 : index
    %11 = vector.load %arg0[%10, %c0_8, %c128] : memref<8x2x256xf32, #tpu.memory_space<vmem>>, vector<1x2x128xf32>
    %12 = vector.shape_cast %11 : vector<1x2x128xf32> to vector<2x128xf32>
    %cst_9 = arith.constant dense<0.000000e+00> : vector<2x128xf32>
    %13 = tpu.matmul %3, %2, %cst_9 {dimension_numbers = #tpu.dot_dimension_numbers<[1], [0], [0], [1], [0, 0, 1, 1], [], []>} : vector<2x32xf32>, vector<32x128xf32>, vector<2x128xf32> -> vector<2x128xf32>
    %14 = arith.addf %12, %13 : vector<2x128xf32>
    %15 = vector.extract_strided_slice %9 {offsets = [0, 0], sizes = [2, 32], strides = [1, 1]} : vector<2x128xf32> to vector<2x32xf32>
    %16 = arith.negf %15 : vector<2x32xf32>
    %17 = math.exp %16 : vector<2x32xf32>
    %cst_10 = arith.constant 1.000000e+00 : f32
    %18 = vector.broadcast %cst_10 : f32 to vector<2x32xf32>
    %19 = arith.addf %18, %17 : vector<2x32xf32>
    %20 = arith.divf %18, %19 : vector<2x32xf32>
    %21 = vector.extract_strided_slice %9 {offsets = [0, 32], sizes = [2, 32], strides = [1, 1]} : vector<2x128xf32> to vector<2x32xf32>
    %22 = arith.negf %21 : vector<2x32xf32>
    %23 = math.exp %22 : vector<2x32xf32>
    %cst_11 = arith.constant 1.000000e+00 : f32
    %24 = vector.broadcast %cst_11 : f32 to vector<2x32xf32>
    %25 = arith.addf %24, %23 : vector<2x32xf32>
    %26 = arith.divf %24, %25 : vector<2x32xf32>
    %27 = vector.extract_strided_slice %9 {offsets = [0, 64], sizes = [2, 32], strides = [1, 1]} : vector<2x128xf32> to vector<2x32xf32>
    %28 = math.tanh %27 : vector<2x32xf32>
    %29 = vector.extract_strided_slice %9 {offsets = [0, 96], sizes = [2, 32], strides = [1, 1]} : vector<2x128xf32> to vector<2x32xf32>
    %30 = arith.negf %29 : vector<2x32xf32>
    %31 = math.exp %30 : vector<2x32xf32>
    %cst_12 = arith.constant 1.000000e+00 : f32
    %32 = vector.broadcast %cst_12 : f32 to vector<2x32xf32>
    %33 = arith.addf %32, %31 : vector<2x32xf32>
    %34 = arith.divf %32, %33 : vector<2x32xf32>
    %35 = arith.mulf %26, %3 : vector<2x32xf32>
    %36 = arith.mulf %20, %28 : vector<2x32xf32>
    %37 = arith.addf %35, %36 : vector<2x32xf32>
    %38 = math.tanh %37 : vector<2x32xf32>
    %39 = arith.mulf %34, %38 : vector<2x32xf32>
    %40 = vector.extract_strided_slice %14 {offsets = [0, 0], sizes = [2, 32], strides = [1, 1]} : vector<2x128xf32> to vector<2x32xf32>
    %41 = arith.negf %40 : vector<2x32xf32>
    %42 = math.exp %41 : vector<2x32xf32>
    %cst_13 = arith.constant 1.000000e+00 : f32
    %43 = vector.broadcast %cst_13 : f32 to vector<2x32xf32>
    %44 = arith.addf %43, %42 : vector<2x32xf32>
    %45 = arith.divf %43, %44 : vector<2x32xf32>
    %46 = vector.extract_strided_slice %14 {offsets = [0, 32], sizes = [2, 32], strides = [1, 1]} : vector<2x128xf32> to vector<2x32xf32>
    %47 = arith.negf %46 : vector<2x32xf32>
    %48 = math.exp %47 : vector<2x32xf32>
    %cst_14 = arith.constant 1.000000e+00 : f32
    %49 = vector.broadcast %cst_14 : f32 to vector<2x32xf32>
    %50 = arith.addf %49, %48 : vector<2x32xf32>
    %51 = arith.divf %49, %50 : vector<2x32xf32>
    %52 = vector.extract_strided_slice %14 {offsets = [0, 64], sizes = [2, 32], strides = [1, 1]} : vector<2x128xf32> to vector<2x32xf32>
    %53 = math.tanh %52 : vector<2x32xf32>
    %54 = vector.extract_strided_slice %14 {offsets = [0, 96], sizes = [2, 32], strides = [1, 1]} : vector<2x128xf32> to vector<2x32xf32>
    %55 = arith.negf %54 : vector<2x32xf32>
    %56 = math.exp %55 : vector<2x32xf32>
    %cst_15 = arith.constant 1.000000e+00 : f32
    %57 = vector.broadcast %cst_15 : f32 to vector<2x32xf32>
    %58 = arith.addf %57, %56 : vector<2x32xf32>
    %59 = arith.divf %57, %58 : vector<2x32xf32>
    %60 = arith.mulf %51, %3 : vector<2x32xf32>
    %61 = arith.mulf %45, %53 : vector<2x32xf32>
    %62 = arith.addf %60, %61 : vector<2x32xf32>
    %63 = math.tanh %62 : vector<2x32xf32>
    %64 = arith.mulf %59, %63 : vector<2x32xf32>
    %65 = vector.broadcast %c0_i32 : i32 to vector<2x1xi32>
    %66 = arith.cmpi slt, %65, %0 : vector<2x1xi32>
    %67 = vector.broadcast %4 : i32 to vector<2x1xi32>
    %68 = arith.cmpi slt, %67, %0 : vector<2x1xi32>
    %cst_16 = arith.constant 0.000000e+00 : f32
    %69 = vector.shape_cast %66 : vector<2x1xi1> to vector<2x1xi1>
    %70 = vector.broadcast %69 : vector<2x1xi1> to vector<2x32xi1>
    %71 = vector.broadcast %cst_16 : f32 to vector<2x32xf32>
    %72 = arith.select %70, %39, %71 : vector<2x32xi1>, vector<2x32xf32>
    %73 = arith.index_cast %c0_i32 : i32 to index
    %c0_17 = arith.constant 0 : index
    %c0_18 = arith.constant 0 : index
    %74 = vector.load %arg10[%73, %c0_17, %c0_18] : memref<8x2x64xf32, #tpu.memory_space<vmem>>, vector<1x2x32xf32>
    %75 = vector.shape_cast %74 : vector<1x2x32xf32> to vector<2x32xf32>
    %76 = vector.shape_cast %72 : vector<2x32xf32> to vector<1x2x32xf32>
    tpu.vector_store %arg10[%73, %c0_17, %c0_18], %76 {strides = array<i32>} : memref<8x2x64xf32, #tpu.memory_space<vmem>>, vector<1x2x32xf32>,
    %cst_19 = arith.constant 0.000000e+00 : f32
    %77 = vector.shape_cast %68 : vector<2x1xi1> to vector<2x1xi1>
    %78 = vector.broadcast %77 : vector<2x1xi1> to vector<2x32xi1>
    %79 = vector.broadcast %cst_19 : f32 to vector<2x32xf32>
    %80 = arith.select %78, %64, %79 : vector<2x32xi1>, vector<2x32xf32>
    %81 = arith.index_cast %4 : i32 to index
    %c0_20 = arith.constant 0 : index
    %c32 = arith.constant 32 : index
    %82 = vector.load %arg10[%81, %c0_20, %c32] : memref<8x2x64xf32, #tpu.memory_space<vmem>>, vector<1x2x32xf32>
    %83 = vector.shape_cast %82 : vector<1x2x32xf32> to vector<2x32xf32>
    %84 = vector.shape_cast %80 : vector<2x32xf32> to vector<1x2x32xf32>
    tpu.vector_store %arg10[%81, %c0_20, %c32], %84 {strides = array<i32>} : memref<8x2x64xf32, #tpu.memory_space<vmem>>, vector<1x2x32xf32>,
    %85 = vector.shape_cast %66 : vector<2x1xi1> to vector<2x1xi1>
    %86 = vector.broadcast %85 : vector<2x1xi1> to vector<2x32xi1>
    %87 = arith.select %86, %39, %3 : vector<2x32xi1>, vector<2x32xf32>
    %88 = vector.shape_cast %66 : vector<2x1xi1> to vector<2x1xi1>
    %89 = vector.broadcast %88 : vector<2x1xi1> to vector<2x32xi1>
    %90 = arith.select %89, %37, %3 : vector<2x32xi1>, vector<2x32xf32>
    %91 = vector.shape_cast %68 : vector<2x1xi1> to vector<2x1xi1>
    %92 = vector.broadcast %91 : vector<2x1xi1> to vector<2x32xi1>
    %93 = arith.select %92, %64, %3 : vector<2x32xi1>, vector<2x32xf32>
    %94 = vector.shape_cast %68 : vector<2x1xi1> to vector<2x1xi1>
    %95 = vector.broadcast %94 : vector<2x1xi1> to vector<2x32xi1>
    %96 = arith.select %95, %62, %3 : vector<2x32xi1>, vector<2x32xf32>
    %c1_i32 = arith.constant 1 : i32
    %c7_i32_21 = arith.constant 7 : i32
    %97 = arith.subi %c7_i32_21, %c1_i32 : i32
    %98 = arith.index_cast %c1_i32 : i32 to index
    %c0_22 = arith.constant 0 : index
    %c0_23 = arith.constant 0 : index
    %99 = vector.load %arg0[%98, %c0_22, %c0_23] : memref<8x2x256xf32, #tpu.memory_space<vmem>>, vector<1x2x128xf32>
    %100 = vector.shape_cast %99 : vector<1x2x128xf32> to vector<2x128xf32>
    %cst_24 = arith.constant dense<0.000000e+00> : vector<2x128xf32>
    %101 = tpu.matmul %87, %1, %cst_24 {dimension_numbers = #tpu.dot_dimension_numbers<[1], [0], [0], [1], [0, 0, 1, 1], [], []>} : vector<2x32xf32>, vector<32x128xf32>, vector<2x128xf32> -> vector<2x128xf32>
    %102 = arith.addf %100, %101 : vector<2x128xf32>
    %103 = arith.index_cast %97 : i32 to index
    %c0_25 = arith.constant 0 : index
    %c128_26 = arith.constant 128 : index
    %104 = vector.load %arg0[%103, %c0_25, %c128_26] : memref<8x2x256xf32, #tpu.memory_space<vmem>>, vector<1x2x128xf32>
    %105 = vector.shape_cast %104 : vector<1x2x128xf32> to vector<2x128xf32>
    %cst_27 = arith.constant dense<0.000000e+00> : vector<2x128xf32>
    %106 = tpu.matmul %93, %2, %cst_27 {dimension_numbers = #tpu.dot_dimension_numbers<[1], [0], [0], [1], [0, 0, 1, 1], [], []>} : vector<2x32xf32>, vector<32x128xf32>, vector<2x128xf32> -> vector<2x128xf32>
    %107 = arith.addf %105, %106 : vector<2x128xf32>
    %108 = vector.extract_strided_slice %102 {offsets = [0, 0], sizes = [2, 32], strides = [1, 1]} : vector<2x128xf32> to vector<2x32xf32>
    %109 = arith.negf %108 : vector<2x32xf32>
    %110 = math.exp %109 : vector<2x32xf32>
    %cst_28 = arith.constant 1.000000e+00 : f32
    %111 = vector.broadcast %cst_28 : f32 to vector<2x32xf32>
    %112 = arith.addf %111, %110 : vector<2x32xf32>
    %113 = arith.divf %111, %112 : vector<2x32xf32>
    %114 = vector.extract_strided_slice %102 {offsets = [0, 32], sizes = [2, 32], strides = [1, 1]} : vector<2x128xf32> to vector<2x32xf32>
    %115 = arith.negf %114 : vector<2x32xf32>
    %116 = math.exp %115 : vector<2x32xf32>
    %cst_29 = arith.constant 1.000000e+00 : f32
    %117 = vector.broadcast %cst_29 : f32 to vector<2x32xf32>
    %118 = arith.addf %117, %116 : vector<2x32xf32>
    %119 = arith.divf %117, %118 : vector<2x32xf32>
    %120 = vector.extract_strided_slice %102 {offsets = [0, 64], sizes = [2, 32], strides = [1, 1]} : vector<2x128xf32> to vector<2x32xf32>
    %121 = math.tanh %120 : vector<2x32xf32>
    %122 = vector.extract_strided_slice %102 {offsets = [0, 96], sizes = [2, 32], strides = [1, 1]} : vector<2x128xf32> to vector<2x32xf32>
    %123 = arith.negf %122 : vector<2x32xf32>
    %124 = math.exp %123 : vector<2x32xf32>
    %cst_30 = arith.constant 1.000000e+00 : f32
    %125 = vector.broadcast %cst_30 : f32 to vector<2x32xf32>
    %126 = arith.addf %125, %124 : vector<2x32xf32>
    %127 = arith.divf %125, %126 : vector<2x32xf32>
    %128 = arith.mulf %119, %90 : vector<2x32xf32>
    %129 = arith.mulf %113, %121 : vector<2x32xf32>
    %130 = arith.addf %128, %129 : vector<2x32xf32>
    %131 = math.tanh %130 : vector<2x32xf32>
    %132 = arith.mulf %127, %131 : vector<2x32xf32>
    %133 = vector.extract_strided_slice %107 {offsets = [0, 0], sizes = [2, 32], strides = [1, 1]} : vector<2x128xf32> to vector<2x32xf32>
    %134 = arith.negf %133 : vector<2x32xf32>
    %135 = math.exp %134 : vector<2x32xf32>
    %cst_31 = arith.constant 1.000000e+00 : f32
    %136 = vector.broadcast %cst_31 : f32 to vector<2x32xf32>
    %137 = arith.addf %136, %135 : vector<2x32xf32>
    %138 = arith.divf %136, %137 : vector<2x32xf32>
    %139 = vector.extract_strided_slice %107 {offsets = [0, 32], sizes = [2, 32], strides = [1, 1]} : vector<2x128xf32> to vector<2x32xf32>
    %140 = arith.negf %139 : vector<2x32xf32>
    %141 = math.exp %140 : vector<2x32xf32>
    %cst_32 = arith.constant 1.000000e+00 : f32
    %142 = vector.broadcast %cst_32 : f32 to vector<2x32xf32>
    %143 = arith.addf %142, %141 : vector<2x32xf32>
    %144 = arith.divf %142, %143 : vector<2x32xf32>
    %145 = vector.extract_strided_slice %107 {offsets = [0, 64], sizes = [2, 32], strides = [1, 1]} : vector<2x128xf32> to vector<2x32xf32>
    %146 = math.tanh %145 : vector<2x32xf32>
    %147 = vector.extract_strided_slice %107 {offsets = [0, 96], sizes = [2, 32], strides = [1, 1]} : vector<2x128xf32> to vector<2x32xf32>
    %148 = arith.negf %147 : vector<2x32xf32>
    %149 = math.exp %148 : vector<2x32xf32>
    %cst_33 = arith.constant 1.000000e+00 : f32
    %150 = vector.broadcast %cst_33 : f32 to vector<2x32xf32>
    %151 = arith.addf %150, %149 : vector<2x32xf32>
    %152 = arith.divf %150, %151 : vector<2x32xf32>
    %153 = arith.mulf %144, %96 : vector<2x32xf32>
    %154 = arith.mulf %138, %146 : vector<2x32xf32>
    %155 = arith.addf %153, %154 : vector<2x32xf32>
    %156 = math.tanh %155 : vector<2x32xf32>
    %157 = arith.mulf %152, %156 : vector<2x32xf32>
    %158 = vector.broadcast %c1_i32 : i32 to vector<2x1xi32>
    %159 = arith.cmpi slt, %158, %0 : vector<2x1xi32>
    %160 = vector.broadcast %97 : i32 to vector<2x1xi32>
    %161 = arith.cmpi slt, %160, %0 : vector<2x1xi32>
    %cst_34 = arith.constant 0.000000e+00 : f32
    %162 = vector.shape_cast %159 : vector<2x1xi1> to vector<2x1xi1>
    %163 = vector.broadcast %162 : vector<2x1xi1> to vector<2x32xi1>
    %164 = vector.broadcast %cst_34 : f32 to vector<2x32xf32>
    %165 = arith.select %163, %132, %164 : vector<2x32xi1>, vector<2x32xf32>
    %166 = arith.index_cast %c1_i32 : i32 to index
    %c0_35 = arith.constant 0 : index
    %c0_36 = arith.constant 0 : index
    %167 = vector.load %arg10[%166, %c0_35, %c0_36] : memref<8x2x64xf32, #tpu.memory_space<vmem>>, vector<1x2x32xf32>
    %168 = vector.shape_cast %167 : vector<1x2x32xf32> to vector<2x32xf32>
    %169 = vector.shape_cast %165 : vector<2x32xf32> to vector<1x2x32xf32>
    tpu.vector_store %arg10[%166, %c0_35, %c0_36], %169 {strides = array<i32>} : memref<8x2x64xf32, #tpu.memory_space<vmem>>, vector<1x2x32xf32>,
    %cst_37 = arith.constant 0.000000e+00 : f32
    %170 = vector.shape_cast %161 : vector<2x1xi1> to vector<2x1xi1>
    %171 = vector.broadcast %170 : vector<2x1xi1> to vector<2x32xi1>
    %172 = vector.broadcast %cst_37 : f32 to vector<2x32xf32>
    %173 = arith.select %171, %157, %172 : vector<2x32xi1>, vector<2x32xf32>
    %174 = arith.index_cast %97 : i32 to index
    %c0_38 = arith.constant 0 : index
    %c32_39 = arith.constant 32 : index
    %175 = vector.load %arg10[%174, %c0_38, %c32_39] : memref<8x2x64xf32, #tpu.memory_space<vmem>>, vector<1x2x32xf32>
    %176 = vector.shape_cast %175 : vector<1x2x32xf32> to vector<2x32xf32>
    %177 = vector.shape_cast %173 : vector<2x32xf32> to vector<1x2x32xf32>
    tpu.vector_store %arg10[%174, %c0_38, %c32_39], %177 {strides = array<i32>} : memref<8x2x64xf32, #tpu.memory_space<vmem>>, vector<1x2x32xf32>,
    %178 = vector.shape_cast %159 : vector<2x1xi1> to vector<2x1xi1>
    %179 = vector.broadcast %178 : vector<2x1xi1> to vector<2x32xi1>
    %180 = arith.select %179, %132, %87 : vector<2x32xi1>, vector<2x32xf32>
    %181 = vector.shape_cast %159 : vector<2x1xi1> to vector<2x1xi1>
    %182 = vector.broadcast %181 : vector<2x1xi1> to vector<2x32xi1>
    %183 = arith.select %182, %130, %90 : vector<2x32xi1>, vector<2x32xf32>
    %184 = vector.shape_cast %161 : vector<2x1xi1> to vector<2x1xi1>
    %185 = vector.broadcast %184 : vector<2x1xi1> to vector<2x32xi1>
    %186 = arith.select %185, %157, %93 : vector<2x32xi1>, vector<2x32xf32>
    %187 = vector.shape_cast %161 : vector<2x1xi1> to vector<2x1xi1>
    %188 = vector.broadcast %187 : vector<2x1xi1> to vector<2x32xi1>
    %189 = arith.select %188, %155, %96 : vector<2x32xi1>, vector<2x32xf32>
    %c2_i32 = arith.constant 2 : i32
    %c7_i32_40 = arith.constant 7 : i32
    %190 = arith.subi %c7_i32_40, %c2_i32 : i32
    %191 = arith.index_cast %c2_i32 : i32 to index
    %c0_41 = arith.constant 0 : index
    %c0_42 = arith.constant 0 : index
    %192 = vector.load %arg0[%191, %c0_41, %c0_42] : memref<8x2x256xf32, #tpu.memory_space<vmem>>, vector<1x2x128xf32>
    %193 = vector.shape_cast %192 : vector<1x2x128xf32> to vector<2x128xf32>
    %cst_43 = arith.constant dense<0.000000e+00> : vector<2x128xf32>
    %194 = tpu.matmul %180, %1, %cst_43 {dimension_numbers = #tpu.dot_dimension_numbers<[1], [0], [0], [1], [0, 0, 1, 1], [], []>} : vector<2x32xf32>, vector<32x128xf32>, vector<2x128xf32> -> vector<2x128xf32>
    %195 = arith.addf %193, %194 : vector<2x128xf32>
    %196 = arith.index_cast %190 : i32 to index
    %c0_44 = arith.constant 0 : index
    %c128_45 = arith.constant 128 : index
    %197 = vector.load %arg0[%196, %c0_44, %c128_45] : memref<8x2x256xf32, #tpu.memory_space<vmem>>, vector<1x2x128xf32>
    %198 = vector.shape_cast %197 : vector<1x2x128xf32> to vector<2x128xf32>
    %cst_46 = arith.constant dense<0.000000e+00> : vector<2x128xf32>
    %199 = tpu.matmul %186, %2, %cst_46 {dimension_numbers = #tpu.dot_dimension_numbers<[1], [0], [0], [1], [0, 0, 1, 1], [], []>} : vector<2x32xf32>, vector<32x128xf32>, vector<2x128xf32> -> vector<2x128xf32>
    %200 = arith.addf %198, %199 : vector<2x128xf32>
    %201 = vector.extract_strided_slice %195 {offsets = [0, 0], sizes = [2, 32], strides = [1, 1]} : vector<2x128xf32> to vector<2x32xf32>
    %202 = arith.negf %201 : vector<2x32xf32>
    %203 = math.exp %202 : vector<2x32xf32>
    %cst_47 = arith.constant 1.000000e+00 : f32
    %204 = vector.broadcast %cst_47 : f32 to vector<2x32xf32>
    %205 = arith.addf %204, %203 : vector<2x32xf32>
    %206 = arith.divf %204, %205 : vector<2x32xf32>
    %207 = vector.extract_strided_slice %195 {offsets = [0, 32], sizes = [2, 32], strides = [1, 1]} : vector<2x128xf32> to vector<2x32xf32>
    %208 = arith.negf %207 : vector<2x32xf32>
    %209 = math.exp %208 : vector<2x32xf32>
    %cst_48 = arith.constant 1.000000e+00 : f32
    %210 = vector.broadcast %cst_48 : f32 to vector<2x32xf32>
    %211 = arith.addf %210, %209 : vector<2x32xf32>
    %212 = arith.divf %210, %211 : vector<2x32xf32>
    %213 = vector.extract_strided_slice %195 {offsets = [0, 64], sizes = [2, 32], strides = [1, 1]} : vector<2x128xf32> to vector<2x32xf32>
    %214 = math.tanh %213 : vector<2x32xf32>
    %215 = vector.extract_strided_slice %195 {offsets = [0, 96], sizes = [2, 32], strides = [1, 1]} : vector<2x128xf32> to vector<2x32xf32>
    %216 = arith.negf %215 : vector<2x32xf32>
    %217 = math.exp %216 : vector<2x32xf32>
    %cst_49 = arith.constant 1.000000e+00 : f32
    %218 = vector.broadcast %cst_49 : f32 to vector<2x32xf32>
    %219 = arith.addf %218, %217 : vector<2x32xf32>
    %220 = arith.divf %218, %219 : vector<2x32xf32>
    %221 = arith.mulf %212, %183 : vector<2x32xf32>
    %222 = arith.mulf %206, %214 : vector<2x32xf32>
    %223 = arith.addf %221, %222 : vector<2x32xf32>
    %224 = math.tanh %223 : vector<2x32xf32>
    %225 = arith.mulf %220, %224 : vector<2x32xf32>
    %226 = vector.extract_strided_slice %200 {offsets = [0, 0], sizes = [2, 32], strides = [1, 1]} : vector<2x128xf32> to vector<2x32xf32>
    %227 = arith.negf %226 : vector<2x32xf32>
    %228 = math.exp %227 : vector<2x32xf32>
    %cst_50 = arith.constant 1.000000e+00 : f32
    %229 = vector.broadcast %cst_50 : f32 to vector<2x32xf32>
    %230 = arith.addf %229, %228 : vector<2x32xf32>
    %231 = arith.divf %229, %230 : vector<2x32xf32>
    %232 = vector.extract_strided_slice %200 {offsets = [0, 32], sizes = [2, 32], strides = [1, 1]} : vector<2x128xf32> to vector<2x32xf32>
    %233 = arith.negf %232 : vector<2x32xf32>
    %234 = math.exp %233 : vector<2x32xf32>
    %cst_51 = arith.constant 1.000000e+00 : f32
    %235 = vector.broadcast %cst_51 : f32 to vector<2x32xf32>
    %236 = arith.addf %235, %234 : vector<2x32xf32>
    %237 = arith.divf %235, %236 : vector<2x32xf32>
    %238 = vector.extract_strided_slice %200 {offsets = [0, 64], sizes = [2, 32], strides = [1, 1]} : vector<2x128xf32> to vector<2x32xf32>
    %239 = math.tanh %238 : vector<2x32xf32>
    %240 = vector.extract_strided_slice %200 {offsets = [0, 96], sizes = [2, 32], strides = [1, 1]} : vector<2x128xf32> to vector<2x32xf32>
    %241 = arith.negf %240 : vector<2x32xf32>
    %242 = math.exp %241 : vector<2x32xf32>
    %cst_52 = arith.constant 1.000000e+00 : f32
    %243 = vector.broadcast %cst_52 : f32 to vector<2x32xf32>
    %244 = arith.addf %243, %242 : vector<2x32xf32>
    %245 = arith.divf %243, %244 : vector<2x32xf32>
    %246 = arith.mulf %237, %189 : vector<2x32xf32>
    %247 = arith.mulf %231, %239 : vector<2x32xf32>
    %248 = arith.addf %246, %247 : vector<2x32xf32>
    %249 = math.tanh %248 : vector<2x32xf32>
    %250 = arith.mulf %245, %249 : vector<2x32xf32>
    %251 = vector.broadcast %c2_i32 : i32 to vector<2x1xi32>
    %252 = arith.cmpi slt, %251, %0 : vector<2x1xi32>
    %253 = vector.broadcast %190 : i32 to vector<2x1xi32>
    %254 = arith.cmpi slt, %253, %0 : vector<2x1xi32>
    %cst_53 = arith.constant 0.000000e+00 : f32
    %255 = vector.shape_cast %252 : vector<2x1xi1> to vector<2x1xi1>
    %256 = vector.broadcast %255 : vector<2x1xi1> to vector<2x32xi1>
    %257 = vector.broadcast %cst_53 : f32 to vector<2x32xf32>
    %258 = arith.select %256, %225, %257 : vector<2x32xi1>, vector<2x32xf32>
    %259 = arith.index_cast %c2_i32 : i32 to index
    %c0_54 = arith.constant 0 : index
    %c0_55 = arith.constant 0 : index
    %260 = vector.load %arg10[%259, %c0_54, %c0_55] : memref<8x2x64xf32, #tpu.memory_space<vmem>>, vector<1x2x32xf32>
    %261 = vector.shape_cast %260 : vector<1x2x32xf32> to vector<2x32xf32>
    %262 = vector.shape_cast %258 : vector<2x32xf32> to vector<1x2x32xf32>
    tpu.vector_store %arg10[%259, %c0_54, %c0_55], %262 {strides = array<i32>} : memref<8x2x64xf32, #tpu.memory_space<vmem>>, vector<1x2x32xf32>,
    %cst_56 = arith.constant 0.000000e+00 : f32
    %263 = vector.shape_cast %254 : vector<2x1xi1> to vector<2x1xi1>
    %264 = vector.broadcast %263 : vector<2x1xi1> to vector<2x32xi1>
    %265 = vector.broadcast %cst_56 : f32 to vector<2x32xf32>
    %266 = arith.select %264, %250, %265 : vector<2x32xi1>, vector<2x32xf32>
    %267 = arith.index_cast %190 : i32 to index
    %c0_57 = arith.constant 0 : index
    %c32_58 = arith.constant 32 : index
    %268 = vector.load %arg10[%267, %c0_57, %c32_58] : memref<8x2x64xf32, #tpu.memory_space<vmem>>, vector<1x2x32xf32>
    %269 = vector.shape_cast %268 : vector<1x2x32xf32> to vector<2x32xf32>
    %270 = vector.shape_cast %266 : vector<2x32xf32> to vector<1x2x32xf32>
    tpu.vector_store %arg10[%267, %c0_57, %c32_58], %270 {strides = array<i32>} : memref<8x2x64xf32, #tpu.memory_space<vmem>>, vector<1x2x32xf32>,
    %271 = vector.shape_cast %252 : vector<2x1xi1> to vector<2x1xi1>
    %272 = vector.broadcast %271 : vector<2x1xi1> to vector<2x32xi1>
    %273 = arith.select %272, %225, %180 : vector<2x32xi1>, vector<2x32xf32>
    %274 = vector.shape_cast %252 : vector<2x1xi1> to vector<2x1xi1>
    %275 = vector.broadcast %274 : vector<2x1xi1> to vector<2x32xi1>
    %276 = arith.select %275, %223, %183 : vector<2x32xi1>, vector<2x32xf32>
    %277 = vector.shape_cast %254 : vector<2x1xi1> to vector<2x1xi1>
    %278 = vector.broadcast %277 : vector<2x1xi1> to vector<2x32xi1>
    %279 = arith.select %278, %250, %186 : vector<2x32xi1>, vector<2x32xf32>
    %280 = vector.shape_cast %254 : vector<2x1xi1> to vector<2x1xi1>
    %281 = vector.broadcast %280 : vector<2x1xi1> to vector<2x32xi1>
    %282 = arith.select %281, %248, %189 : vector<2x32xi1>, vector<2x32xf32>
    %c3_i32 = arith.constant 3 : i32
    %c7_i32_59 = arith.constant 7 : i32
    %283 = arith.subi %c7_i32_59, %c3_i32 : i32
    %284 = arith.index_cast %c3_i32 : i32 to index
    %c0_60 = arith.constant 0 : index
    %c0_61 = arith.constant 0 : index
    %285 = vector.load %arg0[%284, %c0_60, %c0_61] : memref<8x2x256xf32, #tpu.memory_space<vmem>>, vector<1x2x128xf32>
    %286 = vector.shape_cast %285 : vector<1x2x128xf32> to vector<2x128xf32>
    %cst_62 = arith.constant dense<0.000000e+00> : vector<2x128xf32>
    %287 = tpu.matmul %273, %1, %cst_62 {dimension_numbers = #tpu.dot_dimension_numbers<[1], [0], [0], [1], [0, 0, 1, 1], [], []>} : vector<2x32xf32>, vector<32x128xf32>, vector<2x128xf32> -> vector<2x128xf32>
    %288 = arith.addf %286, %287 : vector<2x128xf32>
    %289 = arith.index_cast %283 : i32 to index
    %c0_63 = arith.constant 0 : index
    %c128_64 = arith.constant 128 : index
    %290 = vector.load %arg0[%289, %c0_63, %c128_64] : memref<8x2x256xf32, #tpu.memory_space<vmem>>, vector<1x2x128xf32>
    %291 = vector.shape_cast %290 : vector<1x2x128xf32> to vector<2x128xf32>
    %cst_65 = arith.constant dense<0.000000e+00> : vector<2x128xf32>
    %292 = tpu.matmul %279, %2, %cst_65 {dimension_numbers = #tpu.dot_dimension_numbers<[1], [0], [0], [1], [0, 0, 1, 1], [], []>} : vector<2x32xf32>, vector<32x128xf32>, vector<2x128xf32> -> vector<2x128xf32>
    %293 = arith.addf %291, %292 : vector<2x128xf32>
    %294 = vector.extract_strided_slice %288 {offsets = [0, 0], sizes = [2, 32], strides = [1, 1]} : vector<2x128xf32> to vector<2x32xf32>
    %295 = arith.negf %294 : vector<2x32xf32>
    %296 = math.exp %295 : vector<2x32xf32>
    %cst_66 = arith.constant 1.000000e+00 : f32
    %297 = vector.broadcast %cst_66 : f32 to vector<2x32xf32>
    %298 = arith.addf %297, %296 : vector<2x32xf32>
    %299 = arith.divf %297, %298 : vector<2x32xf32>
    %300 = vector.extract_strided_slice %288 {offsets = [0, 32], sizes = [2, 32], strides = [1, 1]} : vector<2x128xf32> to vector<2x32xf32>
    %301 = arith.negf %300 : vector<2x32xf32>
    %302 = math.exp %301 : vector<2x32xf32>
    %cst_67 = arith.constant 1.000000e+00 : f32
    %303 = vector.broadcast %cst_67 : f32 to vector<2x32xf32>
    %304 = arith.addf %303, %302 : vector<2x32xf32>
    %305 = arith.divf %303, %304 : vector<2x32xf32>
    %306 = vector.extract_strided_slice %288 {offsets = [0, 64], sizes = [2, 32], strides = [1, 1]} : vector<2x128xf32> to vector<2x32xf32>
    %307 = math.tanh %306 : vector<2x32xf32>
    %308 = vector.extract_strided_slice %288 {offsets = [0, 96], sizes = [2, 32], strides = [1, 1]} : vector<2x128xf32> to vector<2x32xf32>
    %309 = arith.negf %308 : vector<2x32xf32>
    %310 = math.exp %309 : vector<2x32xf32>
    %cst_68 = arith.constant 1.000000e+00 : f32
    %311 = vector.broadcast %cst_68 : f32 to vector<2x32xf32>
    %312 = arith.addf %311, %310 : vector<2x32xf32>
    %313 = arith.divf %311, %312 : vector<2x32xf32>
    %314 = arith.mulf %305, %276 : vector<2x32xf32>
    %315 = arith.mulf %299, %307 : vector<2x32xf32>
    %316 = arith.addf %314, %315 : vector<2x32xf32>
    %317 = math.tanh %316 : vector<2x32xf32>
    %318 = arith.mulf %313, %317 : vector<2x32xf32>
    %319 = vector.extract_strided_slice %293 {offsets = [0, 0], sizes = [2, 32], strides = [1, 1]} : vector<2x128xf32> to vector<2x32xf32>
    %320 = arith.negf %319 : vector<2x32xf32>
    %321 = math.exp %320 : vector<2x32xf32>
    %cst_69 = arith.constant 1.000000e+00 : f32
    %322 = vector.broadcast %cst_69 : f32 to vector<2x32xf32>
    %323 = arith.addf %322, %321 : vector<2x32xf32>
    %324 = arith.divf %322, %323 : vector<2x32xf32>
    %325 = vector.extract_strided_slice %293 {offsets = [0, 32], sizes = [2, 32], strides = [1, 1]} : vector<2x128xf32> to vector<2x32xf32>
    %326 = arith.negf %325 : vector<2x32xf32>
    %327 = math.exp %326 : vector<2x32xf32>
    %cst_70 = arith.constant 1.000000e+00 : f32
    %328 = vector.broadcast %cst_70 : f32 to vector<2x32xf32>
    %329 = arith.addf %328, %327 : vector<2x32xf32>
    %330 = arith.divf %328, %329 : vector<2x32xf32>
    %331 = vector.extract_strided_slice %293 {offsets = [0, 64], sizes = [2, 32], strides = [1, 1]} : vector<2x128xf32> to vector<2x32xf32>
    %332 = math.tanh %331 : vector<2x32xf32>
    %333 = vector.extract_strided_slice %293 {offsets = [0, 96], sizes = [2, 32], strides = [1, 1]} : vector<2x128xf32> to vector<2x32xf32>
    %334 = arith.negf %333 : vector<2x32xf32>
    %335 = math.exp %334 : vector<2x32xf32>
    %cst_71 = arith.constant 1.000000e+00 : f32
    %336 = vector.broadcast %cst_71 : f32 to vector<2x32xf32>
    %337 = arith.addf %336, %335 : vector<2x32xf32>
    %338 = arith.divf %336, %337 : vector<2x32xf32>
    %339 = arith.mulf %330, %282 : vector<2x32xf32>
    %340 = arith.mulf %324, %332 : vector<2x32xf32>
    %341 = arith.addf %339, %340 : vector<2x32xf32>
    %342 = math.tanh %341 : vector<2x32xf32>
    %343 = arith.mulf %338, %342 : vector<2x32xf32>
    %344 = vector.broadcast %c3_i32 : i32 to vector<2x1xi32>
    %345 = arith.cmpi slt, %344, %0 : vector<2x1xi32>
    %346 = vector.broadcast %283 : i32 to vector<2x1xi32>
    %347 = arith.cmpi slt, %346, %0 : vector<2x1xi32>
    %cst_72 = arith.constant 0.000000e+00 : f32
    %348 = vector.shape_cast %345 : vector<2x1xi1> to vector<2x1xi1>
    %349 = vector.broadcast %348 : vector<2x1xi1> to vector<2x32xi1>
    %350 = vector.broadcast %cst_72 : f32 to vector<2x32xf32>
    %351 = arith.select %349, %318, %350 : vector<2x32xi1>, vector<2x32xf32>
    %352 = arith.index_cast %c3_i32 : i32 to index
    %c0_73 = arith.constant 0 : index
    %c0_74 = arith.constant 0 : index
    %353 = vector.load %arg10[%352, %c0_73, %c0_74] : memref<8x2x64xf32, #tpu.memory_space<vmem>>, vector<1x2x32xf32>
    %354 = vector.shape_cast %353 : vector<1x2x32xf32> to vector<2x32xf32>
    %355 = vector.shape_cast %351 : vector<2x32xf32> to vector<1x2x32xf32>
    tpu.vector_store %arg10[%352, %c0_73, %c0_74], %355 {strides = array<i32>} : memref<8x2x64xf32, #tpu.memory_space<vmem>>, vector<1x2x32xf32>,
    %cst_75 = arith.constant 0.000000e+00 : f32
    %356 = vector.shape_cast %347 : vector<2x1xi1> to vector<2x1xi1>
    %357 = vector.broadcast %356 : vector<2x1xi1> to vector<2x32xi1>
    %358 = vector.broadcast %cst_75 : f32 to vector<2x32xf32>
    %359 = arith.select %357, %343, %358 : vector<2x32xi1>, vector<2x32xf32>
    %360 = arith.index_cast %283 : i32 to index
    %c0_76 = arith.constant 0 : index
    %c32_77 = arith.constant 32 : index
    %361 = vector.load %arg10[%360, %c0_76, %c32_77] : memref<8x2x64xf32, #tpu.memory_space<vmem>>, vector<1x2x32xf32>
    %362 = vector.shape_cast %361 : vector<1x2x32xf32> to vector<2x32xf32>
    %363 = vector.shape_cast %359 : vector<2x32xf32> to vector<1x2x32xf32>
    tpu.vector_store %arg10[%360, %c0_76, %c32_77], %363 {strides = array<i32>} : memref<8x2x64xf32, #tpu.memory_space<vmem>>, vector<1x2x32xf32>,
    %364 = vector.shape_cast %345 : vector<2x1xi1> to vector<2x1xi1>
    %365 = vector.broadcast %364 : vector<2x1xi1> to vector<2x32xi1>
    %366 = arith.select %365, %318, %273 : vector<2x32xi1>, vector<2x32xf32>
    %367 = vector.shape_cast %345 : vector<2x1xi1> to vector<2x1xi1>
    %368 = vector.broadcast %367 : vector<2x1xi1> to vector<2x32xi1>
    %369 = arith.select %368, %316, %276 : vector<2x32xi1>, vector<2x32xf32>
    %370 = vector.shape_cast %347 : vector<2x1xi1> to vector<2x1xi1>
    %371 = vector.broadcast %370 : vector<2x1xi1> to vector<2x32xi1>
    %372 = arith.select %371, %343, %279 : vector<2x32xi1>, vector<2x32xf32>
    %373 = vector.shape_cast %347 : vector<2x1xi1> to vector<2x1xi1>
    %374 = vector.broadcast %373 : vector<2x1xi1> to vector<2x32xi1>
    %375 = arith.select %374, %341, %282 : vector<2x32xi1>, vector<2x32xf32>
    %c4_i32 = arith.constant 4 : i32
    %c7_i32_78 = arith.constant 7 : i32
    %376 = arith.subi %c7_i32_78, %c4_i32 : i32
    %377 = arith.index_cast %c4_i32 : i32 to index
    %c0_79 = arith.constant 0 : index
    %c0_80 = arith.constant 0 : index
    %378 = vector.load %arg0[%377, %c0_79, %c0_80] : memref<8x2x256xf32, #tpu.memory_space<vmem>>, vector<1x2x128xf32>
    %379 = vector.shape_cast %378 : vector<1x2x128xf32> to vector<2x128xf32>
    %cst_81 = arith.constant dense<0.000000e+00> : vector<2x128xf32>
    %380 = tpu.matmul %366, %1, %cst_81 {dimension_numbers = #tpu.dot_dimension_numbers<[1], [0], [0], [1], [0, 0, 1, 1], [], []>} : vector<2x32xf32>, vector<32x128xf32>, vector<2x128xf32> -> vector<2x128xf32>
    %381 = arith.addf %379, %380 : vector<2x128xf32>
    %382 = arith.index_cast %376 : i32 to index
    %c0_82 = arith.constant 0 : index
    %c128_83 = arith.constant 128 : index
    %383 = vector.load %arg0[%382, %c0_82, %c128_83] : memref<8x2x256xf32, #tpu.memory_space<vmem>>, vector<1x2x128xf32>
    %384 = vector.shape_cast %383 : vector<1x2x128xf32> to vector<2x128xf32>
    %cst_84 = arith.constant dense<0.000000e+00> : vector<2x128xf32>
    %385 = tpu.matmul %372, %2, %cst_84 {dimension_numbers = #tpu.dot_dimension_numbers<[1], [0], [0], [1], [0, 0, 1, 1], [], []>} : vector<2x32xf32>, vector<32x128xf32>, vector<2x128xf32> -> vector<2x128xf32>
    %386 = arith.addf %384, %385 : vector<2x128xf32>
    %387 = vector.extract_strided_slice %381 {offsets = [0, 0], sizes = [2, 32], strides = [1, 1]} : vector<2x128xf32> to vector<2x32xf32>
    %388 = arith.negf %387 : vector<2x32xf32>
    %389 = math.exp %388 : vector<2x32xf32>
    %cst_85 = arith.constant 1.000000e+00 : f32
    %390 = vector.broadcast %cst_85 : f32 to vector<2x32xf32>
    %391 = arith.addf %390, %389 : vector<2x32xf32>
    %392 = arith.divf %390, %391 : vector<2x32xf32>
    %393 = vector.extract_strided_slice %381 {offsets = [0, 32], sizes = [2, 32], strides = [1, 1]} : vector<2x128xf32> to vector<2x32xf32>
    %394 = arith.negf %393 : vector<2x32xf32>
    %395 = math.exp %394 : vector<2x32xf32>
    %cst_86 = arith.constant 1.000000e+00 : f32
    %396 = vector.broadcast %cst_86 : f32 to vector<2x32xf32>
    %397 = arith.addf %396, %395 : vector<2x32xf32>
    %398 = arith.divf %396, %397 : vector<2x32xf32>
    %399 = vector.extract_strided_slice %381 {offsets = [0, 64], sizes = [2, 32], strides = [1, 1]} : vector<2x128xf32> to vector<2x32xf32>
    %400 = math.tanh %399 : vector<2x32xf32>
    %401 = vector.extract_strided_slice %381 {offsets = [0, 96], sizes = [2, 32], strides = [1, 1]} : vector<2x128xf32> to vector<2x32xf32>
    %402 = arith.negf %401 : vector<2x32xf32>
    %403 = math.exp %402 : vector<2x32xf32>
    %cst_87 = arith.constant 1.000000e+00 : f32
    %404 = vector.broadcast %cst_87 : f32 to vector<2x32xf32>
    %405 = arith.addf %404, %403 : vector<2x32xf32>
    %406 = arith.divf %404, %405 : vector<2x32xf32>
    %407 = arith.mulf %398, %369 : vector<2x32xf32>
    %408 = arith.mulf %392, %400 : vector<2x32xf32>
    %409 = arith.addf %407, %408 : vector<2x32xf32>
    %410 = math.tanh %409 : vector<2x32xf32>
    %411 = arith.mulf %406, %410 : vector<2x32xf32>
    %412 = vector.extract_strided_slice %386 {offsets = [0, 0], sizes = [2, 32], strides = [1, 1]} : vector<2x128xf32> to vector<2x32xf32>
    %413 = arith.negf %412 : vector<2x32xf32>
    %414 = math.exp %413 : vector<2x32xf32>
    %cst_88 = arith.constant 1.000000e+00 : f32
    %415 = vector.broadcast %cst_88 : f32 to vector<2x32xf32>
    %416 = arith.addf %415, %414 : vector<2x32xf32>
    %417 = arith.divf %415, %416 : vector<2x32xf32>
    %418 = vector.extract_strided_slice %386 {offsets = [0, 32], sizes = [2, 32], strides = [1, 1]} : vector<2x128xf32> to vector<2x32xf32>
    %419 = arith.negf %418 : vector<2x32xf32>
    %420 = math.exp %419 : vector<2x32xf32>
    %cst_89 = arith.constant 1.000000e+00 : f32
    %421 = vector.broadcast %cst_89 : f32 to vector<2x32xf32>
    %422 = arith.addf %421, %420 : vector<2x32xf32>
    %423 = arith.divf %421, %422 : vector<2x32xf32>
    %424 = vector.extract_strided_slice %386 {offsets = [0, 64], sizes = [2, 32], strides = [1, 1]} : vector<2x128xf32> to vector<2x32xf32>
    %425 = math.tanh %424 : vector<2x32xf32>
    %426 = vector.extract_strided_slice %386 {offsets = [0, 96], sizes = [2, 32], strides = [1, 1]} : vector<2x128xf32> to vector<2x32xf32>
    %427 = arith.negf %426 : vector<2x32xf32>
    %428 = math.exp %427 : vector<2x32xf32>
    %cst_90 = arith.constant 1.000000e+00 : f32
    %429 = vector.broadcast %cst_90 : f32 to vector<2x32xf32>
    %430 = arith.addf %429, %428 : vector<2x32xf32>
    %431 = arith.divf %429, %430 : vector<2x32xf32>
    %432 = arith.mulf %423, %375 : vector<2x32xf32>
    %433 = arith.mulf %417, %425 : vector<2x32xf32>
    %434 = arith.addf %432, %433 : vector<2x32xf32>
    %435 = math.tanh %434 : vector<2x32xf32>
    %436 = arith.mulf %431, %435 : vector<2x32xf32>
    %437 = vector.broadcast %c4_i32 : i32 to vector<2x1xi32>
    %438 = arith.cmpi slt, %437, %0 : vector<2x1xi32>
    %439 = vector.broadcast %376 : i32 to vector<2x1xi32>
    %440 = arith.cmpi slt, %439, %0 : vector<2x1xi32>
    %cst_91 = arith.constant 0.000000e+00 : f32
    %441 = vector.shape_cast %438 : vector<2x1xi1> to vector<2x1xi1>
    %442 = vector.broadcast %441 : vector<2x1xi1> to vector<2x32xi1>
    %443 = vector.broadcast %cst_91 : f32 to vector<2x32xf32>
    %444 = arith.select %442, %411, %443 : vector<2x32xi1>, vector<2x32xf32>
    %445 = arith.index_cast %c4_i32 : i32 to index
    %c0_92 = arith.constant 0 : index
    %c0_93 = arith.constant 0 : index
    %446 = vector.load %arg10[%445, %c0_92, %c0_93] : memref<8x2x64xf32, #tpu.memory_space<vmem>>, vector<1x2x32xf32>
    %447 = vector.shape_cast %446 : vector<1x2x32xf32> to vector<2x32xf32>
    %448 = vector.shape_cast %444 : vector<2x32xf32> to vector<1x2x32xf32>
    tpu.vector_store %arg10[%445, %c0_92, %c0_93], %448 {strides = array<i32>} : memref<8x2x64xf32, #tpu.memory_space<vmem>>, vector<1x2x32xf32>,
    %cst_94 = arith.constant 0.000000e+00 : f32
    %449 = vector.shape_cast %440 : vector<2x1xi1> to vector<2x1xi1>
    %450 = vector.broadcast %449 : vector<2x1xi1> to vector<2x32xi1>
    %451 = vector.broadcast %cst_94 : f32 to vector<2x32xf32>
    %452 = arith.select %450, %436, %451 : vector<2x32xi1>, vector<2x32xf32>
    %453 = arith.index_cast %376 : i32 to index
    %c0_95 = arith.constant 0 : index
    %c32_96 = arith.constant 32 : index
    %454 = vector.load %arg10[%453, %c0_95, %c32_96] : memref<8x2x64xf32, #tpu.memory_space<vmem>>, vector<1x2x32xf32>
    %455 = vector.shape_cast %454 : vector<1x2x32xf32> to vector<2x32xf32>
    %456 = vector.shape_cast %452 : vector<2x32xf32> to vector<1x2x32xf32>
    tpu.vector_store %arg10[%453, %c0_95, %c32_96], %456 {strides = array<i32>} : memref<8x2x64xf32, #tpu.memory_space<vmem>>, vector<1x2x32xf32>,
    %457 = vector.shape_cast %438 : vector<2x1xi1> to vector<2x1xi1>
    %458 = vector.broadcast %457 : vector<2x1xi1> to vector<2x32xi1>
    %459 = arith.select %458, %411, %366 : vector<2x32xi1>, vector<2x32xf32>
    %460 = vector.shape_cast %438 : vector<2x1xi1> to vector<2x1xi1>
    %461 = vector.broadcast %460 : vector<2x1xi1> to vector<2x32xi1>
    %462 = arith.select %461, %409, %369 : vector<2x32xi1>, vector<2x32xf32>
    %463 = vector.shape_cast %440 : vector<2x1xi1> to vector<2x1xi1>
    %464 = vector.broadcast %463 : vector<2x1xi1> to vector<2x32xi1>
    %465 = arith.select %464, %436, %372 : vector<2x32xi1>, vector<2x32xf32>
    %466 = vector.shape_cast %440 : vector<2x1xi1> to vector<2x1xi1>
    %467 = vector.broadcast %466 : vector<2x1xi1> to vector<2x32xi1>
    %468 = arith.select %467, %434, %375 : vector<2x32xi1>, vector<2x32xf32>
    %c5_i32 = arith.constant 5 : i32
    %c7_i32_97 = arith.constant 7 : i32
    %469 = arith.subi %c7_i32_97, %c5_i32 : i32
    %470 = arith.index_cast %c5_i32 : i32 to index
    %c0_98 = arith.constant 0 : index
    %c0_99 = arith.constant 0 : index
    %471 = vector.load %arg0[%470, %c0_98, %c0_99] : memref<8x2x256xf32, #tpu.memory_space<vmem>>, vector<1x2x128xf32>
    %472 = vector.shape_cast %471 : vector<1x2x128xf32> to vector<2x128xf32>
    %cst_100 = arith.constant dense<0.000000e+00> : vector<2x128xf32>
    %473 = tpu.matmul %459, %1, %cst_100 {dimension_numbers = #tpu.dot_dimension_numbers<[1], [0], [0], [1], [0, 0, 1, 1], [], []>} : vector<2x32xf32>, vector<32x128xf32>, vector<2x128xf32> -> vector<2x128xf32>
    %474 = arith.addf %472, %473 : vector<2x128xf32>
    %475 = arith.index_cast %469 : i32 to index
    %c0_101 = arith.constant 0 : index
    %c128_102 = arith.constant 128 : index
    %476 = vector.load %arg0[%475, %c0_101, %c128_102] : memref<8x2x256xf32, #tpu.memory_space<vmem>>, vector<1x2x128xf32>
    %477 = vector.shape_cast %476 : vector<1x2x128xf32> to vector<2x128xf32>
    %cst_103 = arith.constant dense<0.000000e+00> : vector<2x128xf32>
    %478 = tpu.matmul %465, %2, %cst_103 {dimension_numbers = #tpu.dot_dimension_numbers<[1], [0], [0], [1], [0, 0, 1, 1], [], []>} : vector<2x32xf32>, vector<32x128xf32>, vector<2x128xf32> -> vector<2x128xf32>
    %479 = arith.addf %477, %478 : vector<2x128xf32>
    %480 = vector.extract_strided_slice %474 {offsets = [0, 0], sizes = [2, 32], strides = [1, 1]} : vector<2x128xf32> to vector<2x32xf32>
    %481 = arith.negf %480 : vector<2x32xf32>
    %482 = math.exp %481 : vector<2x32xf32>
    %cst_104 = arith.constant 1.000000e+00 : f32
    %483 = vector.broadcast %cst_104 : f32 to vector<2x32xf32>
    %484 = arith.addf %483, %482 : vector<2x32xf32>
    %485 = arith.divf %483, %484 : vector<2x32xf32>
    %486 = vector.extract_strided_slice %474 {offsets = [0, 32], sizes = [2, 32], strides = [1, 1]} : vector<2x128xf32> to vector<2x32xf32>
    %487 = arith.negf %486 : vector<2x32xf32>
    %488 = math.exp %487 : vector<2x32xf32>
    %cst_105 = arith.constant 1.000000e+00 : f32
    %489 = vector.broadcast %cst_105 : f32 to vector<2x32xf32>
    %490 = arith.addf %489, %488 : vector<2x32xf32>
    %491 = arith.divf %489, %490 : vector<2x32xf32>
    %492 = vector.extract_strided_slice %474 {offsets = [0, 64], sizes = [2, 32], strides = [1, 1]} : vector<2x128xf32> to vector<2x32xf32>
    %493 = math.tanh %492 : vector<2x32xf32>
    %494 = vector.extract_strided_slice %474 {offsets = [0, 96], sizes = [2, 32], strides = [1, 1]} : vector<2x128xf32> to vector<2x32xf32>
    %495 = arith.negf %494 : vector<2x32xf32>
    %496 = math.exp %495 : vector<2x32xf32>
    %cst_106 = arith.constant 1.000000e+00 : f32
    %497 = vector.broadcast %cst_106 : f32 to vector<2x32xf32>
    %498 = arith.addf %497, %496 : vector<2x32xf32>
    %499 = arith.divf %497, %498 : vector<2x32xf32>
    %500 = arith.mulf %491, %462 : vector<2x32xf32>
    %501 = arith.mulf %485, %493 : vector<2x32xf32>
    %502 = arith.addf %500, %501 : vector<2x32xf32>
    %503 = math.tanh %502 : vector<2x32xf32>
    %504 = arith.mulf %499, %503 : vector<2x32xf32>
    %505 = vector.extract_strided_slice %479 {offsets = [0, 0], sizes = [2, 32], strides = [1, 1]} : vector<2x128xf32> to vector<2x32xf32>
    %506 = arith.negf %505 : vector<2x32xf32>
    %507 = math.exp %506 : vector<2x32xf32>
    %cst_107 = arith.constant 1.000000e+00 : f32
    %508 = vector.broadcast %cst_107 : f32 to vector<2x32xf32>
    %509 = arith.addf %508, %507 : vector<2x32xf32>
    %510 = arith.divf %508, %509 : vector<2x32xf32>
    %511 = vector.extract_strided_slice %479 {offsets = [0, 32], sizes = [2, 32], strides = [1, 1]} : vector<2x128xf32> to vector<2x32xf32>
    %512 = arith.negf %511 : vector<2x32xf32>
    %513 = math.exp %512 : vector<2x32xf32>
    %cst_108 = arith.constant 1.000000e+00 : f32
    %514 = vector.broadcast %cst_108 : f32 to vector<2x32xf32>
    %515 = arith.addf %514, %513 : vector<2x32xf32>
    %516 = arith.divf %514, %515 : vector<2x32xf32>
    %517 = vector.extract_strided_slice %479 {offsets = [0, 64], sizes = [2, 32], strides = [1, 1]} : vector<2x128xf32> to vector<2x32xf32>
    %518 = math.tanh %517 : vector<2x32xf32>
    %519 = vector.extract_strided_slice %479 {offsets = [0, 96], sizes = [2, 32], strides = [1, 1]} : vector<2x128xf32> to vector<2x32xf32>
    %520 = arith.negf %519 : vector<2x32xf32>
    %521 = math.exp %520 : vector<2x32xf32>
    %cst_109 = arith.constant 1.000000e+00 : f32
    %522 = vector.broadcast %cst_109 : f32 to vector<2x32xf32>
    %523 = arith.addf %522, %521 : vector<2x32xf32>
    %524 = arith.divf %522, %523 : vector<2x32xf32>
    %525 = arith.mulf %516, %468 : vector<2x32xf32>
    %526 = arith.mulf %510, %518 : vector<2x32xf32>
    %527 = arith.addf %525, %526 : vector<2x32xf32>
    %528 = math.tanh %527 : vector<2x32xf32>
    %529 = arith.mulf %524, %528 : vector<2x32xf32>
    %530 = vector.broadcast %c5_i32 : i32 to vector<2x1xi32>
    %531 = arith.cmpi slt, %530, %0 : vector<2x1xi32>
    %532 = vector.broadcast %469 : i32 to vector<2x1xi32>
    %533 = arith.cmpi slt, %532, %0 : vector<2x1xi32>
    %cst_110 = arith.constant 0.000000e+00 : f32
    %534 = vector.shape_cast %531 : vector<2x1xi1> to vector<2x1xi1>
    %535 = vector.broadcast %534 : vector<2x1xi1> to vector<2x32xi1>
    %536 = vector.broadcast %cst_110 : f32 to vector<2x32xf32>
    %537 = arith.select %535, %504, %536 : vector<2x32xi1>, vector<2x32xf32>
    %538 = arith.index_cast %c5_i32 : i32 to index
    %c0_111 = arith.constant 0 : index
    %c0_112 = arith.constant 0 : index
    %539 = vector.load %arg10[%538, %c0_111, %c0_112] : memref<8x2x64xf32, #tpu.memory_space<vmem>>, vector<1x2x32xf32>
    %540 = vector.shape_cast %539 : vector<1x2x32xf32> to vector<2x32xf32>
    %541 = vector.shape_cast %537 : vector<2x32xf32> to vector<1x2x32xf32>
    tpu.vector_store %arg10[%538, %c0_111, %c0_112], %541 {strides = array<i32>} : memref<8x2x64xf32, #tpu.memory_space<vmem>>, vector<1x2x32xf32>,
    %cst_113 = arith.constant 0.000000e+00 : f32
    %542 = vector.shape_cast %533 : vector<2x1xi1> to vector<2x1xi1>
    %543 = vector.broadcast %542 : vector<2x1xi1> to vector<2x32xi1>
    %544 = vector.broadcast %cst_113 : f32 to vector<2x32xf32>
    %545 = arith.select %543, %529, %544 : vector<2x32xi1>, vector<2x32xf32>
    %546 = arith.index_cast %469 : i32 to index
    %c0_114 = arith.constant 0 : index
    %c32_115 = arith.constant 32 : index
    %547 = vector.load %arg10[%546, %c0_114, %c32_115] : memref<8x2x64xf32, #tpu.memory_space<vmem>>, vector<1x2x32xf32>
    %548 = vector.shape_cast %547 : vector<1x2x32xf32> to vector<2x32xf32>
    %549 = vector.shape_cast %545 : vector<2x32xf32> to vector<1x2x32xf32>
    tpu.vector_store %arg10[%546, %c0_114, %c32_115], %549 {strides = array<i32>} : memref<8x2x64xf32, #tpu.memory_space<vmem>>, vector<1x2x32xf32>,
    %550 = vector.shape_cast %531 : vector<2x1xi1> to vector<2x1xi1>
    %551 = vector.broadcast %550 : vector<2x1xi1> to vector<2x32xi1>
    %552 = arith.select %551, %504, %459 : vector<2x32xi1>, vector<2x32xf32>
    %553 = vector.shape_cast %531 : vector<2x1xi1> to vector<2x1xi1>
    %554 = vector.broadcast %553 : vector<2x1xi1> to vector<2x32xi1>
    %555 = arith.select %554, %502, %462 : vector<2x32xi1>, vector<2x32xf32>
    %556 = vector.shape_cast %533 : vector<2x1xi1> to vector<2x1xi1>
    %557 = vector.broadcast %556 : vector<2x1xi1> to vector<2x32xi1>
    %558 = arith.select %557, %529, %465 : vector<2x32xi1>, vector<2x32xf32>
    %559 = vector.shape_cast %533 : vector<2x1xi1> to vector<2x1xi1>
    %560 = vector.broadcast %559 : vector<2x1xi1> to vector<2x32xi1>
    %561 = arith.select %560, %527, %468 : vector<2x32xi1>, vector<2x32xf32>
    %c6_i32 = arith.constant 6 : i32
    %c7_i32_116 = arith.constant 7 : i32
    %562 = arith.subi %c7_i32_116, %c6_i32 : i32
    %563 = arith.index_cast %c6_i32 : i32 to index
    %c0_117 = arith.constant 0 : index
    %c0_118 = arith.constant 0 : index
    %564 = vector.load %arg0[%563, %c0_117, %c0_118] : memref<8x2x256xf32, #tpu.memory_space<vmem>>, vector<1x2x128xf32>
    %565 = vector.shape_cast %564 : vector<1x2x128xf32> to vector<2x128xf32>
    %cst_119 = arith.constant dense<0.000000e+00> : vector<2x128xf32>
    %566 = tpu.matmul %552, %1, %cst_119 {dimension_numbers = #tpu.dot_dimension_numbers<[1], [0], [0], [1], [0, 0, 1, 1], [], []>} : vector<2x32xf32>, vector<32x128xf32>, vector<2x128xf32> -> vector<2x128xf32>
    %567 = arith.addf %565, %566 : vector<2x128xf32>
    %568 = arith.index_cast %562 : i32 to index
    %c0_120 = arith.constant 0 : index
    %c128_121 = arith.constant 128 : index
    %569 = vector.load %arg0[%568, %c0_120, %c128_121] : memref<8x2x256xf32, #tpu.memory_space<vmem>>, vector<1x2x128xf32>
    %570 = vector.shape_cast %569 : vector<1x2x128xf32> to vector<2x128xf32>
    %cst_122 = arith.constant dense<0.000000e+00> : vector<2x128xf32>
    %571 = tpu.matmul %558, %2, %cst_122 {dimension_numbers = #tpu.dot_dimension_numbers<[1], [0], [0], [1], [0, 0, 1, 1], [], []>} : vector<2x32xf32>, vector<32x128xf32>, vector<2x128xf32> -> vector<2x128xf32>
    %572 = arith.addf %570, %571 : vector<2x128xf32>
    %573 = vector.extract_strided_slice %567 {offsets = [0, 0], sizes = [2, 32], strides = [1, 1]} : vector<2x128xf32> to vector<2x32xf32>
    %574 = arith.negf %573 : vector<2x32xf32>
    %575 = math.exp %574 : vector<2x32xf32>
    %cst_123 = arith.constant 1.000000e+00 : f32
    %576 = vector.broadcast %cst_123 : f32 to vector<2x32xf32>
    %577 = arith.addf %576, %575 : vector<2x32xf32>
    %578 = arith.divf %576, %577 : vector<2x32xf32>
    %579 = vector.extract_strided_slice %567 {offsets = [0, 32], sizes = [2, 32], strides = [1, 1]} : vector<2x128xf32> to vector<2x32xf32>
    %580 = arith.negf %579 : vector<2x32xf32>
    %581 = math.exp %580 : vector<2x32xf32>
    %cst_124 = arith.constant 1.000000e+00 : f32
    %582 = vector.broadcast %cst_124 : f32 to vector<2x32xf32>
    %583 = arith.addf %582, %581 : vector<2x32xf32>
    %584 = arith.divf %582, %583 : vector<2x32xf32>
    %585 = vector.extract_strided_slice %567 {offsets = [0, 64], sizes = [2, 32], strides = [1, 1]} : vector<2x128xf32> to vector<2x32xf32>
    %586 = math.tanh %585 : vector<2x32xf32>
    %587 = vector.extract_strided_slice %567 {offsets = [0, 96], sizes = [2, 32], strides = [1, 1]} : vector<2x128xf32> to vector<2x32xf32>
    %588 = arith.negf %587 : vector<2x32xf32>
    %589 = math.exp %588 : vector<2x32xf32>
    %cst_125 = arith.constant 1.000000e+00 : f32
    %590 = vector.broadcast %cst_125 : f32 to vector<2x32xf32>
    %591 = arith.addf %590, %589 : vector<2x32xf32>
    %592 = arith.divf %590, %591 : vector<2x32xf32>
    %593 = arith.mulf %584, %555 : vector<2x32xf32>
    %594 = arith.mulf %578, %586 : vector<2x32xf32>
    %595 = arith.addf %593, %594 : vector<2x32xf32>
    %596 = math.tanh %595 : vector<2x32xf32>
    %597 = arith.mulf %592, %596 : vector<2x32xf32>
    %598 = vector.extract_strided_slice %572 {offsets = [0, 0], sizes = [2, 32], strides = [1, 1]} : vector<2x128xf32> to vector<2x32xf32>
    %599 = arith.negf %598 : vector<2x32xf32>
    %600 = math.exp %599 : vector<2x32xf32>
    %cst_126 = arith.constant 1.000000e+00 : f32
    %601 = vector.broadcast %cst_126 : f32 to vector<2x32xf32>
    %602 = arith.addf %601, %600 : vector<2x32xf32>
    %603 = arith.divf %601, %602 : vector<2x32xf32>
    %604 = vector.extract_strided_slice %572 {offsets = [0, 32], sizes = [2, 32], strides = [1, 1]} : vector<2x128xf32> to vector<2x32xf32>
    %605 = arith.negf %604 : vector<2x32xf32>
    %606 = math.exp %605 : vector<2x32xf32>
    %cst_127 = arith.constant 1.000000e+00 : f32
    %607 = vector.broadcast %cst_127 : f32 to vector<2x32xf32>
    %608 = arith.addf %607, %606 : vector<2x32xf32>
    %609 = arith.divf %607, %608 : vector<2x32xf32>
    %610 = vector.extract_strided_slice %572 {offsets = [0, 64], sizes = [2, 32], strides = [1, 1]} : vector<2x128xf32> to vector<2x32xf32>
    %611 = math.tanh %610 : vector<2x32xf32>
    %612 = vector.extract_strided_slice %572 {offsets = [0, 96], sizes = [2, 32], strides = [1, 1]} : vector<2x128xf32> to vector<2x32xf32>
    %613 = arith.negf %612 : vector<2x32xf32>
    %614 = math.exp %613 : vector<2x32xf32>
    %cst_128 = arith.constant 1.000000e+00 : f32
    %615 = vector.broadcast %cst_128 : f32 to vector<2x32xf32>
    %616 = arith.addf %615, %614 : vector<2x32xf32>
    %617 = arith.divf %615, %616 : vector<2x32xf32>
    %618 = arith.mulf %609, %561 : vector<2x32xf32>
    %619 = arith.mulf %603, %611 : vector<2x32xf32>
    %620 = arith.addf %618, %619 : vector<2x32xf32>
    %621 = math.tanh %620 : vector<2x32xf32>
    %622 = arith.mulf %617, %621 : vector<2x32xf32>
    %623 = vector.broadcast %c6_i32 : i32 to vector<2x1xi32>
    %624 = arith.cmpi slt, %623, %0 : vector<2x1xi32>
    %625 = vector.broadcast %562 : i32 to vector<2x1xi32>
    %626 = arith.cmpi slt, %625, %0 : vector<2x1xi32>
    %cst_129 = arith.constant 0.000000e+00 : f32
    %627 = vector.shape_cast %624 : vector<2x1xi1> to vector<2x1xi1>
    %628 = vector.broadcast %627 : vector<2x1xi1> to vector<2x32xi1>
    %629 = vector.broadcast %cst_129 : f32 to vector<2x32xf32>
    %630 = arith.select %628, %597, %629 : vector<2x32xi1>, vector<2x32xf32>
    %631 = arith.index_cast %c6_i32 : i32 to index
    %c0_130 = arith.constant 0 : index
    %c0_131 = arith.constant 0 : index
    %632 = vector.load %arg10[%631, %c0_130, %c0_131] : memref<8x2x64xf32, #tpu.memory_space<vmem>>, vector<1x2x32xf32>
    %633 = vector.shape_cast %632 : vector<1x2x32xf32> to vector<2x32xf32>
    %634 = vector.shape_cast %630 : vector<2x32xf32> to vector<1x2x32xf32>
    tpu.vector_store %arg10[%631, %c0_130, %c0_131], %634 {strides = array<i32>} : memref<8x2x64xf32, #tpu.memory_space<vmem>>, vector<1x2x32xf32>,
    %cst_132 = arith.constant 0.000000e+00 : f32
    %635 = vector.shape_cast %626 : vector<2x1xi1> to vector<2x1xi1>
    %636 = vector.broadcast %635 : vector<2x1xi1> to vector<2x32xi1>
    %637 = vector.broadcast %cst_132 : f32 to vector<2x32xf32>
    %638 = arith.select %636, %622, %637 : vector<2x32xi1>, vector<2x32xf32>
    %639 = arith.index_cast %562 : i32 to index
    %c0_133 = arith.constant 0 : index
    %c32_134 = arith.constant 32 : index
    %640 = vector.load %arg10[%639, %c0_133, %c32_134] : memref<8x2x64xf32, #tpu.memory_space<vmem>>, vector<1x2x32xf32>
    %641 = vector.shape_cast %640 : vector<1x2x32xf32> to vector<2x32xf32>
    %642 = vector.shape_cast %638 : vector<2x32xf32> to vector<1x2x32xf32>
    tpu.vector_store %arg10[%639, %c0_133, %c32_134], %642 {strides = array<i32>} : memref<8x2x64xf32, #tpu.memory_space<vmem>>, vector<1x2x32xf32>,
    %643 = vector.shape_cast %624 : vector<2x1xi1> to vector<2x1xi1>
    %644 = vector.broadcast %643 : vector<2x1xi1> to vector<2x32xi1>
    %645 = arith.select %644, %597, %552 : vector<2x32xi1>, vector<2x32xf32>
    %646 = vector.shape_cast %624 : vector<2x1xi1> to vector<2x1xi1>
    %647 = vector.broadcast %646 : vector<2x1xi1> to vector<2x32xi1>
    %648 = arith.select %647, %595, %555 : vector<2x32xi1>, vector<2x32xf32>
    %649 = vector.shape_cast %626 : vector<2x1xi1> to vector<2x1xi1>
    %650 = vector.broadcast %649 : vector<2x1xi1> to vector<2x32xi1>
    %651 = arith.select %650, %622, %558 : vector<2x32xi1>, vector<2x32xf32>
    %652 = vector.shape_cast %626 : vector<2x1xi1> to vector<2x1xi1>
    %653 = vector.broadcast %652 : vector<2x1xi1> to vector<2x32xi1>
    %654 = arith.select %653, %620, %561 : vector<2x32xi1>, vector<2x32xf32>
    %c7_i32_135 = arith.constant 7 : i32
    %c7_i32_136 = arith.constant 7 : i32
    %655 = arith.subi %c7_i32_136, %c7_i32_135 : i32
    %656 = arith.index_cast %c7_i32_135 : i32 to index
    %c0_137 = arith.constant 0 : index
    %c0_138 = arith.constant 0 : index
    %657 = vector.load %arg0[%656, %c0_137, %c0_138] : memref<8x2x256xf32, #tpu.memory_space<vmem>>, vector<1x2x128xf32>
    %658 = vector.shape_cast %657 : vector<1x2x128xf32> to vector<2x128xf32>
    %cst_139 = arith.constant dense<0.000000e+00> : vector<2x128xf32>
    %659 = tpu.matmul %645, %1, %cst_139 {dimension_numbers = #tpu.dot_dimension_numbers<[1], [0], [0], [1], [0, 0, 1, 1], [], []>} : vector<2x32xf32>, vector<32x128xf32>, vector<2x128xf32> -> vector<2x128xf32>
    %660 = arith.addf %658, %659 : vector<2x128xf32>
    %661 = arith.index_cast %655 : i32 to index
    %c0_140 = arith.constant 0 : index
    %c128_141 = arith.constant 128 : index
    %662 = vector.load %arg0[%661, %c0_140, %c128_141] : memref<8x2x256xf32, #tpu.memory_space<vmem>>, vector<1x2x128xf32>
    %663 = vector.shape_cast %662 : vector<1x2x128xf32> to vector<2x128xf32>
    %cst_142 = arith.constant dense<0.000000e+00> : vector<2x128xf32>
    %664 = tpu.matmul %651, %2, %cst_142 {dimension_numbers = #tpu.dot_dimension_numbers<[1], [0], [0], [1], [0, 0, 1, 1], [], []>} : vector<2x32xf32>, vector<32x128xf32>, vector<2x128xf32> -> vector<2x128xf32>
    %665 = arith.addf %663, %664 : vector<2x128xf32>
    %666 = vector.extract_strided_slice %660 {offsets = [0, 0], sizes = [2, 32], strides = [1, 1]} : vector<2x128xf32> to vector<2x32xf32>
    %667 = arith.negf %666 : vector<2x32xf32>
    %668 = math.exp %667 : vector<2x32xf32>
    %cst_143 = arith.constant 1.000000e+00 : f32
    %669 = vector.broadcast %cst_143 : f32 to vector<2x32xf32>
    %670 = arith.addf %669, %668 : vector<2x32xf32>
    %671 = arith.divf %669, %670 : vector<2x32xf32>
    %672 = vector.extract_strided_slice %660 {offsets = [0, 32], sizes = [2, 32], strides = [1, 1]} : vector<2x128xf32> to vector<2x32xf32>
    %673 = arith.negf %672 : vector<2x32xf32>
    %674 = math.exp %673 : vector<2x32xf32>
    %cst_144 = arith.constant 1.000000e+00 : f32
    %675 = vector.broadcast %cst_144 : f32 to vector<2x32xf32>
    %676 = arith.addf %675, %674 : vector<2x32xf32>
    %677 = arith.divf %675, %676 : vector<2x32xf32>
    %678 = vector.extract_strided_slice %660 {offsets = [0, 64], sizes = [2, 32], strides = [1, 1]} : vector<2x128xf32> to vector<2x32xf32>
    %679 = math.tanh %678 : vector<2x32xf32>
    %680 = vector.extract_strided_slice %660 {offsets = [0, 96], sizes = [2, 32], strides = [1, 1]} : vector<2x128xf32> to vector<2x32xf32>
    %681 = arith.negf %680 : vector<2x32xf32>
    %682 = math.exp %681 : vector<2x32xf32>
    %cst_145 = arith.constant 1.000000e+00 : f32
    %683 = vector.broadcast %cst_145 : f32 to vector<2x32xf32>
    %684 = arith.addf %683, %682 : vector<2x32xf32>
    %685 = arith.divf %683, %684 : vector<2x32xf32>
    %686 = arith.mulf %677, %648 : vector<2x32xf32>
    %687 = arith.mulf %671, %679 : vector<2x32xf32>
    %688 = arith.addf %686, %687 : vector<2x32xf32>
    %689 = math.tanh %688 : vector<2x32xf32>
    %690 = arith.mulf %685, %689 : vector<2x32xf32>
    %691 = vector.extract_strided_slice %665 {offsets = [0, 0], sizes = [2, 32], strides = [1, 1]} : vector<2x128xf32> to vector<2x32xf32>
    %692 = arith.negf %691 : vector<2x32xf32>
    %693 = math.exp %692 : vector<2x32xf32>
    %cst_146 = arith.constant 1.000000e+00 : f32
    %694 = vector.broadcast %cst_146 : f32 to vector<2x32xf32>
    %695 = arith.addf %694, %693 : vector<2x32xf32>
    %696 = arith.divf %694, %695 : vector<2x32xf32>
    %697 = vector.extract_strided_slice %665 {offsets = [0, 32], sizes = [2, 32], strides = [1, 1]} : vector<2x128xf32> to vector<2x32xf32>
    %698 = arith.negf %697 : vector<2x32xf32>
    %699 = math.exp %698 : vector<2x32xf32>
    %cst_147 = arith.constant 1.000000e+00 : f32
    %700 = vector.broadcast %cst_147 : f32 to vector<2x32xf32>
    %701 = arith.addf %700, %699 : vector<2x32xf32>
    %702 = arith.divf %700, %701 : vector<2x32xf32>
    %703 = vector.extract_strided_slice %665 {offsets = [0, 64], sizes = [2, 32], strides = [1, 1]} : vector<2x128xf32> to vector<2x32xf32>
    %704 = math.tanh %703 : vector<2x32xf32>
    %705 = vector.extract_strided_slice %665 {offsets = [0, 96], sizes = [2, 32], strides = [1, 1]} : vector<2x128xf32> to vector<2x32xf32>
    %706 = arith.negf %705 : vector<2x32xf32>
    %707 = math.exp %706 : vector<2x32xf32>
    %cst_148 = arith.constant 1.000000e+00 : f32
    %708 = vector.broadcast %cst_148 : f32 to vector<2x32xf32>
    %709 = arith.addf %708, %707 : vector<2x32xf32>
    %710 = arith.divf %708, %709 : vector<2x32xf32>
    %711 = arith.mulf %702, %654 : vector<2x32xf32>
    %712 = arith.mulf %696, %704 : vector<2x32xf32>
    %713 = arith.addf %711, %712 : vector<2x32xf32>
    %714 = math.tanh %713 : vector<2x32xf32>
    %715 = arith.mulf %710, %714 : vector<2x32xf32>
    %716 = vector.broadcast %c7_i32_135 : i32 to vector<2x1xi32>
    %717 = arith.cmpi slt, %716, %0 : vector<2x1xi32>
    %718 = vector.broadcast %655 : i32 to vector<2x1xi32>
    %719 = arith.cmpi slt, %718, %0 : vector<2x1xi32>
    %cst_149 = arith.constant 0.000000e+00 : f32
    %720 = vector.shape_cast %717 : vector<2x1xi1> to vector<2x1xi1>
    %721 = vector.broadcast %720 : vector<2x1xi1> to vector<2x32xi1>
    %722 = vector.broadcast %cst_149 : f32 to vector<2x32xf32>
    %723 = arith.select %721, %690, %722 : vector<2x32xi1>, vector<2x32xf32>
    %724 = arith.index_cast %c7_i32_135 : i32 to index
    %c0_150 = arith.constant 0 : index
    %c0_151 = arith.constant 0 : index
    %725 = vector.load %arg10[%724, %c0_150, %c0_151] : memref<8x2x64xf32, #tpu.memory_space<vmem>>, vector<1x2x32xf32>
    %726 = vector.shape_cast %725 : vector<1x2x32xf32> to vector<2x32xf32>
    %727 = vector.shape_cast %723 : vector<2x32xf32> to vector<1x2x32xf32>
    tpu.vector_store %arg10[%724, %c0_150, %c0_151], %727 {strides = array<i32>} : memref<8x2x64xf32, #tpu.memory_space<vmem>>, vector<1x2x32xf32>,
    %cst_152 = arith.constant 0.000000e+00 : f32
    %728 = vector.shape_cast %719 : vector<2x1xi1> to vector<2x1xi1>
    %729 = vector.broadcast %728 : vector<2x1xi1> to vector<2x32xi1>
    %730 = vector.broadcast %cst_152 : f32 to vector<2x32xf32>
    %731 = arith.select %729, %715, %730 : vector<2x32xi1>, vector<2x32xf32>
    %732 = arith.index_cast %655 : i32 to index
    %c0_153 = arith.constant 0 : index
    %c32_154 = arith.constant 32 : index
    %733 = vector.load %arg10[%732, %c0_153, %c32_154] : memref<8x2x64xf32, #tpu.memory_space<vmem>>, vector<1x2x32xf32>
    %734 = vector.shape_cast %733 : vector<1x2x32xf32> to vector<2x32xf32>
    %735 = vector.shape_cast %731 : vector<2x32xf32> to vector<1x2x32xf32>
    tpu.vector_store %arg10[%732, %c0_153, %c32_154], %735 {strides = array<i32>} : memref<8x2x64xf32, #tpu.memory_space<vmem>>, vector<1x2x32xf32>,
    %736 = vector.shape_cast %717 : vector<2x1xi1> to vector<2x1xi1>
    %737 = vector.broadcast %736 : vector<2x1xi1> to vector<2x32xi1>
    %738 = arith.select %737, %690, %645 : vector<2x32xi1>, vector<2x32xf32>
    %739 = vector.shape_cast %717 : vector<2x1xi1> to vector<2x1xi1>
    %740 = vector.broadcast %739 : vector<2x1xi1> to vector<2x32xi1>
    %741 = arith.select %740, %688, %648 : vector<2x32xi1>, vector<2x32xf32>
    %742 = vector.shape_cast %719 : vector<2x1xi1> to vector<2x1xi1>
    %743 = vector.broadcast %742 : vector<2x1xi1> to vector<2x32xi1>
    %744 = arith.select %743, %715, %651 : vector<2x32xi1>, vector<2x32xf32>
    %745 = vector.shape_cast %719 : vector<2x1xi1> to vector<2x1xi1>
    %746 = vector.broadcast %745 : vector<2x1xi1> to vector<2x32xi1>
    %747 = arith.select %746, %713, %654 : vector<2x32xi1>, vector<2x32xf32>
    %c8_i32 = arith.constant 8 : i32
    %c0_155 = arith.constant 0 : index
    %c0_156 = arith.constant 0 : index
    %748 = vector.load %arg4[%c0_155, %c0_156] : memref<32x32xf32, #tpu.memory_space<vmem>>, vector<32x32xf32>
    %cst_157 = arith.constant dense<0.000000e+00> : vector<2x32xf32>
    %749 = tpu.matmul %741, %748, %cst_157 {dimension_numbers = #tpu.dot_dimension_numbers<[1], [0], [0], [1], [0, 0, 1, 1], [], []>} : vector<2x32xf32>, vector<32x32xf32>, vector<2x32xf32> -> vector<2x32xf32>
    %c0_158 = arith.constant 0 : index
    %c0_159 = arith.constant 0 : index
    %750 = vector.load %arg5[%c0_158, %c0_159] : memref<32x32xf32, #tpu.memory_space<vmem>>, vector<32x32xf32>
    %cst_160 = arith.constant dense<0.000000e+00> : vector<2x32xf32>
    %751 = tpu.matmul %747, %750, %cst_160 {dimension_numbers = #tpu.dot_dimension_numbers<[1], [0], [0], [1], [0, 0, 1, 1], [], []>} : vector<2x32xf32>, vector<32x32xf32>, vector<2x32xf32> -> vector<2x32xf32>
    %752 = arith.addf %749, %751 : vector<2x32xf32>
    %c0_161 = arith.constant 0 : index
    %c0_162 = arith.constant 0 : index
    %753 = vector.load %arg6[%c0_161, %c0_162] : memref<1x32xf32, #tpu.memory_space<vmem>>, vector<1x32xf32>
    %754 = vector.broadcast %753 : vector<1x32xf32> to vector<2x32xf32>
    %755 = arith.addf %752, %754 : vector<2x32xf32>
    %c0_163 = arith.constant 0 : index
    %c0_164 = arith.constant 0 : index
    %756 = vector.load %arg11[%c0_163, %c0_164] : memref<2x32xf32, #tpu.memory_space<vmem>>, vector<2x32xf32>
    tpu.vector_store %arg11[%c0_163, %c0_164], %755 {strides = array<i32>} : memref<2x32xf32, #tpu.memory_space<vmem>>, vector<2x32xf32>,
    %c0_165 = arith.constant 0 : index
    %c0_166 = arith.constant 0 : index
    %757 = vector.load %arg7[%c0_165, %c0_166] : memref<32x32xf32, #tpu.memory_space<vmem>>, vector<32x32xf32>
    %cst_167 = arith.constant dense<0.000000e+00> : vector<2x32xf32>
    %758 = tpu.matmul %738, %757, %cst_167 {dimension_numbers = #tpu.dot_dimension_numbers<[1], [0], [0], [1], [0, 0, 1, 1], [], []>} : vector<2x32xf32>, vector<32x32xf32>, vector<2x32xf32> -> vector<2x32xf32>
    %c0_168 = arith.constant 0 : index
    %c0_169 = arith.constant 0 : index
    %759 = vector.load %arg8[%c0_168, %c0_169] : memref<32x32xf32, #tpu.memory_space<vmem>>, vector<32x32xf32>
    %cst_170 = arith.constant dense<0.000000e+00> : vector<2x32xf32>
    %760 = tpu.matmul %744, %759, %cst_170 {dimension_numbers = #tpu.dot_dimension_numbers<[1], [0], [0], [1], [0, 0, 1, 1], [], []>} : vector<2x32xf32>, vector<32x32xf32>, vector<2x32xf32> -> vector<2x32xf32>
    %761 = arith.addf %758, %760 : vector<2x32xf32>
    %c0_171 = arith.constant 0 : index
    %c0_172 = arith.constant 0 : index
    %762 = vector.load %arg9[%c0_171, %c0_172] : memref<1x32xf32, #tpu.memory_space<vmem>>, vector<1x32xf32>
    %763 = vector.broadcast %762 : vector<1x32xf32> to vector<2x32xf32>
    %764 = arith.addf %761, %763 : vector<2x32xf32>
    %c0_173 = arith.constant 0 : index
    %c0_174 = arith.constant 0 : index
    %765 = vector.load %arg12[%c0_173, %c0_174] : memref<2x32xf32, #tpu.memory_space<vmem>>, vector<2x32xf32>
    tpu.vector_store %arg12[%c0_173, %c0_174], %764 {strides = array<i32>} : memref<2x32xf32, #tpu.memory_space<vmem>>, vector<2x32xf32>,
    return
  }
}

</mosaic_0001>

<llo_original>
// kernel: tpu_custom_call.1
$region0: #{tpu_custom_call.1}
  #allocation0 [shape = 'u32[]', space=smem, size = 0x4, offset = 0x4, fixed_abs, tag = 'smem constant byte address 0x4 - core index']
  #allocation1 [shape = 'u32[144,128]{1,0:T(1,128)}', space=vmem, size = 0x12000, scoped, tag = 'internal scratch']
  %s0 = inlined_call_operand.hbm [shape: f32[8,2,256], index: 0, kind: input, shape index: {}]
  %s1 = inlined_call_operand.vmem [shape: s32[2,1], index: 1, kind: input, shape index: {}]
  %s2 = inlined_call_operand.hbm [shape: f32[32,128], index: 2, kind: input, shape index: {}]
  %s3 = inlined_call_operand.hbm [shape: f32[32,128], index: 3, kind: input, shape index: {}]
  %s4 = inlined_call_operand.hbm [shape: f32[32,32], index: 4, kind: input, shape index: {}]
  %s5 = inlined_call_operand.hbm [shape: f32[32,32], index: 5, kind: input, shape index: {}]
  %s6 = inlined_call_operand.vmem [shape: f32[1,32], index: 6, kind: input, shape index: {}]
  %s7 = inlined_call_operand.hbm [shape: f32[32,32], index: 7, kind: input, shape index: {}]
  %s8 = inlined_call_operand.vmem [shape: f32[32,32], index: 8, kind: input, shape index: {}]
  %s9 = inlined_call_operand.vmem [shape: f32[1,32], index: 9, kind: input, shape index: {}]
  %s10 = inlined_call_operand.hbm [shape: f32[8,2,64], index: 10, kind: output, shape index: {0}]
  %s11 = inlined_call_operand.hbm [shape: f32[2,32], index: 11, kind: output, shape index: {1}]
  %s12 = inlined_call_operand.hbm [shape: f32[2,32], index: 12, kind: output, shape index: {2}]
  %13 = xla_tuple %s10, %s11, %s12
  %s14 = sld [smem:[#allocation0]]
  $region90: #{tpu_custom_call.1} parent=0
    _
  %s16 = ssub.s32 1, %s14
  %s17 = scalar_select 0, %s16, %s14
  $region1: #{tpu_custom_call.1} parent=0
    #allocation2 [shape = 'u8[16384]{0}', space=vmem, size = 0x4000, scoped, tag = 'input window, operand 0, single buffered']
    #allocation3 [shape = 's32[1]{0}', space=sflag, size = 0x4, scoped, tag = 'scoped memory for tpu_custom_call.1']
    #allocation4 [shape = 's32[1]{0}', space=sflag, size = 0x4, scoped, tag = 'scoped memory for tpu_custom_call.1']
    #allocation5 [shape = 'u8[16384]{0}', space=vmem, size = 0x4000, scoped, tag = 'input window, operand 2, single buffered']
    #allocation6 [shape = 's32[1]{0}', space=sflag, size = 0x4, scoped, tag = 'scoped memory for tpu_custom_call.1']
    #allocation7 [shape = 'u8[16384]{0}', space=vmem, size = 0x4000, scoped, tag = 'input window, operand 3, single buffered']
    #allocation8 [shape = 'u8[16384]{0}', space=vmem, size = 0x4000, scoped, tag = 'input window, operand 4, single buffered']
    #allocation9 [shape = 's32[1]{0}', space=sflag, size = 0x4, scoped, tag = 'scoped memory for tpu_custom_call.1']
    #allocation10 [shape = 'u8[16384]{0}', space=vmem, size = 0x4000, scoped, tag = 'input window, operand 5, single buffered']
    #allocation11 [shape = 'u8[16384]{0}', space=vmem, size = 0x4000, scoped, tag = 'input window, operand 7, single buffered']
    #allocation12 [shape = 's32[1]{0}', space=sflag, size = 0x4, scoped, tag = 'scoped memory for tpu_custom_call.1']
    #allocation13 [shape = 'u8[8192]{0}', space=vmem, size = 0x2000, scoped, tag = 'output window, operand 0, single buffered']
    #allocation14 [shape = 'u8[1024]{0}', space=vmem, size = 0x400, scoped, tag = 'output window, operand 1, single buffered']
    #allocation15 [shape = 's32[1]{0}', space=sflag, size = 0x4, scoped, tag = 'scoped memory for tpu_custom_call.1']
    #allocation16 [shape = 'u8[1024]{0}', space=vmem, size = 0x400, scoped, tag = 'output window, operand 2, single buffered']
    %18 = vsyncpa [#allocation3], 0
    %19 = vsyncpa [#allocation6], 0
    %20 = vsyncpa [#allocation9], 0
    %21 = vsyncpa [#allocation12], 0
    %22 = vsyncpa [#allocation4], 0
    %23 = vsyncpa [#allocation15], 0
    // Predicated region
    $region2: #{tpu_custom_call.1} parent=1 // pred_check
      _
    $region3: #{tpu_custom_call.1} parent=1 // pred_check_branch
      %25 = sbr.rel (0) target = $region5
    $region4: #{tpu_custom_call.1} parent=1 // pred_region
      %s27 = ssub.s32 512, 512
      %28 = vsyncadd [#allocation3], %s27
      %s29 = sshll.u32 [#allocation2], 4
      %s30 = int_to_ptr.vmem [resolvable:$true] %s29
      %35 = dma.hbm_to_vmem [thread:$0]  %s0, 512, %s30, [#allocation3], 64, 64, 4
    $region5: #{tpu_custom_call.1} parent=1 // pred_fallthru
      _
    // Predicated region
    $region6: #{tpu_custom_call.1} parent=1 // pred_check
      _
    $region7: #{tpu_custom_call.1} parent=1 // pred_check_branch
      %37 = sbr.rel (0) target = $region9
    $region8: #{tpu_custom_call.1} parent=1 // pred_region
      _
    $region9: #{tpu_custom_call.1} parent=1 // pred_fallthru
      _
    // Predicated region
    $region10: #{tpu_custom_call.1} parent=1 // pred_check
      _
    $region11: #{tpu_custom_call.1} parent=1 // pred_check_branch
      %39 = sbr.rel (0) target = $region13
    $region12: #{tpu_custom_call.1} parent=1 // pred_region
      %s41 = ssub.s32 512, 512
      %42 = vsyncadd [#allocation6], %s41
      %s43 = sshll.u32 [#allocation5], 4
      %s44 = int_to_ptr.vmem [resolvable:$true] %s43
      %49 = dma.hbm_to_vmem [thread:$0]  %s2, 512, %s44, [#allocation6], 128, 128, 8
    $region13: #{tpu_custom_call.1} parent=1 // pred_fallthru
      _
    // Predicated region
    $region14: #{tpu_custom_call.1} parent=1 // pred_check
      _
    $region15: #{tpu_custom_call.1} parent=1 // pred_check_branch
      %51 = sbr.rel (0) target = $region17
    $region16: #{tpu_custom_call.1} parent=1 // pred_region
      %s53 = ssub.s32 512, 512
      %54 = vsyncadd [#allocation6], %s53
      %s55 = sshll.u32 [#allocation7], 4
      %s56 = int_to_ptr.vmem [resolvable:$true] %s55
      %61 = dma.hbm_to_vmem [thread:$0]  %s3, 512, %s56, [#allocation6], 128, 128, 8
    $region17: #{tpu_custom_call.1} parent=1 // pred_fallthru
      _
    // Predicated region
    $region18: #{tpu_custom_call.1} parent=1 // pred_check
      _
    $region19: #{tpu_custom_call.1} parent=1 // pred_check_branch
      %63 = sbr.rel (0) target = $region21
    $region20: #{tpu_custom_call.1} parent=1 // pred_region
      %s65 = ssub.s32 512, 512
      %66 = vsyncadd [#allocation9], %s65
      %s67 = sshll.u32 [#allocation8], 4
      %s68 = int_to_ptr.vmem [resolvable:$true] %s67
      %73 = dma.hbm_to_vmem [thread:$0]  %s4, 512, %s68, [#allocation9], 128, 128, 8
    $region21: #{tpu_custom_call.1} parent=1 // pred_fallthru
      _
    // Predicated region
    $region22: #{tpu_custom_call.1} parent=1 // pred_check
      _
    $region23: #{tpu_custom_call.1} parent=1 // pred_check_branch
      %75 = sbr.rel (0) target = $region25
    $region24: #{tpu_custom_call.1} parent=1 // pred_region
      %s77 = ssub.s32 512, 512
      %78 = vsyncadd [#allocation9], %s77
      %s79 = sshll.u32 [#allocation10], 4
      %s80 = int_to_ptr.vmem [resolvable:$true] %s79
      %85 = dma.hbm_to_vmem [thread:$0]  %s5, 512, %s80, [#allocation9], 128, 128, 8
    $region25: #{tpu_custom_call.1} parent=1 // pred_fallthru
      _
    // Predicated region
    $region26: #{tpu_custom_call.1} parent=1 // pred_check
      _
    $region27: #{tpu_custom_call.1} parent=1 // pred_check_branch
      %87 = sbr.rel (0) target = $region29
    $region28: #{tpu_custom_call.1} parent=1 // pred_region
      _
    $region29: #{tpu_custom_call.1} parent=1 // pred_fallthru
      _
    // Predicated region
    $region30: #{tpu_custom_call.1} parent=1 // pred_check
      _
    $region31: #{tpu_custom_call.1} parent=1 // pred_check_branch
      %89 = sbr.rel (0) target = $region33
    $region32: #{tpu_custom_call.1} parent=1 // pred_region
      %s91 = ssub.s32 512, 512
      %92 = vsyncadd [#allocation12], %s91
      %s93 = sshll.u32 [#allocation11], 4
      %s94 = int_to_ptr.vmem [resolvable:$true] %s93
      %99 = dma.hbm_to_vmem [thread:$0]  %s7, 512, %s94, [#allocation12], 128, 128, 8
    $region33: #{tpu_custom_call.1} parent=1 // pred_fallthru
      _
    // Predicated region
    $region34: #{tpu_custom_call.1} parent=1 // pred_check
      _
    $region35: #{tpu_custom_call.1} parent=1 // pred_check_branch
      %101 = sbr.rel (0) target = $region37
    $region36: #{tpu_custom_call.1} parent=1 // pred_region
      _
    $region37: #{tpu_custom_call.1} parent=1 // pred_fallthru
      _
    // Predicated region
    $region38: #{tpu_custom_call.1} parent=1 // pred_check
      _
    $region39: #{tpu_custom_call.1} parent=1 // pred_check_branch
      %103 = sbr.rel (0) target = $region41
    $region40: #{tpu_custom_call.1} parent=1 // pred_region
      _
    $region41: #{tpu_custom_call.1} parent=1 // pred_fallthru
      _
    // Predicated region
    $region42: #{tpu_custom_call.1} parent=1 // pred_check
      _
    $region43: #{tpu_custom_call.1} parent=1 // pred_check_branch
      %105 = sbr.rel (0) target = $region45
    $region44: #{tpu_custom_call.1} parent=1 // pred_region
      %106 = dma.done [#allocation3], 512
    $region45: #{tpu_custom_call.1} parent=1 // pred_fallthru
      _
    // Predicated region
    $region46: #{tpu_custom_call.1} parent=1 // pred_check
      _
    $region47: #{tpu_custom_call.1} parent=1 // pred_check_branch
      %108 = sbr.rel (0) target = $region49
    $region48: #{tpu_custom_call.1} parent=1 // pred_region
      %109 = dma.done [#allocation6], 512
    $region49: #{tpu_custom_call.1} parent=1 // pred_fallthru
      _
    // Predicated region
    $region50: #{tpu_custom_call.1} parent=1 // pred_check
      _
    $region51: #{tpu_custom_call.1} parent=1 // pred_check_branch
      %111 = sbr.rel (0) target = $region53
    $region52: #{tpu_custom_call.1} parent=1 // pred_region
      %112 = dma.done [#allocation6], 512
    $region53: #{tpu_custom_call.1} parent=1 // pred_fallthru
      _
    // Predicated region
    $region54: #{tpu_custom_call.1} parent=1 // pred_check
      _
    $region55: #{tpu_custom_call.1} parent=1 // pred_check_branch
      %114 = sbr.rel (0) target = $region57
    $region56: #{tpu_custom_call.1} parent=1 // pred_region
      %115 = dma.done [#allocation9], 512
    $region57: #{tpu_custom_call.1} parent=1 // pred_fallthru
      _
    // Predicated region
    $region58: #{tpu_custom_call.1} parent=1 // pred_check
      _
    $region59: #{tpu_custom_call.1} parent=1 // pred_check_branch
      %117 = sbr.rel (0) target = $region61
    $region60: #{tpu_custom_call.1} parent=1 // pred_region
      %118 = dma.done [#allocation9], 512
    $region61: #{tpu_custom_call.1} parent=1 // pred_fallthru
      _
    // Predicated region
    $region62: #{tpu_custom_call.1} parent=1 // pred_check
      _
    $region63: #{tpu_custom_call.1} parent=1 // pred_check_branch
      %120 = sbr.rel (0) target = $region65
    $region64: #{tpu_custom_call.1} parent=1 // pred_region
      %121 = dma.done [#allocation12], 512
    $region65: #{tpu_custom_call.1} parent=1 // pred_fallthru
      _
    %v122 = vld [vmem:[%s1] sm:$0x3]
    %v123 = vld [vmem:[#allocation5] sm:$0xff]
    %v124 = vld [vmem:[#allocation5 + $0x8] sm:$0xff]
    %v125 = vld [vmem:[#allocation5 + $0x10] sm:$0xff]
    %v126 = vld [vmem:[#allocation5 + $0x18] sm:$0xff]
    %v127 = vld [vmem:[#allocation7] sm:$0xff]
    %v128 = vld [vmem:[#allocation7 + $0x8] sm:$0xff]
    %v129 = vld [vmem:[#allocation7 + $0x10] sm:$0xff]
    %v130 = vld [vmem:[#allocation7 + $0x18] sm:$0xff]
    %v131 = vld [vmem:[#allocation2] sm:$0x3]
    %vm132 = vcmask 261120
    %v134 = vsel %vm132, 0.0, 0
    %136 = vmatprep.subr.mxu0 0.0
    %137 = vmatpush1.msra.mxu0 %v123
    %138 = vmatprep.subr.mxu0 0.0
    %139 = vmatpush1.msra.mxu0 %v124
    %140 = vmatprep.subr.mxu0 0.0
    %141 = vmatpush1.msra.mxu0 %v125
    %142 = vmatprep.subr.mxu0 0.0
    %143 = vmatpush1.msra.mxu0 %v126
    %144 = vmatprep.subr.mxu0 0.0
    %145 = vmatpush1.msra.mxu0 0.0
    %146 = vmatprep.subr.mxu0 0.0
    %147 = vmatpush1.msra.mxu0 0.0
    %148 = vmatprep.subr.mxu0 0.0
    %149 = vmatpush1.msra.mxu0 0.0
    %150 = vmatprep.subr.mxu0 0.0
    %151 = vmatpush1.msra.mxu0 0.0
    %152 = vmatprep.subr.mxu0 0.0
    %153 = vmatpush1.msra.mxu0 0.0
    %154 = vmatprep.subr.mxu0 0.0
    %155 = vmatpush1.msra.mxu0 0.0
    %156 = vmatprep.subr.mxu0 0.0
    %157 = vmatpush1.msra.mxu0 0.0
    %158 = vmatprep.subr.mxu0 0.0
    %159 = vmatpush1.msra.mxu0 0.0
    %160 = vmatprep.subr.mxu0 0.0
    %161 = vmatpush1.msra.mxu0 0.0
    %162 = vmatprep.subr.mxu0 0.0
    %163 = vmatpush1.msra.mxu0 0.0
    %164 = vmatprep.subr.mxu0 0.0
    %165 = vmatpush1.msra.mxu0 0.0
    %166 = vmatprep.subr.mxu0 0.0
    %167 = vmatpush1.msra.mxu0 0.0
    %168 = vmatprep.subr.mxu0 0.0
    %169 = vmatpush1.msra.mxu0 0.0
    %170 = vmatprep.subr.mxu0 0.0
    %171 = vmatpush1.msra.mxu0 0.0
    %172 = vmatprep.subr.mxu0 0.0
    %173 = vmatpush1.msra.mxu0 0.0
    %174 = vmatprep.subr.mxu0 0.0
    %175 = vmatpush1.msra.mxu0 0.0
    %176 = vmatprep.subr.mxu0 0.0
    %177 = vmatpush1.msra.mxu0 0.0
    %178 = vmatprep.subr.mxu0 0.0
    %179 = vmatpush1.msra.mxu0 0.0
    %180 = vmatprep.subr.mxu0 0.0
    %181 = vmatpush1.msra.mxu0 0.0
    %182 = vmatprep.subr.mxu0 0.0
    %183 = vmatpush1.msra.mxu0 0.0
    %184 = vmatprep.subr.mxu0 0.0
    %185 = vmatpush1.msra.mxu0 0.0
    %186 = vmatprep.subr.mxu0 0.0
    %187 = vmatpush1.msra.mxu0 0.0
    %188 = vmatprep.subr.mxu0 0.0
    %189 = vmatpush1.msra.mxu0 0.0
    %190 = vmatprep.subr.mxu0 0.0
    %191 = vmatpush1.msra.mxu0 0.0
    %192 = vmatprep.subr.mxu0 0.0
    %193 = vmatpush1.msra.mxu0 0.0
    %194 = vmatprep.subr.mxu0 0.0
    %195 = vmatpush1.msra.mxu0 0.0
    %196 = vmatprep.subr.mxu0 0.0
    %197 = vmatpush1.msra.mxu0 0.0
    %198 = vmatprep.subr.mxu0 0.0
    %199 = vmatpush1.msra.mxu0 0.0
    %200 = vmatprep.mubr.f32.mxu0 0.0
    %201 = vmatmul.mubr.f32.gmra.mrb[0].mxu0 %v134
    %v202 = vpop.f32.mrb[0].mxu0
    %v203 = vadd.f32 0.0, %v202
    %v204 = vpop.f32.mrb[0].mxu0
    %205 = vdwg.mxu0
    %v206 = vadd.f32 %v131, %v203
    %s207 = scalar_lea.vmem [#allocation2], 28
    %v208 = vld [vmem:[%s207 + $0x2] sm:$0x3]
    %209 = vmatprep.subr.mxu0 0.0
    %210 = vmatpush1.msra.mxu0 %v127
    %211 = vmatprep.subr.mxu0 0.0
    %212 = vmatpush1.msra.mxu0 %v128
    %213 = vmatprep.subr.mxu0 0.0
    %214 = vmatpush1.msra.mxu0 %v129
    %215 = vmatprep.subr.mxu0 0.0
    %216 = vmatpush1.msra.mxu0 %v130
    %217 = vmatprep.subr.mxu0 0.0
    %218 = vmatpush1.msra.mxu0 0.0
    %219 = vmatprep.subr.mxu0 0.0
    %220 = vmatpush1.msra.mxu0 0.0
    %221 = vmatprep.subr.mxu0 0.0
    %222 = vmatpush1.msra.mxu0 0.0
    %223 = vmatprep.subr.mxu0 0.0
    %224 = vmatpush1.msra.mxu0 0.0
    %225 = vmatprep.subr.mxu0 0.0
    %226 = vmatpush1.msra.mxu0 0.0
    %227 = vmatprep.subr.mxu0 0.0
    %228 = vmatpush1.msra.mxu0 0.0
    %229 = vmatprep.subr.mxu0 0.0
    %230 = vmatpush1.msra.mxu0 0.0
    %231 = vmatprep.subr.mxu0 0.0
    %232 = vmatpush1.msra.mxu0 0.0
    %233 = vmatprep.subr.mxu0 0.0
    %234 = vmatpush1.msra.mxu0 0.0
    %235 = vmatprep.subr.mxu0 0.0
    %236 = vmatpush1.msra.mxu0 0.0
    %237 = vmatprep.subr.mxu0 0.0
    %238 = vmatpush1.msra.mxu0 0.0
    %239 = vmatprep.subr.mxu0 0.0
    %240 = vmatpush1.msra.mxu0 0.0
    %241 = vmatprep.subr.mxu0 0.0
    %242 = vmatpush1.msra.mxu0 0.0
    %243 = vmatprep.subr.mxu0 0.0
    %244 = vmatpush1.msra.mxu0 0.0
    %245 = vmatprep.subr.mxu0 0.0
    %246 = vmatpush1.msra.mxu0 0.0
    %247 = vmatprep.subr.mxu0 0.0
    %248 = vmatpush1.msra.mxu0 0.0
    %249 = vmatprep.subr.mxu0 0.0
    %250 = vmatpush1.msra.mxu0 0.0
    %251 = vmatprep.subr.mxu0 0.0
    %252 = vmatpush1.msra.mxu0 0.0
    %253 = vmatprep.subr.mxu0 0.0
    %254 = vmatpush1.msra.mxu0 0.0
    %255 = vmatprep.subr.mxu0 0.0
    %256 = vmatpush1.msra.mxu0 0.0
    %257 = vmatprep.subr.mxu0 0.0
    %258 = vmatpush1.msra.mxu0 0.0
    %259 = vmatprep.subr.mxu0 0.0
    %260 = vmatpush1.msra.mxu0 0.0
    %261 = vmatprep.subr.mxu0 0.0
    %262 = vmatpush1.msra.mxu0 0.0
    %263 = vmatprep.subr.mxu0 0.0
    %264 = vmatpush1.msra.mxu0 0.0
    %265 = vmatprep.subr.mxu0 0.0
    %266 = vmatpush1.msra.mxu0 0.0
    %267 = vmatprep.subr.mxu0 0.0
    %268 = vmatpush1.msra.mxu0 0.0
    %269 = vmatprep.subr.mxu0 0.0
    %270 = vmatpush1.msra.mxu0 0.0
    %271 = vmatprep.subr.mxu0 0.0
    %272 = vmatpush1.msra.mxu0 0.0
    %273 = vmatprep.mubr.f32.mxu0 0.0
    %274 = vmatmul.mubr.f32.gmra.mrb[0].mxu0 %v134
    %v275 = vpop.f32.mrb[0].mxu0
    %v276 = vadd.f32 0.0, %v275
    %v277 = vpop.f32.mrb[0].mxu0
    %278 = vdwg.mxu0
    %v279 = vadd.f32 %v208, %v276
    %v280 = vxor.u32 %v206, 2147483648
    %v281 = vmul.f32 %v280, 1.442695
    %v282 = vpow.pop %v281
    %v283 = vadd.f32 %v282, 1.0
    %v284 = vrcp.pop %v283
    %v285 = vmul.f32 1.0, %v284
    %v286 = vtanh.pop %v206
    %v287 = vmul.f32 %v285, 0.0
    %289 = vrot.lane.b32.xlu0 %v286, 64
    %v290 = vpop.permute.xlu0 %289
    %v292 = vmul.f32 %v285, %v290
    %294 = vrot.lane.b32.xlu0 %v292, 32
    %v295 = vpop.permute.xlu0 %294
    %v297 = vadd.f32 %v287, %v295
    %v298 = vtanh.pop %v297
    %300 = vrot.lane.b32.xlu0 %v298, 64
    %v301 = vpop.permute.xlu0 %300
    %v303 = vmul.f32 %v285, %v301
    %v304 = vxor.u32 %v279, 2147483648
    %v305 = vmul.f32 %v304, 1.442695
    %v306 = vpow.pop %v305
    %v307 = vadd.f32 %v306, 1.0
    %v308 = vrcp.pop %v307
    %v309 = vmul.f32 1.0, %v308
    %v310 = vtanh.pop %v279
    %v311 = vmul.f32 %v309, 0.0
    %313 = vrot.lane.b32.xlu0 %v310, 64
    %v314 = vpop.permute.xlu0 %313
    %v316 = vmul.f32 %v309, %v314
    %318 = vrot.lane.b32.xlu0 %v316, 32
    %v319 = vpop.permute.xlu0 %318
    %v321 = vadd.f32 %v311, %v319
    %v322 = vtanh.pop %v321
    %324 = vrot.lane.b32.xlu0 %v322, 64
    %v325 = vpop.permute.xlu0 %324
    %v327 = vmul.f32 %v309, %v325
    %vm328 = vcmp.gt.s32.totalorder %v122, 0
    %vm329 = vcmp.gt.s32.totalorder %v122, 7
    %v330 = vsel %vm328, 1, 0
    %331 = vset.pattern.permute.xlu0 0
    %332 = vperm.xlu0 %331, %v330
    %v333 = vpop.permute.xlu0 %332
    %vm334 = vcmp.eq.s32.totalorder %v333, 1
    %v337 = vunpack.c.l.s4 1983009808
    %v338 = vunpack.c.0.s8 %v337
    %v339 = vlaneseq
    %v340 = vshrl.u32 %v339, 7
    %v341 = vsub.s32 %v338, %v340
    %v342 = vrot.slane %v303, %v341
    %343 = vrot.lane.b32.xlu0 %v342, 32
    %v344 = vpop.permute.xlu0 %343
    %v346 = vsel %vm334, %v344, 0.0
    %vm347 = vcmask 254976
    %348 = vst.msk [vmem:[#allocation13] sm:$0x3] %vm347, %v346
    %v349 = vsel %vm329, 1, 0
    %350 = vset.pattern.permute.xlu0 0
    %351 = vperm.xlu0 %350, %v349
    %v352 = vpop.permute.xlu0 %351
    %vm353 = vcmp.eq.s32.totalorder %v352, 1
    %v356 = vunpack.c.l.s4 1983009808
    %v357 = vunpack.c.0.s8 %v356
    %v358 = vlaneseq
    %v359 = vshrl.u32 %v358, 7
    %v360 = vsub.s32 %v357, %v359
    %v361 = vrot.slane %v327, %v360
    %362 = vrot.lane.b32.xlu0 %v361, 32
    %v363 = vpop.permute.xlu0 %362
    %v365 = vsel %vm353, %v363, 0.0
    %367 = vrot.lane.b32.xlu0 %v365, 32
    %v368 = vpop.permute.xlu0 %367
    %s370 = scalar_lea.vmem [#allocation13], 14
    %vm371 = vcmask 517376
    %372 = vst.msk [vmem:[%s370] sm:$0x3] %vm371, %v368
    %v375 = vunpack.c.l.s4 1983009808
    %v376 = vunpack.c.0.s8 %v375
    %v377 = vlaneseq
    %v378 = vshrl.u32 %v377, 7
    %v379 = vsub.s32 %v376, %v378
    %v380 = vrot.slane %v297, %v379
    %381 = vrot.lane.b32.xlu0 %v380, 96
    %v382 = vpop.permute.xlu0 %381
    %v384 = vsel %vm334, %v382, 0.0
    %v387 = vunpack.c.l.s4 1983009808
    %v388 = vunpack.c.0.s8 %v387
    %v389 = vlaneseq
    %v390 = vshrl.u32 %v389, 7
    %v391 = vsub.s32 %v388, %v390
    %v392 = vrot.slane %v321, %v391
    %393 = vrot.lane.b32.xlu0 %v392, 96
    %v394 = vpop.permute.xlu0 %393
    %v396 = vsel %vm353, %v394, 0.0
    %s397 = scalar_lea.vmem [#allocation2], 4
    %v398 = vld [vmem:[%s397] sm:$0x3]
    %v400 = vsel %vm132, %v346, 0
    %402 = vmatprep.subr.mxu0 0.0
    %403 = vmatpush1.msra.mxu0 %v123
    %404 = vmatprep.subr.mxu0 0.0
    %405 = vmatpush1.msra.mxu0 %v124
    %406 = vmatprep.subr.mxu0 0.0
    %407 = vmatpush1.msra.mxu0 %v125
    %408 = vmatprep.subr.mxu0 0.0
    %409 = vmatpush1.msra.mxu0 %v126
    %410 = vmatprep.subr.mxu0 0.0
    %411 = vmatpush1.msra.mxu0 0.0
    %412 = vmatprep.subr.mxu0 0.0
    %413 = vmatpush1.msra.mxu0 0.0
    %414 = vmatprep.subr.mxu0 0.0
    %415 = vmatpush1.msra.mxu0 0.0
    %416 = vmatprep.subr.mxu0 0.0
    %417 = vmatpush1.msra.mxu0 0.0
    %418 = vmatprep.subr.mxu0 0.0
    %419 = vmatpush1.msra.mxu0 0.0
    %420 = vmatprep.subr.mxu0 0.0
    %421 = vmatpush1.msra.mxu0 0.0
    %422 = vmatprep.subr.mxu0 0.0
    %423 = vmatpush1.msra.mxu0 0.0
    %424 = vmatprep.subr.mxu0 0.0
    %425 = vmatpush1.msra.mxu0 0.0
    %426 = vmatprep.subr.mxu0 0.0
    %427 = vmatpush1.msra.mxu0 0.0
    %428 = vmatprep.subr.mxu0 0.0
    %429 = vmatpush1.msra.mxu0 0.0
    %430 = vmatprep.subr.mxu0 0.0
    %431 = vmatpush1.msra.mxu0 0.0
    %432 = vmatprep.subr.mxu0 0.0
    %433 = vmatpush1.msra.mxu0 0.0
    %434 = vmatprep.subr.mxu0 0.0
    %435 = vmatpush1.msra.mxu0 0.0
    %436 = vmatprep.subr.mxu0 0.0
    %437 = vmatpush1.msra.mxu0 0.0
    %438 = vmatprep.subr.mxu0 0.0
    %439 = vmatpush1.msra.mxu0 0.0
    %440 = vmatprep.subr.mxu0 0.0
    %441 = vmatpush1.msra.mxu0 0.0
    %442 = vmatprep.subr.mxu0 0.0
    %443 = vmatpush1.msra.mxu0 0.0
    %444 = vmatprep.subr.mxu0 0.0
    %445 = vmatpush1.msra.mxu0 0.0
    %446 = vmatprep.subr.mxu0 0.0
    %447 = vmatpush1.msra.mxu0 0.0
    %448 = vmatprep.subr.mxu0 0.0
    %449 = vmatpush1.msra.mxu0 0.0
    %450 = vmatprep.subr.mxu0 0.0
    %451 = vmatpush1.msra.mxu0 0.0
    %452 = vmatprep.subr.mxu0 0.0
    %453 = vmatpush1.msra.mxu0 0.0
    %454 = vmatprep.subr.mxu0 0.0
    %455 = vmatpush1.msra.mxu0 0.0
    %456 = vmatprep.subr.mxu0 0.0
    %457 = vmatpush1.msra.mxu0 0.0
    %458 = vmatprep.subr.mxu0 0.0
    %459 = vmatpush1.msra.mxu0 0.0
    %460 = vmatprep.subr.mxu0 0.0
    %461 = vmatpush1.msra.mxu0 0.0
    %462 = vmatprep.subr.mxu0 0.0
    %463 = vmatpush1.msra.mxu0 0.0
    %464 = vmatprep.subr.mxu0 0.0
    %465 = vmatpush1.msra.mxu0 0.0
    %466 = vmatprep.mubr.f32.mxu0 0.0
    %467 = vmatmul.mubr.f32.gmra.mrb[0].mxu0 %v400
    %v468 = vpop.f32.mrb[0].mxu0
    %v469 = vadd.f32 0.0, %v468
    %v470 = vpop.f32.mrb[0].mxu0
    %471 = vdwg.mxu0
    %v472 = vadd.f32 %v398, %v469
    %s473 = scalar_lea.vmem [#allocation2], 24
    %v474 = vld [vmem:[%s473 + $0x2] sm:$0x3]
    %v475 = vsel %vm132, %v365, 0
    %477 = vmatprep.subr.mxu0 0.0
    %478 = vmatpush1.msra.mxu0 %v127
    %479 = vmatprep.subr.mxu0 0.0
    %480 = vmatpush1.msra.mxu0 %v128
    %481 = vmatprep.subr.mxu0 0.0
    %482 = vmatpush1.msra.mxu0 %v129
    %483 = vmatprep.subr.mxu0 0.0
    %484 = vmatpush1.msra.mxu0 %v130
    %485 = vmatprep.subr.mxu0 0.0
    %486 = vmatpush1.msra.mxu0 0.0
    %487 = vmatprep.subr.mxu0 0.0
    %488 = vmatpush1.msra.mxu0 0.0
    %489 = vmatprep.subr.mxu0 0.0
    %490 = vmatpush1.msra.mxu0 0.0
    %491 = vmatprep.subr.mxu0 0.0
    %492 = vmatpush1.msra.mxu0 0.0
    %493 = vmatprep.subr.mxu0 0.0
    %494 = vmatpush1.msra.mxu0 0.0
    %495 = vmatprep.subr.mxu0 0.0
    %496 = vmatpush1.msra.mxu0 0.0
    %497 = vmatprep.subr.mxu0 0.0
    %498 = vmatpush1.msra.mxu0 0.0
    %499 = vmatprep.subr.mxu0 0.0
    %500 = vmatpush1.msra.mxu0 0.0
    %501 = vmatprep.subr.mxu0 0.0
    %502 = vmatpush1.msra.mxu0 0.0
    %503 = vmatprep.subr.mxu0 0.0
    %504 = vmatpush1.msra.mxu0 0.0
    %505 = vmatprep.subr.mxu0 0.0
    %506 = vmatpush1.msra.mxu0 0.0
    %507 = vmatprep.subr.mxu0 0.0
    %508 = vmatpush1.msra.mxu0 0.0
    %509 = vmatprep.subr.mxu0 0.0
    %510 = vmatpush1.msra.mxu0 0.0
    %511 = vmatprep.subr.mxu0 0.0
    %512 = vmatpush1.msra.mxu0 0.0
    %513 = vmatprep.subr.mxu0 0.0
    %514 = vmatpush1.msra.mxu0 0.0
    %515 = vmatprep.subr.mxu0 0.0
    %516 = vmatpush1.msra.mxu0 0.0
    %517 = vmatprep.subr.mxu0 0.0
    %518 = vmatpush1.msra.mxu0 0.0
    %519 = vmatprep.subr.mxu0 0.0
    %520 = vmatpush1.msra.mxu0 0.0
    %521 = vmatprep.subr.mxu0 0.0
    %522 = vmatpush1.msra.mxu0 0.0
    %523 = vmatprep.subr.mxu0 0.0
    %524 = vmatpush1.msra.mxu0 0.0
    %525 = vmatprep.subr.mxu0 0.0
    %526 = vmatpush1.msra.mxu0 0.0
    %527 = vmatprep.subr.mxu0 0.0
    %528 = vmatpush1.msra.mxu0 0.0
    %529 = vmatprep.subr.mxu0 0.0
    %530 = vmatpush1.msra.mxu0 0.0
    %531 = vmatprep.subr.mxu0 0.0
    %532 = vmatpush1.msra.mxu0 0.0
    %533 = vmatprep.subr.mxu0 0.0
    %534 = vmatpush1.msra.mxu0 0.0
    %535 = vmatprep.subr.mxu0 0.0
    %536 = vmatpush1.msra.mxu0 0.0
    %537 = vmatprep.subr.mxu0 0.0
    %538 = vmatpush1.msra.mxu0 0.0
    %539 = vmatprep.subr.mxu0 0.0
    %540 = vmatpush1.msra.mxu0 0.0
    %541 = vmatprep.mubr.f32.mxu0 0.0
    %542 = vmatmul.mubr.f32.gmra.mrb[0].mxu0 %v475
    %v543 = vpop.f32.mrb[0].mxu0
    %v544 = vadd.f32 0.0, %v543
    %v545 = vpop.f32.mrb[0].mxu0
    %546 = vdwg.mxu0
    %v547 = vadd.f32 %v474, %v544
    %v548 = vxor.u32 %v472, 2147483648
    %v549 = vmul.f32 %v548, 1.442695
    %v550 = vpow.pop %v549
    %v551 = vadd.f32 %v550, 1.0
    %v552 = vrcp.pop %v551
    %v553 = vmul.f32 1.0, %v552
    %v554 = vtanh.pop %v472
    %v557 = vunpack.c.l.s4 1983009808
    %v558 = vunpack.c.0.s8 %v557
    %v559 = vlaneseq
    %v560 = vshrl.u32 %v559, 7
    %v561 = vsub.s32 %v558, %v560
    %v562 = vrot.slane %v384, %v561
    %563 = vrot.lane.b32.xlu0 %v562, 32
    %v564 = vpop.permute.xlu0 %563
    %v566 = vmul.f32 %v553, %v564
    %568 = vrot.lane.b32.xlu0 %v554, 64
    %v569 = vpop.permute.xlu0 %568
    %v571 = vmul.f32 %v553, %v569
    %573 = vrot.lane.b32.xlu0 %v571, 32
    %v574 = vpop.permute.xlu0 %573
    %v576 = vadd.f32 %v566, %v574
    %v577 = vtanh.pop %v576
    %579 = vrot.lane.b32.xlu0 %v577, 64
    %v580 = vpop.permute.xlu0 %579
    %v582 = vmul.f32 %v553, %v580
    %v583 = vxor.u32 %v547, 2147483648
    %v584 = vmul.f32 %v583, 1.442695
    %v585 = vpow.pop %v584
    %v586 = vadd.f32 %v585, 1.0
    %v587 = vrcp.pop %v586
    %v588 = vmul.f32 1.0, %v587
    %v589 = vtanh.pop %v547
    %v592 = vunpack.c.l.s4 1983009808
    %v593 = vunpack.c.0.s8 %v592
    %v594 = vlaneseq
    %v595 = vshrl.u32 %v594, 7
    %v596 = vsub.s32 %v593, %v595
    %v597 = vrot.slane %v396, %v596
    %598 = vrot.lane.b32.xlu0 %v597, 32
    %v599 = vpop.permute.xlu0 %598
    %v601 = vmul.f32 %v588, %v599
    %603 = vrot.lane.b32.xlu0 %v589, 64
    %v604 = vpop.permute.xlu0 %603
    %v606 = vmul.f32 %v588, %v604
    %608 = vrot.lane.b32.xlu0 %v606, 32
    %v609 = vpop.permute.xlu0 %608
    %v611 = vadd.f32 %v601, %v609
    %v612 = vtanh.pop %v611
    %614 = vrot.lane.b32.xlu0 %v612, 64
    %v615 = vpop.permute.xlu0 %614
    %v617 = vmul.f32 %v588, %v615
    %vm618 = vcmp.gt.s32.totalorder %v122, 1
    %vm619 = vcmp.gt.s32.totalorder %v122, 6
    %v620 = vsel %vm618, 1, 0
    %621 = vset.pattern.permute.xlu0 0
    %622 = vperm.xlu0 %621, %v620
    %v623 = vpop.permute.xlu0 %622
    %vm624 = vcmp.eq.s32.totalorder %v623, 1
    %v627 = vunpack.c.l.s4 1983009808
    %v628 = vunpack.c.0.s8 %v627
    %v629 = vlaneseq
    %v630 = vshrl.u32 %v629, 7
    %v631 = vsub.s32 %v628, %v630
    %v632 = vrot.slane %v582, %v631
    %633 = vrot.lane.b32.xlu0 %v632, 32
    %v634 = vpop.permute.xlu0 %633
    %v636 = vsel %vm624, %v634, 0.0
    %s637 = scalar_lea.vmem [#allocation13], 2
    %638 = vst.msk [vmem:[%s637] sm:$0x3] %vm347, %v636
    %v639 = vsel %vm619, 1, 0
    %640 = vset.pattern.permute.xlu0 0
    %641 = vperm.xlu0 %640, %v639
    %v642 = vpop.permute.xlu0 %641
    %vm643 = vcmp.eq.s32.totalorder %v642, 1
    %v646 = vunpack.c.l.s4 1983009808
    %v647 = vunpack.c.0.s8 %v646
    %v648 = vlaneseq
    %v649 = vshrl.u32 %v648, 7
    %v650 = vsub.s32 %v647, %v649
    %v651 = vrot.slane %v617, %v650
    %652 = vrot.lane.b32.xlu0 %v651, 32
    %v653 = vpop.permute.xlu0 %652
    %v655 = vsel %vm643, %v653, 0.0
    %657 = vrot.lane.b32.xlu0 %v655, 32
    %v658 = vpop.permute.xlu0 %657
    %s660 = scalar_lea.vmem [#allocation13], 12
    %661 = vst.msk [vmem:[%s660] sm:$0x3] %vm371, %v658
    %v662 = vsel %vm624, %v634, %v346
    %v665 = vunpack.c.l.s4 1983009808
    %v666 = vunpack.c.0.s8 %v665
    %v667 = vlaneseq
    %v668 = vshrl.u32 %v667, 7
    %v669 = vsub.s32 %v666, %v668
    %v670 = vrot.slane %v576, %v669
    %671 = vrot.lane.b32.xlu0 %v670, 96
    %v672 = vpop.permute.xlu0 %671
    %v674 = vsel %vm624, %v672, %v384
    %v675 = vsel %vm643, %v653, %v365
    %v678 = vunpack.c.l.s4 1983009808
    %v679 = vunpack.c.0.s8 %v678
    %v680 = vlaneseq
    %v681 = vshrl.u32 %v680, 7
    %v682 = vsub.s32 %v679, %v681
    %v683 = vrot.slane %v611, %v682
    %684 = vrot.lane.b32.xlu0 %v683, 96
    %v685 = vpop.permute.xlu0 %684
    %v687 = vsel %vm643, %v685, %v396
    %s688 = scalar_lea.vmem [#allocation2], 8
    %v689 = vld [vmem:[%s688] sm:$0x3]
    %v691 = vsel %vm132, %v662, 0
    %693 = vmatprep.subr.mxu0 0.0
    %694 = vmatpush1.msra.mxu0 %v123
    %695 = vmatprep.subr.mxu0 0.0
    %696 = vmatpush1.msra.mxu0 %v124
    %697 = vmatprep.subr.mxu0 0.0
    %698 = vmatpush1.msra.mxu0 %v125
    %699 = vmatprep.subr.mxu0 0.0
    %700 = vmatpush1.msra.mxu0 %v126
    %701 = vmatprep.subr.mxu0 0.0
    %702 = vmatpush1.msra.mxu0 0.0
    %703 = vmatprep.subr.mxu0 0.0
    %704 = vmatpush1.msra.mxu0 0.0
    %705 = vmatprep.subr.mxu0 0.0
    %706 = vmatpush1.msra.mxu0 0.0
    %707 = vmatprep.subr.mxu0 0.0
    %708 = vmatpush1.msra.mxu0 0.0
    %709 = vmatprep.subr.mxu0 0.0
    %710 = vmatpush1.msra.mxu0 0.0
    %711 = vmatprep.subr.mxu0 0.0
    %712 = vmatpush1.msra.mxu0 0.0
    %713 = vmatprep.subr.mxu0 0.0
    %714 = vmatpush1.msra.mxu0 0.0
    %715 = vmatprep.subr.mxu0 0.0
    %716 = vmatpush1.msra.mxu0 0.0
    %717 = vmatprep.subr.mxu0 0.0
    %718 = vmatpush1.msra.mxu0 0.0
    %719 = vmatprep.subr.mxu0 0.0
    %720 = vmatpush1.msra.mxu0 0.0
    %721 = vmatprep.subr.mxu0 0.0
    %722 = vmatpush1.msra.mxu0 0.0
    %723 = vmatprep.subr.mxu0 0.0
    %724 = vmatpush1.msra.mxu0 0.0
    %725 = vmatprep.subr.mxu0 0.0
    %726 = vmatpush1.msra.mxu0 0.0
    %727 = vmatprep.subr.mxu0 0.0
    %728 = vmatpush1.msra.mxu0 0.0
    %729 = vmatprep.subr.mxu0 0.0
    %730 = vmatpush1.msra.mxu0 0.0
    %731 = vmatprep.subr.mxu0 0.0
    %732 = vmatpush1.msra.mxu0 0.0
    %733 = vmatprep.subr.mxu0 0.0
    %734 = vmatpush1.msra.mxu0 0.0
    %735 = vmatprep.subr.mxu0 0.0
    %736 = vmatpush1.msra.mxu0 0.0
    %737 = vmatprep.subr.mxu0 0.0
    %738 = vmatpush1.msra.mxu0 0.0
    %739 = vmatprep.subr.mxu0 0.0
    %740 = vmatpush1.msra.mxu0 0.0
    %741 = vmatprep.subr.mxu0 0.0
    %742 = vmatpush1.msra.mxu0 0.0
    %743 = vmatprep.subr.mxu0 0.0
    %744 = vmatpush1.msra.mxu0 0.0
    %745 = vmatprep.subr.mxu0 0.0
    %746 = vmatpush1.msra.mxu0 0.0
    %747 = vmatprep.subr.mxu0 0.0
    %748 = vmatpush1.msra.mxu0 0.0
    %749 = vmatprep.subr.mxu0 0.0
    %750 = vmatpush1.msra.mxu0 0.0
    %751 = vmatprep.subr.mxu0 0.0
    %752 = vmatpush1.msra.mxu0 0.0
    %753 = vmatprep.subr.mxu0 0.0
    %754 = vmatpush1.msra.mxu0 0.0
    %755 = vmatprep.subr.mxu0 0.0
    %756 = vmatpush1.msra.mxu0 0.0
    %757 = vmatprep.mubr.f32.mxu0 0.0
    %758 = vmatmul.mubr.f32.gmra.mrb[0].mxu0 %v691
    %v759 = vpop.f32.mrb[0].mxu0
    %v760 = vadd.f32 0.0, %v759
    %v761 = vpop.f32.mrb[0].mxu0
    %762 = vdwg.mxu0
    %v763 = vadd.f32 %v689, %v760
    %s764 = scalar_lea.vmem [#allocation2], 20
    %v765 = vld [vmem:[%s764 + $0x2] sm:$0x3]
    %v767 = vsel %vm132, %v675, 0
    %769 = vmatprep.subr.mxu0 0.0
    %770 = vmatpush1.msra.mxu0 %v127
    %771 = vmatprep.subr.mxu0 0.0
    %772 = vmatpush1.msra.mxu0 %v128
    %773 = vmatprep.subr.mxu0 0.0
    %774 = vmatpush1.msra.mxu0 %v129
    %775 = vmatprep.subr.mxu0 0.0
    %776 = vmatpush1.msra.mxu0 %v130
    %777 = vmatprep.subr.mxu0 0.0
    %778 = vmatpush1.msra.mxu0 0.0
    %779 = vmatprep.subr.mxu0 0.0
    %780 = vmatpush1.msra.mxu0 0.0
    %781 = vmatprep.subr.mxu0 0.0
    %782 = vmatpush1.msra.mxu0 0.0
    %783 = vmatprep.subr.mxu0 0.0
    %784 = vmatpush1.msra.mxu0 0.0
    %785 = vmatprep.subr.mxu0 0.0
    %786 = vmatpush1.msra.mxu0 0.0
    %787 = vmatprep.subr.mxu0 0.0
    %788 = vmatpush1.msra.mxu0 0.0
    %789 = vmatprep.subr.mxu0 0.0
    %790 = vmatpush1.msra.mxu0 0.0
    %791 = vmatprep.subr.mxu0 0.0
    %792 = vmatpush1.msra.mxu0 0.0
    %793 = vmatprep.subr.mxu0 0.0
    %794 = vmatpush1.msra.mxu0 0.0
    %795 = vmatprep.subr.mxu0 0.0
    %796 = vmatpush1.msra.mxu0 0.0
    %797 = vmatprep.subr.mxu0 0.0
    %798 = vmatpush1.msra.mxu0 0.0
    %799 = vmatprep.subr.mxu0 0.0
    %800 = vmatpush1.msra.mxu0 0.0
    %801 = vmatprep.subr.mxu0 0.0
    %802 = vmatpush1.msra.mxu0 0.0
    %803 = vmatprep.subr.mxu0 0.0
    %804 = vmatpush1.msra.mxu0 0.0
    %805 = vmatprep.subr.mxu0 0.0
    %806 = vmatpush1.msra.mxu0 0.0
    %807 = vmatprep.subr.mxu0 0.0
    %808 = vmatpush1.msra.mxu0 0.0
    %809 = vmatprep.subr.mxu0 0.0
    %810 = vmatpush1.msra.mxu0 0.0
    %811 = vmatprep.subr.mxu0 0.0
    %812 = vmatpush1.msra.mxu0 0.0
    %813 = vmatprep.subr.mxu0 0.0
    %814 = vmatpush1.msra.mxu0 0.0
    %815 = vmatprep.subr.mxu0 0.0
    %816 = vmatpush1.msra.mxu0 0.0
    %817 = vmatprep.subr.mxu0 0.0
    %818 = vmatpush1.msra.mxu0 0.0
    %819 = vmatprep.subr.mxu0 0.0
    %820 = vmatpush1.msra.mxu0 0.0
    %821 = vmatprep.subr.mxu0 0.0
    %822 = vmatpush1.msra.mxu0 0.0
    %823 = vmatprep.subr.mxu0 0.0
    %824 = vmatpush1.msra.mxu0 0.0
    %825 = vmatprep.subr.mxu0 0.0
    %826 = vmatpush1.msra.mxu0 0.0
    %827 = vmatprep.subr.mxu0 0.0
    %828 = vmatpush1.msra.mxu0 0.0
    %829 = vmatprep.subr.mxu0 0.0
    %830 = vmatpush1.msra.mxu0 0.0
    %831 = vmatprep.subr.mxu0 0.0
    %832 = vmatpush1.msra.mxu0 0.0
    %833 = vmatprep.mubr.f32.mxu0 0.0
    %834 = vmatmul.mubr.f32.gmra.mrb[0].mxu0 %v767
    %v835 = vpop.f32.mrb[0].mxu0
    %v836 = vadd.f32 0.0, %v835
    %v837 = vpop.f32.mrb[0].mxu0
    %838 = vdwg.mxu0
    %v839 = vadd.f32 %v765, %v836
    %v840 = vxor.u32 %v763, 2147483648
    %v841 = vmul.f32 %v840, 1.442695
    %v842 = vpow.pop %v841
    %v843 = vadd.f32 %v842, 1.0
    %v844 = vrcp.pop %v843
    %v845 = vmul.f32 1.0, %v844
    %v846 = vtanh.pop %v763
    %v849 = vunpack.c.l.s4 1983009808
    %v850 = vunpack.c.0.s8 %v849
    %v851 = vlaneseq
    %v852 = vshrl.u32 %v851, 7
    %v853 = vsub.s32 %v850, %v852
    %v854 = vrot.slane %v674, %v853
    %855 = vrot.lane.b32.xlu0 %v854, 32
    %v856 = vpop.permute.xlu0 %855
    %v858 = vmul.f32 %v845, %v856
    %860 = vrot.lane.b32.xlu0 %v846, 64
    %v861 = vpop.permute.xlu0 %860
    %v863 = vmul.f32 %v845, %v861
    %865 = vrot.lane.b32.xlu0 %v863, 32
    %v866 = vpop.permute.xlu0 %865
    %v868 = vadd.f32 %v858, %v866
    %v869 = vtanh.pop %v868
    %871 = vrot.lane.b32.xlu0 %v869, 64
    %v872 = vpop.permute.xlu0 %871
    %v874 = vmul.f32 %v845, %v872
    %v875 = vxor.u32 %v839, 2147483648
    %v876 = vmul.f32 %v875, 1.442695
    %v877 = vpow.pop %v876
    %v878 = vadd.f32 %v877, 1.0
    %v879 = vrcp.pop %v878
    %v880 = vmul.f32 1.0, %v879
    %v881 = vtanh.pop %v839
    %v884 = vunpack.c.l.s4 1983009808
    %v885 = vunpack.c.0.s8 %v884
    %v886 = vlaneseq
    %v887 = vshrl.u32 %v886, 7
    %v888 = vsub.s32 %v885, %v887
    %v889 = vrot.slane %v687, %v888
    %890 = vrot.lane.b32.xlu0 %v889, 32
    %v891 = vpop.permute.xlu0 %890
    %v893 = vmul.f32 %v880, %v891
    %895 = vrot.lane.b32.xlu0 %v881, 64
    %v896 = vpop.permute.xlu0 %895
    %v898 = vmul.f32 %v880, %v896
    %900 = vrot.lane.b32.xlu0 %v898, 32
    %v901 = vpop.permute.xlu0 %900
    %v903 = vadd.f32 %v893, %v901
    %v904 = vtanh.pop %v903
    %906 = vrot.lane.b32.xlu0 %v904, 64
    %v907 = vpop.permute.xlu0 %906
    %v909 = vmul.f32 %v880, %v907
    %vm910 = vcmp.gt.s32.totalorder %v122, 2
    %vm911 = vcmp.gt.s32.totalorder %v122, 5
    %v912 = vsel %vm910, 1, 0
    %913 = vset.pattern.permute.xlu0 0
    %914 = vperm.xlu0 %913, %v912
    %v915 = vpop.permute.xlu0 %914
    %vm916 = vcmp.eq.s32.totalorder %v915, 1
    %v919 = vunpack.c.l.s4 1983009808
    %v920 = vunpack.c.0.s8 %v919
    %v921 = vlaneseq
    %v922 = vshrl.u32 %v921, 7
    %v923 = vsub.s32 %v920, %v922
    %v924 = vrot.slane %v874, %v923
    %925 = vrot.lane.b32.xlu0 %v924, 32
    %v926 = vpop.permute.xlu0 %925
    %v928 = vsel %vm916, %v926, 0.0
    %s929 = scalar_lea.vmem [#allocation13], 4
    %930 = vst.msk [vmem:[%s929] sm:$0x3] %vm347, %v928
    %v931 = vsel %vm911, 1, 0
    %932 = vset.pattern.permute.xlu0 0
    %933 = vperm.xlu0 %932, %v931
    %v934 = vpop.permute.xlu0 %933
    %vm935 = vcmp.eq.s32.totalorder %v934, 1
    %v938 = vunpack.c.l.s4 1983009808
    %v939 = vunpack.c.0.s8 %v938
    %v940 = vlaneseq
    %v941 = vshrl.u32 %v940, 7
    %v942 = vsub.s32 %v939, %v941
    %v943 = vrot.slane %v909, %v942
    %944 = vrot.lane.b32.xlu0 %v943, 32
    %v945 = vpop.permute.xlu0 %944
    %v947 = vsel %vm935, %v945, 0.0
    %949 = vrot.lane.b32.xlu0 %v947, 32
    %v950 = vpop.permute.xlu0 %949
    %s952 = scalar_lea.vmem [#allocation13], 10
    %953 = vst.msk [vmem:[%s952] sm:$0x3] %vm371, %v950
    %v954 = vsel %vm916, %v926, %v662
    %v957 = vunpack.c.l.s4 1983009808
    %v958 = vunpack.c.0.s8 %v957
    %v959 = vlaneseq
    %v960 = vshrl.u32 %v959, 7
    %v961 = vsub.s32 %v958, %v960
    %v962 = vrot.slane %v868, %v961
    %963 = vrot.lane.b32.xlu0 %v962, 96
    %v964 = vpop.permute.xlu0 %963
    %v966 = vsel %vm916, %v964, %v674
    %v967 = vsel %vm935, %v945, %v675
    %v970 = vunpack.c.l.s4 1983009808
    %v971 = vunpack.c.0.s8 %v970
    %v972 = vlaneseq
    %v973 = vshrl.u32 %v972, 7
    %v974 = vsub.s32 %v971, %v973
    %v975 = vrot.slane %v903, %v974
    %976 = vrot.lane.b32.xlu0 %v975, 96
    %v977 = vpop.permute.xlu0 %976
    %v979 = vsel %vm935, %v977, %v687
    %s980 = scalar_lea.vmem [#allocation2], 12
    %v981 = vld [vmem:[%s980] sm:$0x3]
    %v983 = vsel %vm132, %v954, 0
    %985 = vmatprep.subr.mxu0 0.0
    %986 = vmatpush1.msra.mxu0 %v123
    %987 = vmatprep.subr.mxu0 0.0
    %988 = vmatpush1.msra.mxu0 %v124
    %989 = vmatprep.subr.mxu0 0.0
    %990 = vmatpush1.msra.mxu0 %v125
    %991 = vmatprep.subr.mxu0 0.0
    %992 = vmatpush1.msra.mxu0 %v126
    %993 = vmatprep.subr.mxu0 0.0
    %994 = vmatpush1.msra.mxu0 0.0
    %995 = vmatprep.subr.mxu0 0.0
    %996 = vmatpush1.msra.mxu0 0.0
    %997 = vmatprep.subr.mxu0 0.0
    %998 = vmatpush1.msra.mxu0 0.0
    %999 = vmatprep.subr.mxu0 0.0
    %1000 = vmatpush1.msra.mxu0 0.0
    %1001 = vmatprep.subr.mxu0 0.0
    %1002 = vmatpush1.msra.mxu0 0.0
    %1003 = vmatprep.subr.mxu0 0.0
    %1004 = vmatpush1.msra.mxu0 0.0
    %1005 = vmatprep.subr.mxu0 0.0
    %1006 = vmatpush1.msra.mxu0 0.0
    %1007 = vmatprep.subr.mxu0 0.0
    %1008 = vmatpush1.msra.mxu0 0.0
    %1009 = vmatprep.subr.mxu0 0.0
    %1010 = vmatpush1.msra.mxu0 0.0
    %1011 = vmatprep.subr.mxu0 0.0
    %1012 = vmatpush1.msra.mxu0 0.0
    %1013 = vmatprep.subr.mxu0 0.0
    %1014 = vmatpush1.msra.mxu0 0.0
    %1015 = vmatprep.subr.mxu0 0.0
    %1016 = vmatpush1.msra.mxu0 0.0
    %1017 = vmatprep.subr.mxu0 0.0
    %1018 = vmatpush1.msra.mxu0 0.0
    %1019 = vmatprep.subr.mxu0 0.0
    %1020 = vmatpush1.msra.mxu0 0.0
    %1021 = vmatprep.subr.mxu0 0.0
    %1022 = vmatpush1.msra.mxu0 0.0
    %1023 = vmatprep.subr.mxu0 0.0
    %1024 = vmatpush1.msra.mxu0 0.0
    %1025 = vmatprep.subr.mxu0 0.0
    %1026 = vmatpush1.msra.mxu0 0.0
    %1027 = vmatprep.subr.mxu0 0.0
    %1028 = vmatpush1.msra.mxu0 0.0
    %1029 = vmatprep.subr.mxu0 0.0
    %1030 = vmatpush1.msra.mxu0 0.0
    %1031 = vmatprep.subr.mxu0 0.0
    %1032 = vmatpush1.msra.mxu0 0.0
    %1033 = vmatprep.subr.mxu0 0.0
    %1034 = vmatpush1.msra.mxu0 0.0
    %1035 = vmatprep.subr.mxu0 0.0
    %1036 = vmatpush1.msra.mxu0 0.0
    %1037 = vmatprep.subr.mxu0 0.0
    %1038 = vmatpush1.msra.mxu0 0.0
    %1039 = vmatprep.subr.mxu0 0.0
    %1040 = vmatpush1.msra.mxu0 0.0
    %1041 = vmatprep.subr.mxu0 0.0
    %1042 = vmatpush1.msra.mxu0 0.0
    %1043 = vmatprep.subr.mxu0 0.0
    %1044 = vmatpush1.msra.mxu0 0.0
    %1045 = vmatprep.subr.mxu0 0.0
    %1046 = vmatpush1.msra.mxu0 0.0
    %1047 = vmatprep.subr.mxu0 0.0
    %1048 = vmatpush1.msra.mxu0 0.0
    %1049 = vmatprep.mubr.f32.mxu0 0.0
    %1050 = vmatmul.mubr.f32.gmra.mrb[0].mxu0 %v983
    %v1051 = vpop.f32.mrb[0].mxu0
    %v1052 = vadd.f32 0.0, %v1051
    %v1053 = vpop.f32.mrb[0].mxu0
    %1054 = vdwg.mxu0
    %v1055 = vadd.f32 %v981, %v1052
    %s1056 = scalar_lea.vmem [#allocation2], 16
    %v1057 = vld [vmem:[%s1056 + $0x2] sm:$0x3]
    %v1059 = vsel %vm132, %v967, 0
    %1061 = vmatprep.subr.mxu0 0.0
    %1062 = vmatpush1.msra.mxu0 %v127
    %1063 = vmatprep.subr.mxu0 0.0
    %1064 = vmatpush1.msra.mxu0 %v128
    %1065 = vmatprep.subr.mxu0 0.0
    %1066 = vmatpush1.msra.mxu0 %v129
    %1067 = vmatprep.subr.mxu0 0.0
    %1068 = vmatpush1.msra.mxu0 %v130
    %1069 = vmatprep.subr.mxu0 0.0
    %1070 = vmatpush1.msra.mxu0 0.0
    %1071 = vmatprep.subr.mxu0 0.0
    %1072 = vmatpush1.msra.mxu0 0.0
    %1073 = vmatprep.subr.mxu0 0.0
    %1074 = vmatpush1.msra.mxu0 0.0
    %1075 = vmatprep.subr.mxu0 0.0
    %1076 = vmatpush1.msra.mxu0 0.0
    %1077 = vmatprep.subr.mxu0 0.0
    %1078 = vmatpush1.msra.mxu0 0.0
    %1079 = vmatprep.subr.mxu0 0.0
    %1080 = vmatpush1.msra.mxu0 0.0
    %1081 = vmatprep.subr.mxu0 0.0
    %1082 = vmatpush1.msra.mxu0 0.0
    %1083 = vmatprep.subr.mxu0 0.0
    %1084 = vmatpush1.msra.mxu0 0.0
    %1085 = vmatprep.subr.mxu0 0.0
    %1086 = vmatpush1.msra.mxu0 0.0
    %1087 = vmatprep.subr.mxu0 0.0
    %1088 = vmatpush1.msra.mxu0 0.0
    %1089 = vmatprep.subr.mxu0 0.0
    %1090 = vmatpush1.msra.mxu0 0.0
    %1091 = vmatprep.subr.mxu0 0.0
    %1092 = vmatpush1.msra.mxu0 0.0
    %1093 = vmatprep.subr.mxu0 0.0
    %1094 = vmatpush1.msra.mxu0 0.0
    %1095 = vmatprep.subr.mxu0 0.0
    %1096 = vmatpush1.msra.mxu0 0.0
    %1097 = vmatprep.subr.mxu0 0.0
    %1098 = vmatpush1.msra.mxu0 0.0
    %1099 = vmatprep.subr.mxu0 0.0
    %1100 = vmatpush1.msra.mxu0 0.0
    %1101 = vmatprep.subr.mxu0 0.0
    %1102 = vmatpush1.msra.mxu0 0.0
    %1103 = vmatprep.subr.mxu0 0.0
    %1104 = vmatpush1.msra.mxu0 0.0
    %1105 = vmatprep.subr.mxu0 0.0
    %1106 = vmatpush1.msra.mxu0 0.0
    %1107 = vmatprep.subr.mxu0 0.0
    %1108 = vmatpush1.msra.mxu0 0.0
    %1109 = vmatprep.subr.mxu0 0.0
    %1110 = vmatpush1.msra.mxu0 0.0
    %1111 = vmatprep.subr.mxu0 0.0
    %1112 = vmatpush1.msra.mxu0 0.0
    %1113 = vmatprep.subr.mxu0 0.0
    %1114 = vmatpush1.msra.mxu0 0.0
    %1115 = vmatprep.subr.mxu0 0.0
    %1116 = vmatpush1.msra.mxu0 0.0
    %1117 = vmatprep.subr.mxu0 0.0
    %1118 = vmatpush1.msra.mxu0 0.0
    %1119 = vmatprep.subr.mxu0 0.0
    %1120 = vmatpush1.msra.mxu0 0.0
    %1121 = vmatprep.subr.mxu0 0.0
    %1122 = vmatpush1.msra.mxu0 0.0
    %1123 = vmatprep.subr.mxu0 0.0
    %1124 = vmatpush1.msra.mxu0 0.0
    %1125 = vmatprep.mubr.f32.mxu0 0.0
    %1126 = vmatmul.mubr.f32.gmra.mrb[0].mxu0 %v1059
    %v1127 = vpop.f32.mrb[0].mxu0
    %v1128 = vadd.f32 0.0, %v1127
    %v1129 = vpop.f32.mrb[0].mxu0
    %1130 = vdwg.mxu0
    %v1131 = vadd.f32 %v1057, %v1128
    %v1132 = vxor.u32 %v1055, 2147483648
    %v1133 = vmul.f32 %v1132, 1.442695
    %v1134 = vpow.pop %v1133
    %v1135 = vadd.f32 %v1134, 1.0
    %v1136 = vrcp.pop %v1135
    %v1137 = vmul.f32 1.0, %v1136
    %v1138 = vtanh.pop %v1055
    %v1141 = vunpack.c.l.s4 1983009808
    %v1142 = vunpack.c.0.s8 %v1141
    %v1143 = vlaneseq
    %v1144 = vshrl.u32 %v1143, 7
    %v1145 = vsub.s32 %v1142, %v1144
    %v1146 = vrot.slane %v966, %v1145
    %1147 = vrot.lane.b32.xlu0 %v1146, 32
    %v1148 = vpop.permute.xlu0 %1147
    %v1150 = vmul.f32 %v1137, %v1148
    %1152 = vrot.lane.b32.xlu0 %v1138, 64
    %v1153 = vpop.permute.xlu0 %1152
    %v1155 = vmul.f32 %v1137, %v1153
    %1157 = vrot.lane.b32.xlu0 %v1155, 32
    %v1158 = vpop.permute.xlu0 %1157
    %v1160 = vadd.f32 %v1150, %v1158
    %v1161 = vtanh.pop %v1160
    %1163 = vrot.lane.b32.xlu0 %v1161, 64
    %v1164 = vpop.permute.xlu0 %1163
    %v1166 = vmul.f32 %v1137, %v1164
    %v1167 = vxor.u32 %v1131, 2147483648
    %v1168 = vmul.f32 %v1167, 1.442695
    %v1169 = vpow.pop %v1168
    %v1170 = vadd.f32 %v1169, 1.0
    %v1171 = vrcp.pop %v1170
    %v1172 = vmul.f32 1.0, %v1171
    %v1173 = vtanh.pop %v1131
    %v1176 = vunpack.c.l.s4 1983009808
    %v1177 = vunpack.c.0.s8 %v1176
    %v1178 = vlaneseq
    %v1179 = vshrl.u32 %v1178, 7
    %v1180 = vsub.s32 %v1177, %v1179
    %v1181 = vrot.slane %v979, %v1180
    %1182 = vrot.lane.b32.xlu0 %v1181, 32
    %v1183 = vpop.permute.xlu0 %1182
    %v1185 = vmul.f32 %v1172, %v1183
    %1187 = vrot.lane.b32.xlu0 %v1173, 64
    %v1188 = vpop.permute.xlu0 %1187
    %v1190 = vmul.f32 %v1172, %v1188
    %1192 = vrot.lane.b32.xlu0 %v1190, 32
    %v1193 = vpop.permute.xlu0 %1192
    %v1195 = vadd.f32 %v1185, %v1193
    %v1196 = vtanh.pop %v1195
    %1198 = vrot.lane.b32.xlu0 %v1196, 64
    %v1199 = vpop.permute.xlu0 %1198
    %v1201 = vmul.f32 %v1172, %v1199
    %vm1202 = vcmp.gt.s32.totalorder %v122, 3
    %vm1203 = vcmp.gt.s32.totalorder %v122, 4
    %v1204 = vsel %vm1202, 1, 0
    %1205 = vset.pattern.permute.xlu0 0
    %1206 = vperm.xlu0 %1205, %v1204
    %v1207 = vpop.permute.xlu0 %1206
    %vm1208 = vcmp.eq.s32.totalorder %v1207, 1
    %v1211 = vunpack.c.l.s4 1983009808
    %v1212 = vunpack.c.0.s8 %v1211
    %v1213 = vlaneseq
    %v1214 = vshrl.u32 %v1213, 7
    %v1215 = vsub.s32 %v1212, %v1214
    %v1216 = vrot.slane %v1166, %v1215
    %1217 = vrot.lane.b32.xlu0 %v1216, 32
    %v1218 = vpop.permute.xlu0 %1217
    %v1220 = vsel %vm1208, %v1218, 0.0
    %s1221 = scalar_lea.vmem [#allocation13], 6
    %1222 = vst.msk [vmem:[%s1221] sm:$0x3] %vm347, %v1220
    %v1223 = vsel %vm1203, 1, 0
    %1224 = vset.pattern.permute.xlu0 0
    %1225 = vperm.xlu0 %1224, %v1223
    %v1226 = vpop.permute.xlu0 %1225
    %vm1227 = vcmp.eq.s32.totalorder %v1226, 1
    %v1230 = vunpack.c.l.s4 1983009808
    %v1231 = vunpack.c.0.s8 %v1230
    %v1232 = vlaneseq
    %v1233 = vshrl.u32 %v1232, 7
    %v1234 = vsub.s32 %v1231, %v1233
    %v1235 = vrot.slane %v1201, %v1234
    %1236 = vrot.lane.b32.xlu0 %v1235, 32
    %v1237 = vpop.permute.xlu0 %1236
    %v1239 = vsel %vm1227, %v1237, 0.0
    %1241 = vrot.lane.b32.xlu0 %v1239, 32
    %v1242 = vpop.permute.xlu0 %1241
    %s1244 = scalar_lea.vmem [#allocation13], 8
    %1245 = vst.msk [vmem:[%s1244] sm:$0x3] %vm371, %v1242
    %v1246 = vsel %vm1208, %v1218, %v954
    %v1249 = vunpack.c.l.s4 1983009808
    %v1250 = vunpack.c.0.s8 %v1249
    %v1251 = vlaneseq
    %v1252 = vshrl.u32 %v1251, 7
    %v1253 = vsub.s32 %v1250, %v1252
    %v1254 = vrot.slane %v1160, %v1253
    %1255 = vrot.lane.b32.xlu0 %v1254, 96
    %v1256 = vpop.permute.xlu0 %1255
    %v1258 = vsel %vm1208, %v1256, %v966
    %v1259 = vsel %vm1227, %v1237, %v967
    %v1262 = vunpack.c.l.s4 1983009808
    %v1263 = vunpack.c.0.s8 %v1262
    %v1264 = vlaneseq
    %v1265 = vshrl.u32 %v1264, 7
    %v1266 = vsub.s32 %v1263, %v1265
    %v1267 = vrot.slane %v1195, %v1266
    %1268 = vrot.lane.b32.xlu0 %v1267, 96
    %v1269 = vpop.permute.xlu0 %1268
    %v1271 = vsel %vm1227, %v1269, %v979
    %v1272 = vld [vmem:[%s1056] sm:$0x3]
    %v1274 = vsel %vm132, %v1246, 0
    %1276 = vmatprep.subr.mxu0 0.0
    %1277 = vmatpush1.msra.mxu0 %v123
    %1278 = vmatprep.subr.mxu0 0.0
    %1279 = vmatpush1.msra.mxu0 %v124
    %1280 = vmatprep.subr.mxu0 0.0
    %1281 = vmatpush1.msra.mxu0 %v125
    %1282 = vmatprep.subr.mxu0 0.0
    %1283 = vmatpush1.msra.mxu0 %v126
    %1284 = vmatprep.subr.mxu0 0.0
    %1285 = vmatpush1.msra.mxu0 0.0
    %1286 = vmatprep.subr.mxu0 0.0
    %1287 = vmatpush1.msra.mxu0 0.0
    %1288 = vmatprep.subr.mxu0 0.0
    %1289 = vmatpush1.msra.mxu0 0.0
    %1290 = vmatprep.subr.mxu0 0.0
    %1291 = vmatpush1.msra.mxu0 0.0
    %1292 = vmatprep.subr.mxu0 0.0
    %1293 = vmatpush1.msra.mxu0 0.0
    %1294 = vmatprep.subr.mxu0 0.0
    %1295 = vmatpush1.msra.mxu0 0.0
    %1296 = vmatprep.subr.mxu0 0.0
    %1297 = vmatpush1.msra.mxu0 0.0
    %1298 = vmatprep.subr.mxu0 0.0
    %1299 = vmatpush1.msra.mxu0 0.0
    %1300 = vmatprep.subr.mxu0 0.0
    %1301 = vmatpush1.msra.mxu0 0.0
    %1302 = vmatprep.subr.mxu0 0.0
    %1303 = vmatpush1.msra.mxu0 0.0
    %1304 = vmatprep.subr.mxu0 0.0
    %1305 = vmatpush1.msra.mxu0 0.0
    %1306 = vmatprep.subr.mxu0 0.0
    %1307 = vmatpush1.msra.mxu0 0.0
    %1308 = vmatprep.subr.mxu0 0.0
    %1309 = vmatpush1.msra.mxu0 0.0
    %1310 = vmatprep.subr.mxu0 0.0
    %1311 = vmatpush1.msra.mxu0 0.0
    %1312 = vmatprep.subr.mxu0 0.0
    %1313 = vmatpush1.msra.mxu0 0.0
    %1314 = vmatprep.subr.mxu0 0.0
    %1315 = vmatpush1.msra.mxu0 0.0
    %1316 = vmatprep.subr.mxu0 0.0
    %1317 = vmatpush1.msra.mxu0 0.0
    %1318 = vmatprep.subr.mxu0 0.0
    %1319 = vmatpush1.msra.mxu0 0.0
    %1320 = vmatprep.subr.mxu0 0.0
    %1321 = vmatpush1.msra.mxu0 0.0
    %1322 = vmatprep.subr.mxu0 0.0
    %1323 = vmatpush1.msra.mxu0 0.0
    %1324 = vmatprep.subr.mxu0 0.0
    %1325 = vmatpush1.msra.mxu0 0.0
    %1326 = vmatprep.subr.mxu0 0.0
    %1327 = vmatpush1.msra.mxu0 0.0
    %1328 = vmatprep.subr.mxu0 0.0
    %1329 = vmatpush1.msra.mxu0 0.0
    %1330 = vmatprep.subr.mxu0 0.0
    %1331 = vmatpush1.msra.mxu0 0.0
    %1332 = vmatprep.subr.mxu0 0.0
    %1333 = vmatpush1.msra.mxu0 0.0
    %1334 = vmatprep.subr.mxu0 0.0
    %1335 = vmatpush1.msra.mxu0 0.0
    %1336 = vmatprep.subr.mxu0 0.0
    %1337 = vmatpush1.msra.mxu0 0.0
    %1338 = vmatprep.subr.mxu0 0.0
    %1339 = vmatpush1.msra.mxu0 0.0
    %1340 = vmatprep.mubr.f32.mxu0 0.0
    %1341 = vmatmul.mubr.f32.gmra.mrb[0].mxu0 %v1274
    %v1342 = vpop.f32.mrb[0].mxu0
    %v1343 = vadd.f32 0.0, %v1342
    %v1344 = vpop.f32.mrb[0].mxu0
    %1345 = vdwg.mxu0
    %v1346 = vadd.f32 %v1272, %v1343
    %v1347 = vld [vmem:[%s980 + $0x2] sm:$0x3]
    %v1349 = vsel %vm132, %v1259, 0
    %1351 = vmatprep.subr.mxu0 0.0
    %1352 = vmatpush1.msra.mxu0 %v127
    %1353 = vmatprep.subr.mxu0 0.0
    %1354 = vmatpush1.msra.mxu0 %v128
    %1355 = vmatprep.subr.mxu0 0.0
    %1356 = vmatpush1.msra.mxu0 %v129
    %1357 = vmatprep.subr.mxu0 0.0
    %1358 = vmatpush1.msra.mxu0 %v130
    %1359 = vmatprep.subr.mxu0 0.0
    %1360 = vmatpush1.msra.mxu0 0.0
    %1361 = vmatprep.subr.mxu0 0.0
    %1362 = vmatpush1.msra.mxu0 0.0
    %1363 = vmatprep.subr.mxu0 0.0
    %1364 = vmatpush1.msra.mxu0 0.0
    %1365 = vmatprep.subr.mxu0 0.0
    %1366 = vmatpush1.msra.mxu0 0.0
    %1367 = vmatprep.subr.mxu0 0.0
    %1368 = vmatpush1.msra.mxu0 0.0
    %1369 = vmatprep.subr.mxu0 0.0
    %1370 = vmatpush1.msra.mxu0 0.0
    %1371 = vmatprep.subr.mxu0 0.0
    %1372 = vmatpush1.msra.mxu0 0.0
    %1373 = vmatprep.subr.mxu0 0.0
    %1374 = vmatpush1.msra.mxu0 0.0
    %1375 = vmatprep.subr.mxu0 0.0
    %1376 = vmatpush1.msra.mxu0 0.0
    %1377 = vmatprep.subr.mxu0 0.0
    %1378 = vmatpush1.msra.mxu0 0.0
    %1379 = vmatprep.subr.mxu0 0.0
    %1380 = vmatpush1.msra.mxu0 0.0
    %1381 = vmatprep.subr.mxu0 0.0
    %1382 = vmatpush1.msra.mxu0 0.0
    %1383 = vmatprep.subr.mxu0 0.0
    %1384 = vmatpush1.msra.mxu0 0.0
    %1385 = vmatprep.subr.mxu0 0.0
    %1386 = vmatpush1.msra.mxu0 0.0
    %1387 = vmatprep.subr.mxu0 0.0
    %1388 = vmatpush1.msra.mxu0 0.0
    %1389 = vmatprep.subr.mxu0 0.0
    %1390 = vmatpush1.msra.mxu0 0.0
    %1391 = vmatprep.subr.mxu0 0.0
    %1392 = vmatpush1.msra.mxu0 0.0
    %1393 = vmatprep.subr.mxu0 0.0
    %1394 = vmatpush1.msra.mxu0 0.0
    %1395 = vmatprep.subr.mxu0 0.0
    %1396 = vmatpush1.msra.mxu0 0.0
    %1397 = vmatprep.subr.mxu0 0.0
    %1398 = vmatpush1.msra.mxu0 0.0
    %1399 = vmatprep.subr.mxu0 0.0
    %1400 = vmatpush1.msra.mxu0 0.0
    %1401 = vmatprep.subr.mxu0 0.0
    %1402 = vmatpush1.msra.mxu0 0.0
    %1403 = vmatprep.subr.mxu0 0.0
    %1404 = vmatpush1.msra.mxu0 0.0
    %1405 = vmatprep.subr.mxu0 0.0
    %1406 = vmatpush1.msra.mxu0 0.0
    %1407 = vmatprep.subr.mxu0 0.0
    %1408 = vmatpush1.msra.mxu0 0.0
    %1409 = vmatprep.subr.mxu0 0.0
    %1410 = vmatpush1.msra.mxu0 0.0
    %1411 = vmatprep.subr.mxu0 0.0
    %1412 = vmatpush1.msra.mxu0 0.0
    %1413 = vmatprep.subr.mxu0 0.0
    %1414 = vmatpush1.msra.mxu0 0.0
    %1415 = vmatprep.mubr.f32.mxu0 0.0
    %1416 = vmatmul.mubr.f32.gmra.mrb[0].mxu0 %v1349
    %v1417 = vpop.f32.mrb[0].mxu0
    %v1418 = vadd.f32 0.0, %v1417
    %v1419 = vpop.f32.mrb[0].mxu0
    %1420 = vdwg.mxu0
    %v1421 = vadd.f32 %v1347, %v1418
    %v1422 = vxor.u32 %v1346, 2147483648
    %v1423 = vmul.f32 %v1422, 1.442695
    %v1424 = vpow.pop %v1423
    %v1425 = vadd.f32 %v1424, 1.0
    %v1426 = vrcp.pop %v1425
    %v1427 = vmul.f32 1.0, %v1426
    %v1428 = vtanh.pop %v1346
    %v1431 = vunpack.c.l.s4 1983009808
    %v1432 = vunpack.c.0.s8 %v1431
    %v1433 = vlaneseq
    %v1434 = vshrl.u32 %v1433, 7
    %v1435 = vsub.s32 %v1432, %v1434
    %v1436 = vrot.slane %v1258, %v1435
    %1437 = vrot.lane.b32.xlu0 %v1436, 32
    %v1438 = vpop.permute.xlu0 %1437
    %v1440 = vmul.f32 %v1427, %v1438
    %1442 = vrot.lane.b32.xlu0 %v1428, 64
    %v1443 = vpop.permute.xlu0 %1442
    %v1445 = vmul.f32 %v1427, %v1443
    %1447 = vrot.lane.b32.xlu0 %v1445, 32
    %v1448 = vpop.permute.xlu0 %1447
    %v1450 = vadd.f32 %v1440, %v1448
    %v1451 = vtanh.pop %v1450
    %1453 = vrot.lane.b32.xlu0 %v1451, 64
    %v1454 = vpop.permute.xlu0 %1453
    %v1456 = vmul.f32 %v1427, %v1454
    %v1457 = vxor.u32 %v1421, 2147483648
    %v1458 = vmul.f32 %v1457, 1.442695
    %v1459 = vpow.pop %v1458
    %v1460 = vadd.f32 %v1459, 1.0
    %v1461 = vrcp.pop %v1460
    %v1462 = vmul.f32 1.0, %v1461
    %v1463 = vtanh.pop %v1421
    %v1466 = vunpack.c.l.s4 1983009808
    %v1467 = vunpack.c.0.s8 %v1466
    %v1468 = vlaneseq
    %v1469 = vshrl.u32 %v1468, 7
    %v1470 = vsub.s32 %v1467, %v1469
    %v1471 = vrot.slane %v1271, %v1470
    %1472 = vrot.lane.b32.xlu0 %v1471, 32
    %v1473 = vpop.permute.xlu0 %1472
    %v1475 = vmul.f32 %v1462, %v1473
    %1477 = vrot.lane.b32.xlu0 %v1463, 64
    %v1478 = vpop.permute.xlu0 %1477
    %v1480 = vmul.f32 %v1462, %v1478
    %1482 = vrot.lane.b32.xlu0 %v1480, 32
    %v1483 = vpop.permute.xlu0 %1482
    %v1485 = vadd.f32 %v1475, %v1483
    %v1486 = vtanh.pop %v1485
    %1488 = vrot.lane.b32.xlu0 %v1486, 64
    %v1489 = vpop.permute.xlu0 %1488
    %v1491 = vmul.f32 %v1462, %v1489
    %v1494 = vunpack.c.l.s4 1983009808
    %v1495 = vunpack.c.0.s8 %v1494
    %v1496 = vlaneseq
    %v1497 = vshrl.u32 %v1496, 7
    %v1498 = vsub.s32 %v1495, %v1497
    %v1499 = vrot.slane %v1456, %v1498
    %1500 = vrot.lane.b32.xlu0 %v1499, 32
    %v1501 = vpop.permute.xlu0 %1500
    %v1503 = vsel %vm1227, %v1501, 0.0
    %1504 = vst.msk [vmem:[%s1244] sm:$0x3] %vm347, %v1503
    %v1507 = vunpack.c.l.s4 1983009808
    %v1508 = vunpack.c.0.s8 %v1507
    %v1509 = vlaneseq
    %v1510 = vshrl.u32 %v1509, 7
    %v1511 = vsub.s32 %v1508, %v1510
    %v1512 = vrot.slane %v1491, %v1511
    %1513 = vrot.lane.b32.xlu0 %v1512, 32
    %v1514 = vpop.permute.xlu0 %1513
    %v1516 = vsel %vm1208, %v1514, 0.0
    %1518 = vrot.lane.b32.xlu0 %v1516, 32
    %v1519 = vpop.permute.xlu0 %1518
    %1521 = vst.msk [vmem:[%s1221] sm:$0x3] %vm371, %v1519
    %v1522 = vsel %vm1227, %v1501, %v1246
    %v1525 = vunpack.c.l.s4 1983009808
    %v1526 = vunpack.c.0.s8 %v1525
    %v1527 = vlaneseq
    %v1528 = vshrl.u32 %v1527, 7
    %v1529 = vsub.s32 %v1526, %v1528
    %v1530 = vrot.slane %v1450, %v1529
    %1531 = vrot.lane.b32.xlu0 %v1530, 96
    %v1532 = vpop.permute.xlu0 %1531
    %v1534 = vsel %vm1227, %v1532, %v1258
    %v1535 = vsel %vm1208, %v1514, %v1259
    %v1538 = vunpack.c.l.s4 1983009808
    %v1539 = vunpack.c.0.s8 %v1538
    %v1540 = vlaneseq
    %v1541 = vshrl.u32 %v1540, 7
    %v1542 = vsub.s32 %v1539, %v1541
    %v1543 = vrot.slane %v1485, %v1542
    %1544 = vrot.lane.b32.xlu0 %v1543, 96
    %v1545 = vpop.permute.xlu0 %1544
    %v1547 = vsel %vm1208, %v1545, %v1271
    %v1548 = vld [vmem:[%s764] sm:$0x3]
    %v1550 = vsel %vm132, %v1522, 0
    %1552 = vmatprep.subr.mxu0 0.0
    %1553 = vmatpush1.msra.mxu0 %v123
    %1554 = vmatprep.subr.mxu0 0.0
    %1555 = vmatpush1.msra.mxu0 %v124
    %1556 = vmatprep.subr.mxu0 0.0
    %1557 = vmatpush1.msra.mxu0 %v125
    %1558 = vmatprep.subr.mxu0 0.0
    %1559 = vmatpush1.msra.mxu0 %v126
    %1560 = vmatprep.subr.mxu0 0.0
    %1561 = vmatpush1.msra.mxu0 0.0
    %1562 = vmatprep.subr.mxu0 0.0
    %1563 = vmatpush1.msra.mxu0 0.0
    %1564 = vmatprep.subr.mxu0 0.0
    %1565 = vmatpush1.msra.mxu0 0.0
    %1566 = vmatprep.subr.mxu0 0.0
    %1567 = vmatpush1.msra.mxu0 0.0
    %1568 = vmatprep.subr.mxu0 0.0
    %1569 = vmatpush1.msra.mxu0 0.0
    %1570 = vmatprep.subr.mxu0 0.0
    %1571 = vmatpush1.msra.mxu0 0.0
    %1572 = vmatprep.subr.mxu0 0.0
    %1573 = vmatpush1.msra.mxu0 0.0
    %1574 = vmatprep.subr.mxu0 0.0
    %1575 = vmatpush1.msra.mxu0 0.0
    %1576 = vmatprep.subr.mxu0 0.0
    %1577 = vmatpush1.msra.mxu0 0.0
    %1578 = vmatprep.subr.mxu0 0.0
    %1579 = vmatpush1.msra.mxu0 0.0
    %1580 = vmatprep.subr.mxu0 0.0
    %1581 = vmatpush1.msra.mxu0 0.0
    %1582 = vmatprep.subr.mxu0 0.0
    %1583 = vmatpush1.msra.mxu0 0.0
    %1584 = vmatprep.subr.mxu0 0.0
    %1585 = vmatpush1.msra.mxu0 0.0
    %1586 = vmatprep.subr.mxu0 0.0
    %1587 = vmatpush1.msra.mxu0 0.0
    %1588 = vmatprep.subr.mxu0 0.0
    %1589 = vmatpush1.msra.mxu0 0.0
    %1590 = vmatprep.subr.mxu0 0.0
    %1591 = vmatpush1.msra.mxu0 0.0
    %1592 = vmatprep.subr.mxu0 0.0
    %1593 = vmatpush1.msra.mxu0 0.0
    %1594 = vmatprep.subr.mxu0 0.0
    %1595 = vmatpush1.msra.mxu0 0.0
    %1596 = vmatprep.subr.mxu0 0.0
    %1597 = vmatpush1.msra.mxu0 0.0
    %1598 = vmatprep.subr.mxu0 0.0
    %1599 = vmatpush1.msra.mxu0 0.0
    %1600 = vmatprep.subr.mxu0 0.0
    %1601 = vmatpush1.msra.mxu0 0.0
    %1602 = vmatprep.subr.mxu0 0.0
    %1603 = vmatpush1.msra.mxu0 0.0
    %1604 = vmatprep.subr.mxu0 0.0
    %1605 = vmatpush1.msra.mxu0 0.0
    %1606 = vmatprep.subr.mxu0 0.0
    %1607 = vmatpush1.msra.mxu0 0.0
    %1608 = vmatprep.subr.mxu0 0.0
    %1609 = vmatpush1.msra.mxu0 0.0
    %1610 = vmatprep.subr.mxu0 0.0
    %1611 = vmatpush1.msra.mxu0 0.0
    %1612 = vmatprep.subr.mxu0 0.0
    %1613 = vmatpush1.msra.mxu0 0.0
    %1614 = vmatprep.subr.mxu0 0.0
    %1615 = vmatpush1.msra.mxu0 0.0
    %1616 = vmatprep.mubr.f32.mxu0 0.0
    %1617 = vmatmul.mubr.f32.gmra.mrb[0].mxu0 %v1550
    %v1618 = vpop.f32.mrb[0].mxu0
    %v1619 = vadd.f32 0.0, %v1618
    %v1620 = vpop.f32.mrb[0].mxu0
    %1621 = vdwg.mxu0
    %v1622 = vadd.f32 %v1548, %v1619
    %v1623 = vld [vmem:[%s688 + $0x2] sm:$0x3]
    %v1625 = vsel %vm132, %v1535, 0
    %1627 = vmatprep.subr.mxu0 0.0
    %1628 = vmatpush1.msra.mxu0 %v127
    %1629 = vmatprep.subr.mxu0 0.0
    %1630 = vmatpush1.msra.mxu0 %v128
    %1631 = vmatprep.subr.mxu0 0.0
    %1632 = vmatpush1.msra.mxu0 %v129
    %1633 = vmatprep.subr.mxu0 0.0
    %1634 = vmatpush1.msra.mxu0 %v130
    %1635 = vmatprep.subr.mxu0 0.0
    %1636 = vmatpush1.msra.mxu0 0.0
    %1637 = vmatprep.subr.mxu0 0.0
    %1638 = vmatpush1.msra.mxu0 0.0
    %1639 = vmatprep.subr.mxu0 0.0
    %1640 = vmatpush1.msra.mxu0 0.0
    %1641 = vmatprep.subr.mxu0 0.0
    %1642 = vmatpush1.msra.mxu0 0.0
    %1643 = vmatprep.subr.mxu0 0.0
    %1644 = vmatpush1.msra.mxu0 0.0
    %1645 = vmatprep.subr.mxu0 0.0
    %1646 = vmatpush1.msra.mxu0 0.0
    %1647 = vmatprep.subr.mxu0 0.0
    %1648 = vmatpush1.msra.mxu0 0.0
    %1649 = vmatprep.subr.mxu0 0.0
    %1650 = vmatpush1.msra.mxu0 0.0
    %1651 = vmatprep.subr.mxu0 0.0
    %1652 = vmatpush1.msra.mxu0 0.0
    %1653 = vmatprep.subr.mxu0 0.0
    %1654 = vmatpush1.msra.mxu0 0.0
    %1655 = vmatprep.subr.mxu0 0.0
    %1656 = vmatpush1.msra.mxu0 0.0
    %1657 = vmatprep.subr.mxu0 0.0
    %1658 = vmatpush1.msra.mxu0 0.0
    %1659 = vmatprep.subr.mxu0 0.0
    %1660 = vmatpush1.msra.mxu0 0.0
    %1661 = vmatprep.subr.mxu0 0.0
    %1662 = vmatpush1.msra.mxu0 0.0
    %1663 = vmatprep.subr.mxu0 0.0
    %1664 = vmatpush1.msra.mxu0 0.0
    %1665 = vmatprep.subr.mxu0 0.0
    %1666 = vmatpush1.msra.mxu0 0.0
    %1667 = vmatprep.subr.mxu0 0.0
    %1668 = vmatpush1.msra.mxu0 0.0
    %1669 = vmatprep.subr.mxu0 0.0
    %1670 = vmatpush1.msra.mxu0 0.0
    %1671 = vmatprep.subr.mxu0 0.0
    %1672 = vmatpush1.msra.mxu0 0.0
    %1673 = vmatprep.subr.mxu0 0.0
    %1674 = vmatpush1.msra.mxu0 0.0
    %1675 = vmatprep.subr.mxu0 0.0
    %1676 = vmatpush1.msra.mxu0 0.0
    %1677 = vmatprep.subr.mxu0 0.0
    %1678 = vmatpush1.msra.mxu0 0.0
    %1679 = vmatprep.subr.mxu0 0.0
    %1680 = vmatpush1.msra.mxu0 0.0
    %1681 = vmatprep.subr.mxu0 0.0
    %1682 = vmatpush1.msra.mxu0 0.0
    %1683 = vmatprep.subr.mxu0 0.0
    %1684 = vmatpush1.msra.mxu0 0.0
    %1685 = vmatprep.subr.mxu0 0.0
    %1686 = vmatpush1.msra.mxu0 0.0
    %1687 = vmatprep.subr.mxu0 0.0
    %1688 = vmatpush1.msra.mxu0 0.0
    %1689 = vmatprep.subr.mxu0 0.0
    %1690 = vmatpush1.msra.mxu0 0.0
    %1691 = vmatprep.mubr.f32.mxu0 0.0
    %1692 = vmatmul.mubr.f32.gmra.mrb[0].mxu0 %v1625
    %v1693 = vpop.f32.mrb[0].mxu0
    %v1694 = vadd.f32 0.0, %v1693
    %v1695 = vpop.f32.mrb[0].mxu0
    %1696 = vdwg.mxu0
    %v1697 = vadd.f32 %v1623, %v1694
    %v1698 = vxor.u32 %v1622, 2147483648
    %v1699 = vmul.f32 %v1698, 1.442695
    %v1700 = vpow.pop %v1699
    %v1701 = vadd.f32 %v1700, 1.0
    %v1702 = vrcp.pop %v1701
    %v1703 = vmul.f32 1.0, %v1702
    %v1704 = vtanh.pop %v1622
    %v1707 = vunpack.c.l.s4 1983009808
    %v1708 = vunpack.c.0.s8 %v1707
    %v1709 = vlaneseq
    %v1710 = vshrl.u32 %v1709, 7
    %v1711 = vsub.s32 %v1708, %v1710
    %v1712 = vrot.slane %v1534, %v1711
    %1713 = vrot.lane.b32.xlu0 %v1712, 32
    %v1714 = vpop.permute.xlu0 %1713
    %v1716 = vmul.f32 %v1703, %v1714
    %1718 = vrot.lane.b32.xlu0 %v1704, 64
    %v1719 = vpop.permute.xlu0 %1718
    %v1721 = vmul.f32 %v1703, %v1719
    %1723 = vrot.lane.b32.xlu0 %v1721, 32
    %v1724 = vpop.permute.xlu0 %1723
    %v1726 = vadd.f32 %v1716, %v1724
    %v1727 = vtanh.pop %v1726
    %1729 = vrot.lane.b32.xlu0 %v1727, 64
    %v1730 = vpop.permute.xlu0 %1729
    %v1732 = vmul.f32 %v1703, %v1730
    %v1733 = vxor.u32 %v1697, 2147483648
    %v1734 = vmul.f32 %v1733, 1.442695
    %v1735 = vpow.pop %v1734
    %v1736 = vadd.f32 %v1735, 1.0
    %v1737 = vrcp.pop %v1736
    %v1738 = vmul.f32 1.0, %v1737
    %v1739 = vtanh.pop %v1697
    %v1742 = vunpack.c.l.s4 1983009808
    %v1743 = vunpack.c.0.s8 %v1742
    %v1744 = vlaneseq
    %v1745 = vshrl.u32 %v1744, 7
    %v1746 = vsub.s32 %v1743, %v1745
    %v1747 = vrot.slane %v1547, %v1746
    %1748 = vrot.lane.b32.xlu0 %v1747, 32
    %v1749 = vpop.permute.xlu0 %1748
    %v1751 = vmul.f32 %v1738, %v1749
    %1753 = vrot.lane.b32.xlu0 %v1739, 64
    %v1754 = vpop.permute.xlu0 %1753
    %v1756 = vmul.f32 %v1738, %v1754
    %1758 = vrot.lane.b32.xlu0 %v1756, 32
    %v1759 = vpop.permute.xlu0 %1758
    %v1761 = vadd.f32 %v1751, %v1759
    %v1762 = vtanh.pop %v1761
    %1764 = vrot.lane.b32.xlu0 %v1762, 64
    %v1765 = vpop.permute.xlu0 %1764
    %v1767 = vmul.f32 %v1738, %v1765
    %v1770 = vunpack.c.l.s4 1983009808
    %v1771 = vunpack.c.0.s8 %v1770
    %v1772 = vlaneseq
    %v1773 = vshrl.u32 %v1772, 7
    %v1774 = vsub.s32 %v1771, %v1773
    %v1775 = vrot.slane %v1732, %v1774
    %1776 = vrot.lane.b32.xlu0 %v1775, 32
    %v1777 = vpop.permute.xlu0 %1776
    %v1779 = vsel %vm935, %v1777, 0.0
    %1780 = vst.msk [vmem:[%s952] sm:$0x3] %vm347, %v1779
    %v1783 = vunpack.c.l.s4 1983009808
    %v1784 = vunpack.c.0.s8 %v1783
    %v1785 = vlaneseq
    %v1786 = vshrl.u32 %v1785, 7
    %v1787 = vsub.s32 %v1784, %v1786
    %v1788 = vrot.slane %v1767, %v1787
    %1789 = vrot.lane.b32.xlu0 %v1788, 32
    %v1790 = vpop.permute.xlu0 %1789
    %v1792 = vsel %vm916, %v1790, 0.0
    %1794 = vrot.lane.b32.xlu0 %v1792, 32
    %v1795 = vpop.permute.xlu0 %1794
    %1797 = vst.msk [vmem:[%s929] sm:$0x3] %vm371, %v1795
    %v1798 = vsel %vm935, %v1777, %v1522
    %v1801 = vunpack.c.l.s4 1983009808
    %v1802 = vunpack.c.0.s8 %v1801
    %v1803 = vlaneseq
    %v1804 = vshrl.u32 %v1803, 7
    %v1805 = vsub.s32 %v1802, %v1804
    %v1806 = vrot.slane %v1726, %v1805
    %1807 = vrot.lane.b32.xlu0 %v1806, 96
    %v1808 = vpop.permute.xlu0 %1807
    %v1810 = vsel %vm935, %v1808, %v1534
    %v1811 = vsel %vm916, %v1790, %v1535
    %v1814 = vunpack.c.l.s4 1983009808
    %v1815 = vunpack.c.0.s8 %v1814
    %v1816 = vlaneseq
    %v1817 = vshrl.u32 %v1816, 7
    %v1818 = vsub.s32 %v1815, %v1817
    %v1819 = vrot.slane %v1761, %v1818
    %1820 = vrot.lane.b32.xlu0 %v1819, 96
    %v1821 = vpop.permute.xlu0 %1820
    %v1823 = vsel %vm916, %v1821, %v1547
    %v1824 = vld [vmem:[%s473] sm:$0x3]
    %v1826 = vsel %vm132, %v1798, 0
    %1828 = vmatprep.subr.mxu0 0.0
    %1829 = vmatpush1.msra.mxu0 %v123
    %1830 = vmatprep.subr.mxu0 0.0
    %1831 = vmatpush1.msra.mxu0 %v124
    %1832 = vmatprep.subr.mxu0 0.0
    %1833 = vmatpush1.msra.mxu0 %v125
    %1834 = vmatprep.subr.mxu0 0.0
    %1835 = vmatpush1.msra.mxu0 %v126
    %1836 = vmatprep.subr.mxu0 0.0
    %1837 = vmatpush1.msra.mxu0 0.0
    %1838 = vmatprep.subr.mxu0 0.0
    %1839 = vmatpush1.msra.mxu0 0.0
    %1840 = vmatprep.subr.mxu0 0.0
    %1841 = vmatpush1.msra.mxu0 0.0
    %1842 = vmatprep.subr.mxu0 0.0
    %1843 = vmatpush1.msra.mxu0 0.0
    %1844 = vmatprep.subr.mxu0 0.0
    %1845 = vmatpush1.msra.mxu0 0.0
    %1846 = vmatprep.subr.mxu0 0.0
    %1847 = vmatpush1.msra.mxu0 0.0
    %1848 = vmatprep.subr.mxu0 0.0
    %1849 = vmatpush1.msra.mxu0 0.0
    %1850 = vmatprep.subr.mxu0 0.0
    %1851 = vmatpush1.msra.mxu0 0.0
    %1852 = vmatprep.subr.mxu0 0.0
    %1853 = vmatpush1.msra.mxu0 0.0
    %1854 = vmatprep.subr.mxu0 0.0
    %1855 = vmatpush1.msra.mxu0 0.0
    %1856 = vmatprep.subr.mxu0 0.0
    %1857 = vmatpush1.msra.mxu0 0.0
    %1858 = vmatprep.subr.mxu0 0.0
    %1859 = vmatpush1.msra.mxu0 0.0
    %1860 = vmatprep.subr.mxu0 0.0
    %1861 = vmatpush1.msra.mxu0 0.0
    %1862 = vmatprep.subr.mxu0 0.0
    %1863 = vmatpush1.msra.mxu0 0.0
    %1864 = vmatprep.subr.mxu0 0.0
    %1865 = vmatpush1.msra.mxu0 0.0
    %1866 = vmatprep.subr.mxu0 0.0
    %1867 = vmatpush1.msra.mxu0 0.0
    %1868 = vmatprep.subr.mxu0 0.0
    %1869 = vmatpush1.msra.mxu0 0.0
    %1870 = vmatprep.subr.mxu0 0.0
    %1871 = vmatpush1.msra.mxu0 0.0
    %1872 = vmatprep.subr.mxu0 0.0
    %1873 = vmatpush1.msra.mxu0 0.0
    %1874 = vmatprep.subr.mxu0 0.0
    %1875 = vmatpush1.msra.mxu0 0.0
    %1876 = vmatprep.subr.mxu0 0.0
    %1877 = vmatpush1.msra.mxu0 0.0
    %1878 = vmatprep.subr.mxu0 0.0
    %1879 = vmatpush1.msra.mxu0 0.0
    %1880 = vmatprep.subr.mxu0 0.0
    %1881 = vmatpush1.msra.mxu0 0.0
    %1882 = vmatprep.subr.mxu0 0.0
    %1883 = vmatpush1.msra.mxu0 0.0
    %1884 = vmatprep.subr.mxu0 0.0
    %1885 = vmatpush1.msra.mxu0 0.0
    %1886 = vmatprep.subr.mxu0 0.0
    %1887 = vmatpush1.msra.mxu0 0.0
    %1888 = vmatprep.subr.mxu0 0.0
    %1889 = vmatpush1.msra.mxu0 0.0
    %1890 = vmatprep.subr.mxu0 0.0
    %1891 = vmatpush1.msra.mxu0 0.0
    %1892 = vmatprep.mubr.f32.mxu0 0.0
    %1893 = vmatmul.mubr.f32.gmra.mrb[0].mxu0 %v1826
    %v1894 = vpop.f32.mrb[0].mxu0
    %v1895 = vadd.f32 0.0, %v1894
    %v1896 = vpop.f32.mrb[0].mxu0
    %1897 = vdwg.mxu0
    %v1898 = vadd.f32 %v1824, %v1895
    %v1899 = vld [vmem:[%s397 + $0x2] sm:$0x3]
    %v1901 = vsel %vm132, %v1811, 0
    %1903 = vmatprep.subr.mxu0 0.0
    %1904 = vmatpush1.msra.mxu0 %v127
    %1905 = vmatprep.subr.mxu0 0.0
    %1906 = vmatpush1.msra.mxu0 %v128
    %1907 = vmatprep.subr.mxu0 0.0
    %1908 = vmatpush1.msra.mxu0 %v129
    %1909 = vmatprep.subr.mxu0 0.0
    %1910 = vmatpush1.msra.mxu0 %v130
    %1911 = vmatprep.subr.mxu0 0.0
    %1912 = vmatpush1.msra.mxu0 0.0
    %1913 = vmatprep.subr.mxu0 0.0
    %1914 = vmatpush1.msra.mxu0 0.0
    %1915 = vmatprep.subr.mxu0 0.0
    %1916 = vmatpush1.msra.mxu0 0.0
    %1917 = vmatprep.subr.mxu0 0.0
    %1918 = vmatpush1.msra.mxu0 0.0
    %1919 = vmatprep.subr.mxu0 0.0
    %1920 = vmatpush1.msra.mxu0 0.0
    %1921 = vmatprep.subr.mxu0 0.0
    %1922 = vmatpush1.msra.mxu0 0.0
    %1923 = vmatprep.subr.mxu0 0.0
    %1924 = vmatpush1.msra.mxu0 0.0
    %1925 = vmatprep.subr.mxu0 0.0
    %1926 = vmatpush1.msra.mxu0 0.0
    %1927 = vmatprep.subr.mxu0 0.0
    %1928 = vmatpush1.msra.mxu0 0.0
    %1929 = vmatprep.subr.mxu0 0.0
    %1930 = vmatpush1.msra.mxu0 0.0
    %1931 = vmatprep.subr.mxu0 0.0
    %1932 = vmatpush1.msra.mxu0 0.0
    %1933 = vmatprep.subr.mxu0 0.0
    %1934 = vmatpush1.msra.mxu0 0.0
    %1935 = vmatprep.subr.mxu0 0.0
    %1936 = vmatpush1.msra.mxu0 0.0
    %1937 = vmatprep.subr.mxu0 0.0
    %1938 = vmatpush1.msra.mxu0 0.0
    %1939 = vmatprep.subr.mxu0 0.0
    %1940 = vmatpush1.msra.mxu0 0.0
    %1941 = vmatprep.subr.mxu0 0.0
    %1942 = vmatpush1.msra.mxu0 0.0
    %1943 = vmatprep.subr.mxu0 0.0
    %1944 = vmatpush1.msra.mxu0 0.0
    %1945 = vmatprep.subr.mxu0 0.0
    %1946 = vmatpush1.msra.mxu0 0.0
    %1947 = vmatprep.subr.mxu0 0.0
    %1948 = vmatpush1.msra.mxu0 0.0
    %1949 = vmatprep.subr.mxu0 0.0
    %1950 = vmatpush1.msra.mxu0 0.0
    %1951 = vmatprep.subr.mxu0 0.0
    %1952 = vmatpush1.msra.mxu0 0.0
    %1953 = vmatprep.subr.mxu0 0.0
    %1954 = vmatpush1.msra.mxu0 0.0
    %1955 = vmatprep.subr.mxu0 0.0
    %1956 = vmatpush1.msra.mxu0 0.0
    %1957 = vmatprep.subr.mxu0 0.0
    %1958 = vmatpush1.msra.mxu0 0.0
    %1959 = vmatprep.subr.mxu0 0.0
    %1960 = vmatpush1.msra.mxu0 0.0
    %1961 = vmatprep.subr.mxu0 0.0
    %1962 = vmatpush1.msra.mxu0 0.0
    %1963 = vmatprep.subr.mxu0 0.0
    %1964 = vmatpush1.msra.mxu0 0.0
    %1965 = vmatprep.subr.mxu0 0.0
    %1966 = vmatpush1.msra.mxu0 0.0
    %1967 = vmatprep.mubr.f32.mxu0 0.0
    %1968 = vmatmul.mubr.f32.gmra.mrb[0].mxu0 %v1901
    %v1969 = vpop.f32.mrb[0].mxu0
    %v1970 = vadd.f32 0.0, %v1969
    %v1971 = vpop.f32.mrb[0].mxu0
    %1972 = vdwg.mxu0
    %v1973 = vadd.f32 %v1899, %v1970
    %v1974 = vxor.u32 %v1898, 2147483648
    %v1975 = vmul.f32 %v1974, 1.442695
    %v1976 = vpow.pop %v1975
    %v1977 = vadd.f32 %v1976, 1.0
    %v1978 = vrcp.pop %v1977
    %v1979 = vmul.f32 1.0, %v1978
    %v1980 = vtanh.pop %v1898
    %v1983 = vunpack.c.l.s4 1983009808
    %v1984 = vunpack.c.0.s8 %v1983
    %v1985 = vlaneseq
    %v1986 = vshrl.u32 %v1985, 7
    %v1987 = vsub.s32 %v1984, %v1986
    %v1988 = vrot.slane %v1810, %v1987
    %1989 = vrot.lane.b32.xlu0 %v1988, 32
    %v1990 = vpop.permute.xlu0 %1989
    %v1992 = vmul.f32 %v1979, %v1990
    %1994 = vrot.lane.b32.xlu0 %v1980, 64
    %v1995 = vpop.permute.xlu0 %1994
    %v1997 = vmul.f32 %v1979, %v1995
    %1999 = vrot.lane.b32.xlu0 %v1997, 32
    %v2000 = vpop.permute.xlu0 %1999
    %v2002 = vadd.f32 %v1992, %v2000
    %v2003 = vtanh.pop %v2002
    %2005 = vrot.lane.b32.xlu0 %v2003, 64
    %v2006 = vpop.permute.xlu0 %2005
    %v2008 = vmul.f32 %v1979, %v2006
    %v2009 = vxor.u32 %v1973, 2147483648
    %v2010 = vmul.f32 %v2009, 1.442695
    %v2011 = vpow.pop %v2010
    %v2012 = vadd.f32 %v2011, 1.0
    %v2013 = vrcp.pop %v2012
    %v2014 = vmul.f32 1.0, %v2013
    %v2015 = vtanh.pop %v1973
    %v2018 = vunpack.c.l.s4 1983009808
    %v2019 = vunpack.c.0.s8 %v2018
    %v2020 = vlaneseq
    %v2021 = vshrl.u32 %v2020, 7
    %v2022 = vsub.s32 %v2019, %v2021
    %v2023 = vrot.slane %v1823, %v2022
    %2024 = vrot.lane.b32.xlu0 %v2023, 32
    %v2025 = vpop.permute.xlu0 %2024
    %v2027 = vmul.f32 %v2014, %v2025
    %2029 = vrot.lane.b32.xlu0 %v2015, 64
    %v2030 = vpop.permute.xlu0 %2029
    %v2032 = vmul.f32 %v2014, %v2030
    %2034 = vrot.lane.b32.xlu0 %v2032, 32
    %v2035 = vpop.permute.xlu0 %2034
    %v2037 = vadd.f32 %v2027, %v2035
    %v2038 = vtanh.pop %v2037
    %2040 = vrot.lane.b32.xlu0 %v2038, 64
    %v2041 = vpop.permute.xlu0 %2040
    %v2043 = vmul.f32 %v2014, %v2041
    %v2046 = vunpack.c.l.s4 1983009808
    %v2047 = vunpack.c.0.s8 %v2046
    %v2048 = vlaneseq
    %v2049 = vshrl.u32 %v2048, 7
    %v2050 = vsub.s32 %v2047, %v2049
    %v2051 = vrot.slane %v2008, %v2050
    %2052 = vrot.lane.b32.xlu0 %v2051, 32
    %v2053 = vpop.permute.xlu0 %2052
    %v2055 = vsel %vm643, %v2053, 0.0
    %2056 = vst.msk [vmem:[%s660] sm:$0x3] %vm347, %v2055
    %v2059 = vunpack.c.l.s4 1983009808
    %v2060 = vunpack.c.0.s8 %v2059
    %v2061 = vlaneseq
    %v2062 = vshrl.u32 %v2061, 7
    %v2063 = vsub.s32 %v2060, %v2062
    %v2064 = vrot.slane %v2043, %v2063
    %2065 = vrot.lane.b32.xlu0 %v2064, 32
    %v2066 = vpop.permute.xlu0 %2065
    %v2068 = vsel %vm624, %v2066, 0.0
    %2070 = vrot.lane.b32.xlu0 %v2068, 32
    %v2071 = vpop.permute.xlu0 %2070
    %2073 = vst.msk [vmem:[%s637] sm:$0x3] %vm371, %v2071
    %v2074 = vsel %vm643, %v2053, %v1798
    %v2077 = vunpack.c.l.s4 1983009808
    %v2078 = vunpack.c.0.s8 %v2077
    %v2079 = vlaneseq
    %v2080 = vshrl.u32 %v2079, 7
    %v2081 = vsub.s32 %v2078, %v2080
    %v2082 = vrot.slane %v2002, %v2081
    %2083 = vrot.lane.b32.xlu0 %v2082, 96
    %v2084 = vpop.permute.xlu0 %2083
    %v2086 = vsel %vm643, %v2084, %v1810
    %v2087 = vsel %vm624, %v2066, %v1811
    %v2090 = vunpack.c.l.s4 1983009808
    %v2091 = vunpack.c.0.s8 %v2090
    %v2092 = vlaneseq
    %v2093 = vshrl.u32 %v2092, 7
    %v2094 = vsub.s32 %v2091, %v2093
    %v2095 = vrot.slane %v2037, %v2094
    %2096 = vrot.lane.b32.xlu0 %v2095, 96
    %v2097 = vpop.permute.xlu0 %2096
    %v2099 = vsel %vm624, %v2097, %v1823
    %v2100 = vld [vmem:[%s207] sm:$0x3]
    %v2102 = vsel %vm132, %v2074, 0
    %2104 = vmatprep.subr.mxu0 0.0
    %2105 = vmatpush1.msra.mxu0 %v123
    %2106 = vmatprep.subr.mxu0 0.0
    %2107 = vmatpush1.msra.mxu0 %v124
    %2108 = vmatprep.subr.mxu0 0.0
    %2109 = vmatpush1.msra.mxu0 %v125
    %2110 = vmatprep.subr.mxu0 0.0
    %2111 = vmatpush1.msra.mxu0 %v126
    %2112 = vmatprep.subr.mxu0 0.0
    %2113 = vmatpush1.msra.mxu0 0.0
    %2114 = vmatprep.subr.mxu0 0.0
    %2115 = vmatpush1.msra.mxu0 0.0
    %2116 = vmatprep.subr.mxu0 0.0
    %2117 = vmatpush1.msra.mxu0 0.0
    %2118 = vmatprep.subr.mxu0 0.0
    %2119 = vmatpush1.msra.mxu0 0.0
    %2120 = vmatprep.subr.mxu0 0.0
    %2121 = vmatpush1.msra.mxu0 0.0
    %2122 = vmatprep.subr.mxu0 0.0
    %2123 = vmatpush1.msra.mxu0 0.0
    %2124 = vmatprep.subr.mxu0 0.0
    %2125 = vmatpush1.msra.mxu0 0.0
    %2126 = vmatprep.subr.mxu0 0.0
    %2127 = vmatpush1.msra.mxu0 0.0
    %2128 = vmatprep.subr.mxu0 0.0
    %2129 = vmatpush1.msra.mxu0 0.0
    %2130 = vmatprep.subr.mxu0 0.0
    %2131 = vmatpush1.msra.mxu0 0.0
    %2132 = vmatprep.subr.mxu0 0.0
    %2133 = vmatpush1.msra.mxu0 0.0
    %2134 = vmatprep.subr.mxu0 0.0
    %2135 = vmatpush1.msra.mxu0 0.0
    %2136 = vmatprep.subr.mxu0 0.0
    %2137 = vmatpush1.msra.mxu0 0.0
    %2138 = vmatprep.subr.mxu0 0.0
    %2139 = vmatpush1.msra.mxu0 0.0
    %2140 = vmatprep.subr.mxu0 0.0
    %2141 = vmatpush1.msra.mxu0 0.0
    %2142 = vmatprep.subr.mxu0 0.0
    %2143 = vmatpush1.msra.mxu0 0.0
    %2144 = vmatprep.subr.mxu0 0.0
    %2145 = vmatpush1.msra.mxu0 0.0
    %2146 = vmatprep.subr.mxu0 0.0
    %2147 = vmatpush1.msra.mxu0 0.0
    %2148 = vmatprep.subr.mxu0 0.0
    %2149 = vmatpush1.msra.mxu0 0.0
    %2150 = vmatprep.subr.mxu0 0.0
    %2151 = vmatpush1.msra.mxu0 0.0
    %2152 = vmatprep.subr.mxu0 0.0
    %2153 = vmatpush1.msra.mxu0 0.0
    %2154 = vmatprep.subr.mxu0 0.0
    %2155 = vmatpush1.msra.mxu0 0.0
    %2156 = vmatprep.subr.mxu0 0.0
    %2157 = vmatpush1.msra.mxu0 0.0
    %2158 = vmatprep.subr.mxu0 0.0
    %2159 = vmatpush1.msra.mxu0 0.0
    %2160 = vmatprep.subr.mxu0 0.0
    %2161 = vmatpush1.msra.mxu0 0.0
    %2162 = vmatprep.subr.mxu0 0.0
    %2163 = vmatpush1.msra.mxu0 0.0
    %2164 = vmatprep.subr.mxu0 0.0
    %2165 = vmatpush1.msra.mxu0 0.0
    %2166 = vmatprep.subr.mxu0 0.0
    %2167 = vmatpush1.msra.mxu0 0.0
    %2168 = vmatprep.mubr.f32.mxu0 0.0
    %2169 = vmatmul.mubr.f32.gmra.mrb[0].mxu0 %v2102
    %v2170 = vpop.f32.mrb[0].mxu0
    %v2171 = vadd.f32 0.0, %v2170
    %v2172 = vpop.f32.mrb[0].mxu0
    %2173 = vdwg.mxu0
    %v2174 = vadd.f32 %v2100, %v2171
    %v2175 = vld [vmem:[#allocation2 + $0x2] sm:$0x3]
    %v2177 = vsel %vm132, %v2087, 0
    %2179 = vmatprep.subr.mxu0 0.0
    %2180 = vmatpush1.msra.mxu0 %v127
    %2181 = vmatprep.subr.mxu0 0.0
    %2182 = vmatpush1.msra.mxu0 %v128
    %2183 = vmatprep.subr.mxu0 0.0
    %2184 = vmatpush1.msra.mxu0 %v129
    %2185 = vmatprep.subr.mxu0 0.0
    %2186 = vmatpush1.msra.mxu0 %v130
    %2187 = vmatprep.subr.mxu0 0.0
    %2188 = vmatpush1.msra.mxu0 0.0
    %2189 = vmatprep.subr.mxu0 0.0
    %2190 = vmatpush1.msra.mxu0 0.0
    %2191 = vmatprep.subr.mxu0 0.0
    %2192 = vmatpush1.msra.mxu0 0.0
    %2193 = vmatprep.subr.mxu0 0.0
    %2194 = vmatpush1.msra.mxu0 0.0
    %2195 = vmatprep.subr.mxu0 0.0
    %2196 = vmatpush1.msra.mxu0 0.0
    %2197 = vmatprep.subr.mxu0 0.0
    %2198 = vmatpush1.msra.mxu0 0.0
    %2199 = vmatprep.subr.mxu0 0.0
    %2200 = vmatpush1.msra.mxu0 0.0
    %2201 = vmatprep.subr.mxu0 0.0
    %2202 = vmatpush1.msra.mxu0 0.0
    %2203 = vmatprep.subr.mxu0 0.0
    %2204 = vmatpush1.msra.mxu0 0.0
    %2205 = vmatprep.subr.mxu0 0.0
    %2206 = vmatpush1.msra.mxu0 0.0
    %2207 = vmatprep.subr.mxu0 0.0
    %2208 = vmatpush1.msra.mxu0 0.0
    %2209 = vmatprep.subr.mxu0 0.0
    %2210 = vmatpush1.msra.mxu0 0.0
    %2211 = vmatprep.subr.mxu0 0.0
    %2212 = vmatpush1.msra.mxu0 0.0
    %2213 = vmatprep.subr.mxu0 0.0
    %2214 = vmatpush1.msra.mxu0 0.0
    %2215 = vmatprep.subr.mxu0 0.0
    %2216 = vmatpush1.msra.mxu0 0.0
    %2217 = vmatprep.subr.mxu0 0.0
    %2218 = vmatpush1.msra.mxu0 0.0
    %2219 = vmatprep.subr.mxu0 0.0
    %2220 = vmatpush1.msra.mxu0 0.0
    %2221 = vmatprep.subr.mxu0 0.0
    %2222 = vmatpush1.msra.mxu0 0.0
    %2223 = vmatprep.subr.mxu0 0.0
    %2224 = vmatpush1.msra.mxu0 0.0
    %2225 = vmatprep.subr.mxu0 0.0
    %2226 = vmatpush1.msra.mxu0 0.0
    %2227 = vmatprep.subr.mxu0 0.0
    %2228 = vmatpush1.msra.mxu0 0.0
    %2229 = vmatprep.subr.mxu0 0.0
    %2230 = vmatpush1.msra.mxu0 0.0
    %2231 = vmatprep.subr.mxu0 0.0
    %2232 = vmatpush1.msra.mxu0 0.0
    %2233 = vmatprep.subr.mxu0 0.0
    %2234 = vmatpush1.msra.mxu0 0.0
    %2235 = vmatprep.subr.mxu0 0.0
    %2236 = vmatpush1.msra.mxu0 0.0
    %2237 = vmatprep.subr.mxu0 0.0
    %2238 = vmatpush1.msra.mxu0 0.0
    %2239 = vmatprep.subr.mxu0 0.0
    %2240 = vmatpush1.msra.mxu0 0.0
    %2241 = vmatprep.subr.mxu0 0.0
    %2242 = vmatpush1.msra.mxu0 0.0
    %2243 = vmatprep.mubr.f32.mxu0 0.0
    %2244 = vmatmul.mubr.f32.gmra.mrb[0].mxu0 %v2177
    %v2245 = vpop.f32.mrb[0].mxu0
    %v2246 = vadd.f32 0.0, %v2245
    %v2247 = vpop.f32.mrb[0].mxu0
    %2248 = vdwg.mxu0
    %v2249 = vadd.f32 %v2175, %v2246
    %v2250 = vxor.u32 %v2174, 2147483648
    %v2251 = vmul.f32 %v2250, 1.442695
    %v2252 = vpow.pop %v2251
    %v2253 = vadd.f32 %v2252, 1.0
    %v2254 = vrcp.pop %v2253
    %v2255 = vmul.f32 1.0, %v2254
    %v2256 = vtanh.pop %v2174
    %v2259 = vunpack.c.l.s4 1983009808
    %v2260 = vunpack.c.0.s8 %v2259
    %v2261 = vlaneseq
    %v2262 = vshrl.u32 %v2261, 7
    %v2263 = vsub.s32 %v2260, %v2262
    %v2264 = vrot.slane %v2086, %v2263
    %2265 = vrot.lane.b32.xlu0 %v2264, 32
    %v2266 = vpop.permute.xlu0 %2265
    %v2268 = vmul.f32 %v2255, %v2266
    %2270 = vrot.lane.b32.xlu0 %v2256, 64
    %v2271 = vpop.permute.xlu0 %2270
    %v2273 = vmul.f32 %v2255, %v2271
    %2275 = vrot.lane.b32.xlu0 %v2273, 32
    %v2276 = vpop.permute.xlu0 %2275
    %v2278 = vadd.f32 %v2268, %v2276
    %v2279 = vtanh.pop %v2278
    %2281 = vrot.lane.b32.xlu0 %v2279, 64
    %v2282 = vpop.permute.xlu0 %2281
    %v2284 = vmul.f32 %v2255, %v2282
    %v2285 = vxor.u32 %v2249, 2147483648
    %v2286 = vmul.f32 %v2285, 1.442695
    %v2287 = vpow.pop %v2286
    %v2288 = vadd.f32 %v2287, 1.0
    %v2289 = vrcp.pop %v2288
    %v2290 = vmul.f32 1.0, %v2289
    %v2291 = vtanh.pop %v2249
    %v2294 = vunpack.c.l.s4 1983009808
    %v2295 = vunpack.c.0.s8 %v2294
    %v2296 = vlaneseq
    %v2297 = vshrl.u32 %v2296, 7
    %v2298 = vsub.s32 %v2295, %v2297
    %v2299 = vrot.slane %v2099, %v2298
    %2300 = vrot.lane.b32.xlu0 %v2299, 32
    %v2301 = vpop.permute.xlu0 %2300
    %v2303 = vmul.f32 %v2290, %v2301
    %2305 = vrot.lane.b32.xlu0 %v2291, 64
    %v2306 = vpop.permute.xlu0 %2305
    %v2308 = vmul.f32 %v2290, %v2306
    %2310 = vrot.lane.b32.xlu0 %v2308, 32
    %v2311 = vpop.permute.xlu0 %2310
    %v2313 = vadd.f32 %v2303, %v2311
    %v2314 = vtanh.pop %v2313
    %2316 = vrot.lane.b32.xlu0 %v2314, 64
    %v2317 = vpop.permute.xlu0 %2316
    %v2319 = vmul.f32 %v2290, %v2317
    %v2322 = vunpack.c.l.s4 1983009808
    %v2323 = vunpack.c.0.s8 %v2322
    %v2324 = vlaneseq
    %v2325 = vshrl.u32 %v2324, 7
    %v2326 = vsub.s32 %v2323, %v2325
    %v2327 = vrot.slane %v2284, %v2326
    %2328 = vrot.lane.b32.xlu0 %v2327, 32
    %v2329 = vpop.permute.xlu0 %2328
    %v2331 = vsel %vm353, %v2329, 0.0
    %2332 = vst.msk [vmem:[%s370] sm:$0x3] %vm347, %v2331
    %v2335 = vunpack.c.l.s4 1983009808
    %v2336 = vunpack.c.0.s8 %v2335
    %v2337 = vlaneseq
    %v2338 = vshrl.u32 %v2337, 7
    %v2339 = vsub.s32 %v2336, %v2338
    %v2340 = vrot.slane %v2319, %v2339
    %2341 = vrot.lane.b32.xlu0 %v2340, 32
    %v2342 = vpop.permute.xlu0 %2341
    %v2344 = vsel %vm334, %v2342, 0.0
    %2346 = vrot.lane.b32.xlu0 %v2344, 32
    %v2347 = vpop.permute.xlu0 %2346
    %2349 = vst.msk [vmem:[#allocation13] sm:$0x3] %vm371, %v2347
    %v2350 = vsel %vm353, %v2329, %v2074
    %v2353 = vunpack.c.l.s4 1983009808
    %v2354 = vunpack.c.0.s8 %v2353
    %v2355 = vlaneseq
    %v2356 = vshrl.u32 %v2355, 7
    %v2357 = vsub.s32 %v2354, %v2356
    %v2358 = vrot.slane %v2278, %v2357
    %2359 = vrot.lane.b32.xlu0 %v2358, 96
    %v2360 = vpop.permute.xlu0 %2359
    %v2362 = vsel %vm353, %v2360, %v2086
    %v2363 = vsel %vm334, %v2342, %v2087
    %v2366 = vunpack.c.l.s4 1983009808
    %v2367 = vunpack.c.0.s8 %v2366
    %v2368 = vlaneseq
    %v2369 = vshrl.u32 %v2368, 7
    %v2370 = vsub.s32 %v2367, %v2369
    %v2371 = vrot.slane %v2313, %v2370
    %2372 = vrot.lane.b32.xlu0 %v2371, 96
    %v2373 = vpop.permute.xlu0 %2372
    %v2375 = vsel %vm334, %v2373, %v2099
    %v2376 = vld [vmem:[#allocation8] sm:$0xff]
    %v2377 = vld [vmem:[#allocation8 + $0x8] sm:$0xff]
    %v2378 = vld [vmem:[#allocation8 + $0x10] sm:$0xff]
    %v2379 = vld [vmem:[#allocation8 + $0x18] sm:$0xff]
    %v2380 = vld [vmem:[#allocation10] sm:$0xff]
    %v2381 = vld [vmem:[#allocation10 + $0x8] sm:$0xff]
    %v2382 = vld [vmem:[#allocation10 + $0x10] sm:$0xff]
    %v2383 = vld [vmem:[#allocation10 + $0x18] sm:$0xff]
    %v2385 = vsel %vm132, %v2375, 0
    %2387 = vmatprep.subr.mxu0 0.0
    %2388 = vmatpush1.msra.mxu0 %v2380
    %2389 = vmatprep.subr.mxu0 0.0
    %2390 = vmatpush1.msra.mxu0 %v2381
    %2391 = vmatprep.subr.mxu0 0.0
    %2392 = vmatpush1.msra.mxu0 %v2382
    %2393 = vmatprep.subr.mxu0 0.0
    %2394 = vmatpush1.msra.mxu0 %v2383
    %2395 = vmatprep.subr.mxu0 0.0
    %2396 = vmatpush1.msra.mxu0 0.0
    %2397 = vmatprep.subr.mxu0 0.0
    %2398 = vmatpush1.msra.mxu0 0.0
    %2399 = vmatprep.subr.mxu0 0.0
    %2400 = vmatpush1.msra.mxu0 0.0
    %2401 = vmatprep.subr.mxu0 0.0
    %2402 = vmatpush1.msra.mxu0 0.0
    %2403 = vmatprep.subr.mxu0 0.0
    %2404 = vmatpush1.msra.mxu0 0.0
    %2405 = vmatprep.subr.mxu0 0.0
    %2406 = vmatpush1.msra.mxu0 0.0
    %2407 = vmatprep.subr.mxu0 0.0
    %2408 = vmatpush1.msra.mxu0 0.0
    %2409 = vmatprep.subr.mxu0 0.0
    %2410 = vmatpush1.msra.mxu0 0.0
    %2411 = vmatprep.subr.mxu0 0.0
    %2412 = vmatpush1.msra.mxu0 0.0
    %2413 = vmatprep.subr.mxu0 0.0
    %2414 = vmatpush1.msra.mxu0 0.0
    %2415 = vmatprep.subr.mxu0 0.0
    %2416 = vmatpush1.msra.mxu0 0.0
    %2417 = vmatprep.subr.mxu0 0.0
    %2418 = vmatpush1.msra.mxu0 0.0
    %2419 = vmatprep.subr.mxu0 0.0
    %2420 = vmatpush1.msra.mxu0 0.0
    %2421 = vmatprep.subr.mxu0 0.0
    %2422 = vmatpush1.msra.mxu0 0.0
    %2423 = vmatprep.subr.mxu0 0.0
    %2424 = vmatpush1.msra.mxu0 0.0
    %2425 = vmatprep.subr.mxu0 0.0
    %2426 = vmatpush1.msra.mxu0 0.0
    %2427 = vmatprep.subr.mxu0 0.0
    %2428 = vmatpush1.msra.mxu0 0.0
    %2429 = vmatprep.subr.mxu0 0.0
    %2430 = vmatpush1.msra.mxu0 0.0
    %2431 = vmatprep.subr.mxu0 0.0
    %2432 = vmatpush1.msra.mxu0 0.0
    %2433 = vmatprep.subr.mxu0 0.0
    %2434 = vmatpush1.msra.mxu0 0.0
    %2435 = vmatprep.subr.mxu0 0.0
    %2436 = vmatpush1.msra.mxu0 0.0
    %2437 = vmatprep.subr.mxu0 0.0
    %2438 = vmatpush1.msra.mxu0 0.0
    %2439 = vmatprep.subr.mxu0 0.0
    %2440 = vmatpush1.msra.mxu0 0.0
    %2441 = vmatprep.subr.mxu0 0.0
    %2442 = vmatpush1.msra.mxu0 0.0
    %2443 = vmatprep.subr.mxu0 0.0
    %2444 = vmatpush1.msra.mxu0 0.0
    %2445 = vmatprep.subr.mxu0 0.0
    %2446 = vmatpush1.msra.mxu0 0.0
    %2447 = vmatprep.subr.mxu0 0.0
    %2448 = vmatpush1.msra.mxu0 0.0
    %2449 = vmatprep.subr.mxu0 0.0
    %2450 = vmatpush1.msra.mxu0 0.0
    %2451 = vmatprep.mubr.f32.mxu0 0.0
    %2452 = vmatmul.mubr.f32.gmra.mrb[0].mxu0 %v2385
    %v2453 = vpop.f32.mrb[0].mxu0
    %v2454 = vadd.f32 0.0, %v2453
    %v2455 = vpop.f32.mrb[0].mxu0
    %2456 = vdwg.mxu0
    %v2458 = vsel %vm132, %v2362, 0
    %2460 = vmatprep.subr.mxu0 0.0
    %2461 = vmatpush1.msra.mxu0 %v2376
    %2462 = vmatprep.subr.mxu0 0.0
    %2463 = vmatpush1.msra.mxu0 %v2377
    %2464 = vmatprep.subr.mxu0 0.0
    %2465 = vmatpush1.msra.mxu0 %v2378
    %2466 = vmatprep.subr.mxu0 0.0
    %2467 = vmatpush1.msra.mxu0 %v2379
    %2468 = vmatprep.subr.mxu0 0.0
    %2469 = vmatpush1.msra.mxu0 0.0
    %2470 = vmatprep.subr.mxu0 0.0
    %2471 = vmatpush1.msra.mxu0 0.0
    %2472 = vmatprep.subr.mxu0 0.0
    %2473 = vmatpush1.msra.mxu0 0.0
    %2474 = vmatprep.subr.mxu0 0.0
    %2475 = vmatpush1.msra.mxu0 0.0
    %2476 = vmatprep.subr.mxu0 0.0
    %2477 = vmatpush1.msra.mxu0 0.0
    %2478 = vmatprep.subr.mxu0 0.0
    %2479 = vmatpush1.msra.mxu0 0.0
    %2480 = vmatprep.subr.mxu0 0.0
    %2481 = vmatpush1.msra.mxu0 0.0
    %2482 = vmatprep.subr.mxu0 0.0
    %2483 = vmatpush1.msra.mxu0 0.0
    %2484 = vmatprep.subr.mxu0 0.0
    %2485 = vmatpush1.msra.mxu0 0.0
    %2486 = vmatprep.subr.mxu0 0.0
    %2487 = vmatpush1.msra.mxu0 0.0
    %2488 = vmatprep.subr.mxu0 0.0
    %2489 = vmatpush1.msra.mxu0 0.0
    %2490 = vmatprep.subr.mxu0 0.0
    %2491 = vmatpush1.msra.mxu0 0.0
    %2492 = vmatprep.subr.mxu0 0.0
    %2493 = vmatpush1.msra.mxu0 0.0
    %2494 = vmatprep.subr.mxu0 0.0
    %2495 = vmatpush1.msra.mxu0 0.0
    %2496 = vmatprep.subr.mxu0 0.0
    %2497 = vmatpush1.msra.mxu0 0.0
    %2498 = vmatprep.subr.mxu0 0.0
    %2499 = vmatpush1.msra.mxu0 0.0
    %2500 = vmatprep.subr.mxu0 0.0
    %2501 = vmatpush1.msra.mxu0 0.0
    %2502 = vmatprep.subr.mxu0 0.0
    %2503 = vmatpush1.msra.mxu0 0.0
    %2504 = vmatprep.subr.mxu0 0.0
    %2505 = vmatpush1.msra.mxu0 0.0
    %2506 = vmatprep.subr.mxu0 0.0
    %2507 = vmatpush1.msra.mxu0 0.0
    %2508 = vmatprep.subr.mxu0 0.0
    %2509 = vmatpush1.msra.mxu0 0.0
    %2510 = vmatprep.subr.mxu0 0.0
    %2511 = vmatpush1.msra.mxu0 0.0
    %2512 = vmatprep.subr.mxu0 0.0
    %2513 = vmatpush1.msra.mxu0 0.0
    %2514 = vmatprep.subr.mxu0 0.0
    %2515 = vmatpush1.msra.mxu0 0.0
    %2516 = vmatprep.subr.mxu0 0.0
    %2517 = vmatpush1.msra.mxu0 0.0
    %2518 = vmatprep.subr.mxu0 0.0
    %2519 = vmatpush1.msra.mxu0 0.0
    %2520 = vmatprep.subr.mxu0 0.0
    %2521 = vmatpush1.msra.mxu0 0.0
    %2522 = vmatprep.subr.mxu0 0.0
    %2523 = vmatpush1.msra.mxu0 0.0
    %2524 = vmatprep.mubr.f32.mxu0 0.0
    %2525 = vmatmul.mubr.f32.gmra.mrb[0].mxu0 %v2458
    %v2526 = vpop.f32.mrb[0].mxu0
    %v2527 = vadd.f32 %v2454, %v2526
    %v2528 = vpop.f32.mrb[0].mxu0
    %2529 = vdwg.mxu0
    %v2530 = vld [vmem:[%s6] sm:$0x1]
    %v2532 = vlaneseq
    %v2533 = vshrl.u32 %v2532, 7
    %v2534 = vsub.s32 0, %v2533
    %v2535 = vrot.slane %v2530, %v2534
    %v2537 = vadd.f32 %v2527, %v2535
    %2538 = vst.msk [vmem:[#allocation14] sm:$0x3] %vm347, %v2537
    %v2539 = vld [vmem:[#allocation11] sm:$0xff]
    %v2540 = vld [vmem:[#allocation11 + $0x8] sm:$0xff]
    %v2541 = vld [vmem:[#allocation11 + $0x10] sm:$0xff]
    %v2542 = vld [vmem:[#allocation11 + $0x18] sm:$0xff]
    %v2543 = vld [vmem:[%s8] sm:$0xff]
    %v2544 = vld [vmem:[%s8 + $0x8] sm:$0xff]
    %v2545 = vld [vmem:[%s8 + $0x10] sm:$0xff]
    %v2546 = vld [vmem:[%s8 + $0x18] sm:$0xff]
    %v2548 = vsel %vm132, %v2363, 0
    %2550 = vmatprep.subr.mxu0 0.0
    %2551 = vmatpush1.msra.mxu0 %v2543
    %2552 = vmatprep.subr.mxu0 0.0
    %2553 = vmatpush1.msra.mxu0 %v2544
    %2554 = vmatprep.subr.mxu0 0.0
    %2555 = vmatpush1.msra.mxu0 %v2545
    %2556 = vmatprep.subr.mxu0 0.0
    %2557 = vmatpush1.msra.mxu0 %v2546
    %2558 = vmatprep.subr.mxu0 0.0
    %2559 = vmatpush1.msra.mxu0 0.0
    %2560 = vmatprep.subr.mxu0 0.0
    %2561 = vmatpush1.msra.mxu0 0.0
    %2562 = vmatprep.subr.mxu0 0.0
    %2563 = vmatpush1.msra.mxu0 0.0
    %2564 = vmatprep.subr.mxu0 0.0
    %2565 = vmatpush1.msra.mxu0 0.0
    %2566 = vmatprep.subr.mxu0 0.0
    %2567 = vmatpush1.msra.mxu0 0.0
    %2568 = vmatprep.subr.mxu0 0.0
    %2569 = vmatpush1.msra.mxu0 0.0
    %2570 = vmatprep.subr.mxu0 0.0
    %2571 = vmatpush1.msra.mxu0 0.0
    %2572 = vmatprep.subr.mxu0 0.0
    %2573 = vmatpush1.msra.mxu0 0.0
    %2574 = vmatprep.subr.mxu0 0.0
    %2575 = vmatpush1.msra.mxu0 0.0
    %2576 = vmatprep.subr.mxu0 0.0
    %2577 = vmatpush1.msra.mxu0 0.0
    %2578 = vmatprep.subr.mxu0 0.0
    %2579 = vmatpush1.msra.mxu0 0.0
    %2580 = vmatprep.subr.mxu0 0.0
    %2581 = vmatpush1.msra.mxu0 0.0
    %2582 = vmatprep.subr.mxu0 0.0
    %2583 = vmatpush1.msra.mxu0 0.0
    %2584 = vmatprep.subr.mxu0 0.0
    %2585 = vmatpush1.msra.mxu0 0.0
    %2586 = vmatprep.subr.mxu0 0.0
    %2587 = vmatpush1.msra.mxu0 0.0
    %2588 = vmatprep.subr.mxu0 0.0
    %2589 = vmatpush1.msra.mxu0 0.0
    %2590 = vmatprep.subr.mxu0 0.0
    %2591 = vmatpush1.msra.mxu0 0.0
    %2592 = vmatprep.subr.mxu0 0.0
    %2593 = vmatpush1.msra.mxu0 0.0
    %2594 = vmatprep.subr.mxu0 0.0
    %2595 = vmatpush1.msra.mxu0 0.0
    %2596 = vmatprep.subr.mxu0 0.0
    %2597 = vmatpush1.msra.mxu0 0.0
    %2598 = vmatprep.subr.mxu0 0.0
    %2599 = vmatpush1.msra.mxu0 0.0
    %2600 = vmatprep.subr.mxu0 0.0
    %2601 = vmatpush1.msra.mxu0 0.0
    %2602 = vmatprep.subr.mxu0 0.0
    %2603 = vmatpush1.msra.mxu0 0.0
    %2604 = vmatprep.subr.mxu0 0.0
    %2605 = vmatpush1.msra.mxu0 0.0
    %2606 = vmatprep.subr.mxu0 0.0
    %2607 = vmatpush1.msra.mxu0 0.0
    %2608 = vmatprep.subr.mxu0 0.0
    %2609 = vmatpush1.msra.mxu0 0.0
    %2610 = vmatprep.subr.mxu0 0.0
    %2611 = vmatpush1.msra.mxu0 0.0
    %2612 = vmatprep.subr.mxu0 0.0
    %2613 = vmatpush1.msra.mxu0 0.0
    %2614 = vmatprep.mubr.f32.mxu0 0.0
    %2615 = vmatmul.mubr.f32.gmra.mrb[0].mxu0 %v2548
    %v2616 = vpop.f32.mrb[0].mxu0
    %v2617 = vadd.f32 0.0, %v2616
    %v2618 = vpop.f32.mrb[0].mxu0
    %2619 = vdwg.mxu0
    %v2621 = vsel %vm132, %v2350, 0
    %2623 = vmatprep.subr.mxu0 0.0
    %2624 = vmatpush1.msra.mxu0 %v2539
    %2625 = vmatprep.subr.mxu0 0.0
    %2626 = vmatpush1.msra.mxu0 %v2540
    %2627 = vmatprep.subr.mxu0 0.0
    %2628 = vmatpush1.msra.mxu0 %v2541
    %2629 = vmatprep.subr.mxu0 0.0
    %2630 = vmatpush1.msra.mxu0 %v2542
    %2631 = vmatprep.subr.mxu0 0.0
    %2632 = vmatpush1.msra.mxu0 0.0
    %2633 = vmatprep.subr.mxu0 0.0
    %2634 = vmatpush1.msra.mxu0 0.0
    %2635 = vmatprep.subr.mxu0 0.0
    %2636 = vmatpush1.msra.mxu0 0.0
    %2637 = vmatprep.subr.mxu0 0.0
    %2638 = vmatpush1.msra.mxu0 0.0
    %2639 = vmatprep.subr.mxu0 0.0
    %2640 = vmatpush1.msra.mxu0 0.0
    %2641 = vmatprep.subr.mxu0 0.0
    %2642 = vmatpush1.msra.mxu0 0.0
    %2643 = vmatprep.subr.mxu0 0.0
    %2644 = vmatpush1.msra.mxu0 0.0
    %2645 = vmatprep.subr.mxu0 0.0
    %2646 = vmatpush1.msra.mxu0 0.0
    %2647 = vmatprep.subr.mxu0 0.0
    %2648 = vmatpush1.msra.mxu0 0.0
    %2649 = vmatprep.subr.mxu0 0.0
    %2650 = vmatpush1.msra.mxu0 0.0
    %2651 = vmatprep.subr.mxu0 0.0
    %2652 = vmatpush1.msra.mxu0 0.0
    %2653 = vmatprep.subr.mxu0 0.0
    %2654 = vmatpush1.msra.mxu0 0.0
    %2655 = vmatprep.subr.mxu0 0.0
    %2656 = vmatpush1.msra.mxu0 0.0
    %2657 = vmatprep.subr.mxu0 0.0
    %2658 = vmatpush1.msra.mxu0 0.0
    %2659 = vmatprep.subr.mxu0 0.0
    %2660 = vmatpush1.msra.mxu0 0.0
    %2661 = vmatprep.subr.mxu0 0.0
    %2662 = vmatpush1.msra.mxu0 0.0
    %2663 = vmatprep.subr.mxu0 0.0
    %2664 = vmatpush1.msra.mxu0 0.0
    %2665 = vmatprep.subr.mxu0 0.0
    %2666 = vmatpush1.msra.mxu0 0.0
    %2667 = vmatprep.subr.mxu0 0.0
    %2668 = vmatpush1.msra.mxu0 0.0
    %2669 = vmatprep.subr.mxu0 0.0
    %2670 = vmatpush1.msra.mxu0 0.0
    %2671 = vmatprep.subr.mxu0 0.0
    %2672 = vmatpush1.msra.mxu0 0.0
    %2673 = vmatprep.subr.mxu0 0.0
    %2674 = vmatpush1.msra.mxu0 0.0
    %2675 = vmatprep.subr.mxu0 0.0
    %2676 = vmatpush1.msra.mxu0 0.0
    %2677 = vmatprep.subr.mxu0 0.0
    %2678 = vmatpush1.msra.mxu0 0.0
    %2679 = vmatprep.subr.mxu0 0.0
    %2680 = vmatpush1.msra.mxu0 0.0
    %2681 = vmatprep.subr.mxu0 0.0
    %2682 = vmatpush1.msra.mxu0 0.0
    %2683 = vmatprep.subr.mxu0 0.0
    %2684 = vmatpush1.msra.mxu0 0.0
    %2685 = vmatprep.subr.mxu0 0.0
    %2686 = vmatpush1.msra.mxu0 0.0
    %2687 = vmatprep.mubr.f32.mxu0 0.0
    %2688 = vmatmul.mubr.f32.gmra.mrb[0].mxu0 %v2621
    %v2689 = vpop.f32.mrb[0].mxu0
    %v2690 = vadd.f32 %v2617, %v2689
    %v2691 = vpop.f32.mrb[0].mxu0
    %2692 = vdwg.mxu0
    %v2693 = vld [vmem:[%s9] sm:$0x1]
    %v2695 = vlaneseq
    %v2696 = vshrl.u32 %v2695, 7
    %v2697 = vsub.s32 0, %v2696
    %v2698 = vrot.slane %v2693, %v2697
    %v2700 = vadd.f32 %v2690, %v2698
    %2701 = vst.msk [vmem:[#allocation16] sm:$0x3] %vm347, %v2700
    // Predicated region
    $region66: #{tpu_custom_call.1} parent=1 // pred_check
      _
    $region67: #{tpu_custom_call.1} parent=1 // pred_check_branch
      %2703 = sbr.rel (0) target = $region69
    $region68: #{tpu_custom_call.1} parent=1 // pred_region
      %s2705 = ssub.s32 256, 256
      %2706 = vsyncadd [#allocation4], %s2705
      %s2707 = sshll.u32 [#allocation13], 4
      %s2708 = int_to_ptr.vmem [resolvable:$true] %s2707
      %2713 = dma.vmem_to_hbm [thread:$0]  %s2708, 256, %s10, [#allocation4], 32, 32, 2
    $region69: #{tpu_custom_call.1} parent=1 // pred_fallthru
      _
    // Predicated region
    $region70: #{tpu_custom_call.1} parent=1 // pred_check
      _
    $region71: #{tpu_custom_call.1} parent=1 // pred_check_branch
      %2715 = sbr.rel (0) target = $region73
    $region72: #{tpu_custom_call.1} parent=1 // pred_region
      %s2717 = ssub.s32 32, 32
      %2718 = vsyncadd [#allocation15], %s2717
      %s2720 = sshll.u32 [#allocation14], 4
      %s2721 = int_to_ptr.vmem [resolvable:$true] %s2720
      %2723 = dma.vmem_to_hbm [thread:$0]  %s2721, 32, %s11, [#allocation15]
    $region73: #{tpu_custom_call.1} parent=1 // pred_fallthru
      _
    // Predicated region
    $region74: #{tpu_custom_call.1} parent=1 // pred_check
      _
    $region75: #{tpu_custom_call.1} parent=1 // pred_check_branch
      %2725 = sbr.rel (0) target = $region77
    $region76: #{tpu_custom_call.1} parent=1 // pred_region
      %s2727 = ssub.s32 32, 32
      %2728 = vsyncadd [#allocation15], %s2727
      %s2730 = sshll.u32 [#allocation16], 4
      %s2731 = int_to_ptr.vmem [resolvable:$true] %s2730
      %2733 = dma.vmem_to_hbm [thread:$0]  %s2731, 32, %s12, [#allocation15]
    $region77: #{tpu_custom_call.1} parent=1 // pred_fallthru
      _
    // Predicated region
    $region78: #{tpu_custom_call.1} parent=1 // pred_check
      _
    $region79: #{tpu_custom_call.1} parent=1 // pred_check_branch
      %2735 = sbr.rel (0) target = $region81
    $region80: #{tpu_custom_call.1} parent=1 // pred_region
      %2736 = dma.done [#allocation4], 256
    $region81: #{tpu_custom_call.1} parent=1 // pred_fallthru
      _
    // Predicated region
    $region82: #{tpu_custom_call.1} parent=1 // pred_check
      _
    $region83: #{tpu_custom_call.1} parent=1 // pred_check_branch
      %2738 = sbr.rel (0) target = $region85
    $region84: #{tpu_custom_call.1} parent=1 // pred_region
      %2739 = dma.done [#allocation15], 32
    $region85: #{tpu_custom_call.1} parent=1 // pred_fallthru
      _
    // Predicated region
    $region86: #{tpu_custom_call.1} parent=1 // pred_check
      _
    $region87: #{tpu_custom_call.1} parent=1 // pred_check_branch
      %2741 = sbr.rel (0) target = $region89
    $region88: #{tpu_custom_call.1} parent=1 // pred_region
      %2742 = dma.done [#allocation15], 32
    $region89: #{tpu_custom_call.1} parent=1 // pred_fallthru
      _
    %2743 = vsyncpa [#allocation3], 1
    %2744 = vsyncpa [#allocation6], 1
    %2745 = vsyncpa [#allocation9], 1
    %2746 = vsyncpa [#allocation12], 1
    %2747 = vsyncpa [#allocation4], 1
    %2748 = vsyncpa [#allocation15], 1

</llo_original>
